<compile_context>
chip_gen: v5e
topology: v5e:2x2
jax: 0.10.0
libtpu: 0.0.40
codegen_flags: <defaults>
</compile_context>

<pallas_src>
import jax
import jax.numpy as jnp
from jax.experimental import pallas as pl
from jax.experimental.pallas import tpu as pltpu

HIDDEN_SIZE = 512
INPUT_SIZE = 20
OUTPUT_SIZE = 12

# Lane-dense padded feature dims (vreg lane width is 128).
IN_PAD = 128
OUT_PAD = 128


def _round_up(x, m):
    return ((x + m - 1) // m) * m


def mlp_kernel(x_ref, w1_ref, b1_ref, w2_ref, b2_ref, w3_ref, b3_ref,
               w4_ref, b4_ref, o_ref):
    """Four matmuls + bias + ReLU fused; intermediates stay in vregs/VMEM.

    Matmul operands are in the weights' dtype (bf16 by default) and accumulate
    in f32 on the MXU; bias add and ReLU are done in f32 on the VPU.
    """
    cdt = w1_ref.dtype
    h = jnp.dot(x_ref[...], w1_ref[...], preferred_element_type=jnp.float32)
    h = jnp.maximum(h + b1_ref[...], 0.0)
    h = jnp.dot(h.astype(cdt), w2_ref[...], preferred_element_type=jnp.float32)
    h = jnp.maximum(h + b2_ref[...], 0.0)
    h = jnp.dot(h.astype(cdt), w3_ref[...], preferred_element_type=jnp.float32)
    h = jnp.maximum(h + b3_ref[...], 0.0)
    h = jnp.dot(h.astype(cdt), w4_ref[...], preferred_element_type=jnp.float32)
    o_ref[...] = (h + b4_ref[...]).astype(o_ref.dtype)


def _const_spec(shape, single_buffer):
    """BlockSpec for a grid-invariant (fully replicated) operand."""
    nd = len(shape)
    index_map = lambda i: (0,) * nd
    if single_buffer and hasattr(pl, "Buffered"):
        try:
            # Weights never change across the grid -> no need to double-buffer.
            return pl.BlockSpec(shape, index_map, pipeline_mode=pl.Buffered(1))
        except TypeError:
            pass
    return pl.BlockSpec(shape, index_map)


def _run_mlp(xp, kparams, batch_tile, single_buffer):
    """xp: [Bp, IN_PAD] (Bp % batch_tile == 0); kparams: padded/cast params."""
    w1, b1, w2, b2, w3, b3, w4, b4 = kparams
    Bp = xp.shape[0]
    n_tiles = Bp // batch_tile

    flops = 2 * Bp * (IN_PAD * HIDDEN_SIZE
                      + 2 * HIDDEN_SIZE * HIDDEN_SIZE
                      + HIDDEN_SIZE * OUT_PAD)
    bytes_accessed = (xp.size * xp.dtype.itemsize
                      + sum(int(p.size) * p.dtype.itemsize for p in kparams)
                      + Bp * OUT_PAD * 4)

    in_specs = [pl.BlockSpec((batch_tile, IN_PAD), lambda i: (i, 0))]
    for p in kparams:
        in_specs.append(_const_spec(p.shape, single_buffer))

    return pl.pallas_call(
        mlp_kernel,
        out_shape=jax.ShapeDtypeStruct((Bp, OUT_PAD), jnp.float32),
        grid_spec=pltpu.PrefetchScalarGridSpec(
            num_scalar_prefetch=0,
            grid=(n_tiles,),
            in_specs=in_specs,
            out_specs=pl.BlockSpec((batch_tile, OUT_PAD), lambda i: (i, 0)),
        ),
        compiler_params=pltpu.CompilerParams(
            dimension_semantics=("parallel",)),
        cost_estimate=pl.CostEstimate(
            flops=flops, transcendentals=0, bytes_accessed=bytes_accessed),
    )(xp, w1, b1, w2, b2, w3, b3, w4, b4)


def prepare_params(params, compute_dtype=jnp.bfloat16):
    """Pad feature dims to lane-dense 128 and cast weights to the matmul dtype.

    Weights are [in, out] (transpose of PyTorch); biases stay f32 as [1, out].
    Padded rows/cols are zero so the math is unchanged.
    """
    w1, b1, w2, b2, w3, b3, w4, b4 = params
    w1p = jnp.zeros((IN_PAD, HIDDEN_SIZE), compute_dtype)
    w1p = w1p.at[:INPUT_SIZE, :].set(w1.astype(compute_dtype))
    w4p = jnp.zeros((HIDDEN_SIZE, OUT_PAD), compute_dtype)
    w4p = w4p.at[:, :OUTPUT_SIZE].set(w4.astype(compute_dtype))
    b4p = jnp.zeros((1, OUT_PAD), jnp.float32).at[:, :OUTPUT_SIZE].set(b4)
    return (w1p, b1.astype(jnp.float32),
            w2.astype(compute_dtype), b2.astype(jnp.float32),
            w3.astype(compute_dtype), b3.astype(jnp.float32),
            w4p, b4p)


def mlp_forward(x, kernel_params, *, batch_tile=None):
    """Run the fused MLP kernel.

    x: [B, INPUT_SIZE] f32. kernel_params: output of prepare_params().
    Returns [B, OUTPUT_SIZE] f32.
    """
    compute_dtype = kernel_params[0].dtype
    B = x.shape[0]
    if batch_tile is None:
        # MXU-aligned tile: 256 fills the v6e/v7x 256-wide MXU (and is a
        # multiple of the v5e 128-wide MXU); small batches just use B
        # rounded up to 16 (bf16 sublane packing).
        batch_tile = min(256, _round_up(B, 16))
    Bp = _round_up(B, batch_tile)

    # Zero-pad batch and feature dims, cast activations to the matmul dtype.
    xp = jnp.zeros((Bp, IN_PAD), compute_dtype)
    xp = xp.at[:B, :INPUT_SIZE].set(x.astype(compute_dtype))

    try:
        out = jax.block_until_ready(
            _run_mlp(xp, kernel_params, batch_tile, single_buffer=True))
    except Exception:
        # pipeline_mode=pl.Buffered(1) not supported by this jax build:
        # fall back to default (double-buffered) weight specs.
        out = _run_mlp(xp, kernel_params, batch_tile, single_buffer=False)

    return out[:B, :OUTPUT_SIZE]


def init_params(key):
    """Deterministic init matching nn.Linear's U(-1/sqrt(fan_in), 1/sqrt(fan_in)).

    Weights are [in_features, out_features] (transpose of PyTorch); biases are
    [1, out_features] so they broadcast cleanly on TPU.
    """
    dims = [(INPUT_SIZE, HIDDEN_SIZE),
            (HIDDEN_SIZE, HIDDEN_SIZE),
            (HIDDEN_SIZE, HIDDEN_SIZE),
            (HIDDEN_SIZE, OUTPUT_SIZE)]
    params = []
    keys = jax.random.split(key, 2 * len(dims))
    for idx, (fan_in, fan_out) in enumerate(dims):
        bound = 1.0 / jnp.sqrt(jnp.float32(fan_in))
        w = jax.random.uniform(keys[2 * idx], (fan_in, fan_out),
                               dtype=jnp.float32, minval=-bound, maxval=bound)
        b = jax.random.uniform(keys[2 * idx + 1], (1, fan_out),
                               dtype=jnp.float32, minval=-bound, maxval=bound)
        params += [w, b]
    return tuple(params)


def mlp_reference_f32(x, params):
    w1, b1, w2, b2, w3, b3, w4, b4 = params
    h = jnp.maximum(x @ w1 + b1, 0.0)
    h = jnp.maximum(h @ w2 + b2, 0.0)
    h = jnp.maximum(h @ w3 + b3, 0.0)
    return h @ w4 + b4


def mlp_reference_bf16(x, params, compute_dtype=jnp.bfloat16):
    """Mirrors the kernel numerics: bf16 matmul operands, f32 accum + elementwise."""
    w1, b1, w2, b2, w3, b3, w4, b4 = params

    def mm(a, w):
        return jnp.dot(a.astype(compute_dtype), w.astype(compute_dtype),
                       preferred_element_type=jnp.float32)

    h = jnp.maximum(mm(x, w1) + b1, 0.0)
    h = jnp.maximum(mm(h, w2) + b2, 0.0)
    h = jnp.maximum(mm(h, w3) + b3, 0.0)
    return mm(h, w4) + b4


if __name__ == "__main__":
    key = jax.random.PRNGKey(0)
    pkey, xkey = jax.random.split(key)
    params = init_params(pkey)

    batch = 16
    x = jax.random.normal(xkey, (batch, INPUT_SIZE), dtype=jnp.float32)

    kernel_params = prepare_params(params)          # bf16 matmul operands
    out = mlp_forward(x, kernel_params)
    out = jax.block_until_ready(out)

    assert out.shape == (batch, OUTPUT_SIZE)
    ref_bf16 = mlp_reference_bf16(x, params)        # same numerics as kernel
    ref_f32 = mlp_reference_f32(x, params)          # original f32 semantics
    assert jnp.allclose(out, ref_bf16, atol=2e-3, rtol=2e-3), "mismatch vs bf16 reference"
    assert jnp.allclose(out, ref_f32, atol=1e-1, rtol=1e-1), "mismatch vs f32 reference"

    print("KERNEL_OK")
</pallas_src>

<mosaic_0001>
module attributes {stable_mosaic.version = 11 : i64} {
  func.func @mlp_kernel(%arg0: i32, %arg1: memref<16x128xbf16, #tpu.memory_space<vmem>>, %arg2: memref<128x512xbf16, #tpu.memory_space<vmem>>, %arg3: memref<1x512xf32, #tpu.memory_space<vmem>>, %arg4: memref<512x512xbf16, #tpu.memory_space<vmem>>, %arg5: memref<1x512xf32, #tpu.memory_space<vmem>>, %arg6: memref<512x512xbf16, #tpu.memory_space<vmem>>, %arg7: memref<1x512xf32, #tpu.memory_space<vmem>>, %arg8: memref<512x128xbf16, #tpu.memory_space<vmem>>, %arg9: memref<1x128xf32, #tpu.memory_space<vmem>>, %arg10: memref<16x128xf32, #tpu.memory_space<vmem>>) attributes {dimension_semantics = [#tpu.dimension_semantics<parallel>], iteration_bounds = array<i64: 1>, scalar_prefetch = 0 : i64, scratch_operands = 0 : i64, tpu.core_type = #tpu.core_type<tc>, window_params = [{transform_indices = @transform_0, window_bounds = array<i64: 16, 128>}, {pipeline_mode = #tpu.pipeline_mode<synchronous>, transform_indices = @transform_1, window_bounds = array<i64: 128, 512>}, {pipeline_mode = #tpu.pipeline_mode<synchronous>, transform_indices = @transform_2, window_bounds = array<i64: 1, 512>}, {pipeline_mode = #tpu.pipeline_mode<synchronous>, transform_indices = @transform_3, window_bounds = array<i64: 512, 512>}, {pipeline_mode = #tpu.pipeline_mode<synchronous>, transform_indices = @transform_4, window_bounds = array<i64: 1, 512>}, {pipeline_mode = #tpu.pipeline_mode<synchronous>, transform_indices = @transform_5, window_bounds = array<i64: 512, 512>}, {pipeline_mode = #tpu.pipeline_mode<synchronous>, transform_indices = @transform_6, window_bounds = array<i64: 1, 512>}, {pipeline_mode = #tpu.pipeline_mode<synchronous>, transform_indices = @transform_7, window_bounds = array<i64: 512, 128>}, {pipeline_mode = #tpu.pipeline_mode<synchronous>, transform_indices = @transform_8, window_bounds = array<i64: 1, 128>}, {transform_indices = @transform_9, window_bounds = array<i64: 16, 128>}]} {
    %c0 = arith.constant 0 : index
    %c0_0 = arith.constant 0 : index
    %0 = vector.load %arg1[%c0, %c0_0] : memref<16x128xbf16, #tpu.memory_space<vmem>>, vector<16x128xbf16>
    %c0_1 = arith.constant 0 : index
    %c0_2 = arith.constant 0 : index
    %1 = vector.load %arg2[%c0_1, %c0_2] : memref<128x512xbf16, #tpu.memory_space<vmem>>, vector<128x512xbf16>
    %cst = arith.constant dense<0.000000e+00> : vector<16x512xf32>
    %2 = tpu.matmul %0, %1, %cst {dimension_numbers = #tpu.dot_dimension_numbers<[1], [0], [0], [1], [0, 0, 1, 1], [], []>} : vector<16x128xbf16>, vector<128x512xbf16>, vector<16x512xf32> -> vector<16x512xf32>
    %c0_3 = arith.constant 0 : index
    %c0_4 = arith.constant 0 : index
    %3 = vector.load %arg3[%c0_3, %c0_4] : memref<1x512xf32, #tpu.memory_space<vmem>>, vector<1x512xf32>
    %4 = vector.broadcast %3 : vector<1x512xf32> to vector<16x512xf32>
    %5 = arith.addf %2, %4 : vector<16x512xf32>
    %cst_5 = arith.constant 0.000000e+00 : f32
    %6 = vector.broadcast %cst_5 : f32 to vector<16x512xf32>
    %7 = arith.maximumf %5, %6 : vector<16x512xf32>
    %8 = arith.truncf %7 : vector<16x512xf32> to vector<16x512xbf16>
    %c0_6 = arith.constant 0 : index
    %c0_7 = arith.constant 0 : index
    %9 = vector.load %arg4[%c0_6, %c0_7] : memref<512x512xbf16, #tpu.memory_space<vmem>>, vector<512x512xbf16>
    %cst_8 = arith.constant dense<0.000000e+00> : vector<16x512xf32>
    %10 = tpu.matmul %8, %9, %cst_8 {dimension_numbers = #tpu.dot_dimension_numbers<[1], [0], [0], [1], [0, 0, 1, 1], [], []>} : vector<16x512xbf16>, vector<512x512xbf16>, vector<16x512xf32> -> vector<16x512xf32>
    %c0_9 = arith.constant 0 : index
    %c0_10 = arith.constant 0 : index
    %11 = vector.load %arg5[%c0_9, %c0_10] : memref<1x512xf32, #tpu.memory_space<vmem>>, vector<1x512xf32>
    %12 = vector.broadcast %11 : vector<1x512xf32> to vector<16x512xf32>
    %13 = arith.addf %10, %12 : vector<16x512xf32>
    %cst_11 = arith.constant 0.000000e+00 : f32
    %14 = vector.broadcast %cst_11 : f32 to vector<16x512xf32>
    %15 = arith.maximumf %13, %14 : vector<16x512xf32>
    %16 = arith.truncf %15 : vector<16x512xf32> to vector<16x512xbf16>
    %c0_12 = arith.constant 0 : index
    %c0_13 = arith.constant 0 : index
    %17 = vector.load %arg6[%c0_12, %c0_13] : memref<512x512xbf16, #tpu.memory_space<vmem>>, vector<512x512xbf16>
    %cst_14 = arith.constant dense<0.000000e+00> : vector<16x512xf32>
    %18 = tpu.matmul %16, %17, %cst_14 {dimension_numbers = #tpu.dot_dimension_numbers<[1], [0], [0], [1], [0, 0, 1, 1], [], []>} : vector<16x512xbf16>, vector<512x512xbf16>, vector<16x512xf32> -> vector<16x512xf32>
    %c0_15 = arith.constant 0 : index
    %c0_16 = arith.constant 0 : index
    %19 = vector.load %arg7[%c0_15, %c0_16] : memref<1x512xf32, #tpu.memory_space<vmem>>, vector<1x512xf32>
    %20 = vector.broadcast %19 : vector<1x512xf32> to vector<16x512xf32>
    %21 = arith.addf %18, %20 : vector<16x512xf32>
    %cst_17 = arith.constant 0.000000e+00 : f32
    %22 = vector.broadcast %cst_17 : f32 to vector<16x512xf32>
    %23 = arith.maximumf %21, %22 : vector<16x512xf32>
    %24 = arith.truncf %23 : vector<16x512xf32> to vector<16x512xbf16>
    %c0_18 = arith.constant 0 : index
    %c0_19 = arith.constant 0 : index
    %25 = vector.load %arg8[%c0_18, %c0_19] : memref<512x128xbf16, #tpu.memory_space<vmem>>, vector<512x128xbf16>
    %cst_20 = arith.constant dense<0.000000e+00> : vector<16x128xf32>
    %26 = tpu.matmul %24, %25, %cst_20 {dimension_numbers = #tpu.dot_dimension_numbers<[1], [0], [0], [1], [0, 0, 1, 1], [], []>} : vector<16x512xbf16>, vector<512x128xbf16>, vector<16x128xf32> -> vector<16x128xf32>
    %c0_21 = arith.constant 0 : index
    %c0_22 = arith.constant 0 : index
    %27 = vector.load %arg9[%c0_21, %c0_22] : memref<1x128xf32, #tpu.memory_space<vmem>>, vector<1x128xf32>
    %28 = vector.broadcast %27 : vector<1x128xf32> to vector<16x128xf32>
    %29 = arith.addf %26, %28 : vector<16x128xf32>
    %c0_23 = arith.constant 0 : index
    %c0_24 = arith.constant 0 : index
    %30 = vector.load %arg10[%c0_23, %c0_24] : memref<16x128xf32, #tpu.memory_space<vmem>>, vector<16x128xf32>
    tpu.vector_store %arg10[%c0_23, %c0_24], %29 {strides = array<i32>} : memref<16x128xf32, #tpu.memory_space<vmem>>, vector<16x128xf32>,
    return
  }
  func.func @transform_0(%arg0: i32) -> (i32, i32) {
    %c0_i32 = arith.constant 0 : i32
    %c0_i32_0 = arith.constant 0 : i32
    return %arg0, %c0_i32 : i32, i32
  }
  func.func @transform_1(%arg0: i32) -> (i32, i32) {
    %c0_i32 = arith.constant 0 : i32
    %c0_i32_0 = arith.constant 0 : i32
    %c0_i32_1 = arith.constant 0 : i32
    return %c0_i32, %c0_i32_0 : i32, i32
  }
  func.func @transform_2(%arg0: i32) -> (i32, i32) {
    %c0_i32 = arith.constant 0 : i32
    %c0_i32_0 = arith.constant 0 : i32
    %c0_i32_1 = arith.constant 0 : i32
    return %c0_i32, %c0_i32_0 : i32, i32
  }
  func.func @transform_3(%arg0: i32) -> (i32, i32) {
    %c0_i32 = arith.constant 0 : i32
    %c0_i32_0 = arith.constant 0 : i32
    %c0_i32_1 = arith.constant 0 : i32
    return %c0_i32, %c0_i32_0 : i32, i32
  }
  func.func @transform_4(%arg0: i32) -> (i32, i32) {
    %c0_i32 = arith.constant 0 : i32
    %c0_i32_0 = arith.constant 0 : i32
    %c0_i32_1 = arith.constant 0 : i32
    return %c0_i32, %c0_i32_0 : i32, i32
  }
  func.func @transform_5(%arg0: i32) -> (i32, i32) {
    %c0_i32 = arith.constant 0 : i32
    %c0_i32_0 = arith.constant 0 : i32
    %c0_i32_1 = arith.constant 0 : i32
    return %c0_i32, %c0_i32_0 : i32, i32
  }
  func.func @transform_6(%arg0: i32) -> (i32, i32) {
    %c0_i32 = arith.constant 0 : i32
    %c0_i32_0 = arith.constant 0 : i32
    %c0_i32_1 = arith.constant 0 : i32
    return %c0_i32, %c0_i32_0 : i32, i32
  }
  func.func @transform_7(%arg0: i32) -> (i32, i32) {
    %c0_i32 = arith.constant 0 : i32
    %c0_i32_0 = arith.constant 0 : i32
    %c0_i32_1 = arith.constant 0 : i32
    return %c0_i32, %c0_i32_0 : i32, i32
  }
  func.func @transform_8(%arg0: i32) -> (i32, i32) {
    %c0_i32 = arith.constant 0 : i32
    %c0_i32_0 = arith.constant 0 : i32
    %c0_i32_1 = arith.constant 0 : i32
    return %c0_i32, %c0_i32_0 : i32, i32
  }
  func.func @transform_9(%arg0: i32) -> (i32, i32) {
    %c0_i32 = arith.constant 0 : i32
    %c0_i32_0 = arith.constant 0 : i32
    return %arg0, %c0_i32 : i32, i32
  }
}

module attributes {stable_mosaic.version = 11 : i64} {
  func.func @mlp_kernel(%arg0: i32, %arg1: memref<16x128xbf16, #tpu.memory_space<vmem>>, %arg2: memref<128x512xbf16, #tpu.memory_space<vmem>>, %arg3: memref<1x512xf32, #tpu.memory_space<vmem>>, %arg4: memref<512x512xbf16, #tpu.memory_space<vmem>>, %arg5: memref<1x512xf32, #tpu.memory_space<vmem>>, %arg6: memref<512x512xbf16, #tpu.memory_space<vmem>>, %arg7: memref<1x512xf32, #tpu.memory_space<vmem>>, %arg8: memref<512x128xbf16, #tpu.memory_space<vmem>>, %arg9: memref<1x128xf32, #tpu.memory_space<vmem>>, %arg10: memref<16x128xf32, #tpu.memory_space<vmem>>) attributes {dimension_semantics = [#tpu.dimension_semantics<parallel>], iteration_bounds = array<i64: 1>, scalar_prefetch = 0 : i64, scratch_operands = 0 : i64, tpu.core_type = #tpu.core_type<tc>, window_params = [{transform_indices = @transform_0, window_bounds = array<i64: 16, 128>}, {pipeline_mode = #tpu.pipeline_mode<synchronous>, transform_indices = @transform_1, window_bounds = array<i64: 128, 512>}, {pipeline_mode = #tpu.pipeline_mode<synchronous>, transform_indices = @transform_2, window_bounds = array<i64: 1, 512>}, {pipeline_mode = #tpu.pipeline_mode<synchronous>, transform_indices = @transform_3, window_bounds = array<i64: 512, 512>}, {pipeline_mode = #tpu.pipeline_mode<synchronous>, transform_indices = @transform_4, window_bounds = array<i64: 1, 512>}, {pipeline_mode = #tpu.pipeline_mode<synchronous>, transform_indices = @transform_5, window_bounds = array<i64: 512, 512>}, {pipeline_mode = #tpu.pipeline_mode<synchronous>, transform_indices = @transform_6, window_bounds = array<i64: 1, 512>}, {pipeline_mode = #tpu.pipeline_mode<synchronous>, transform_indices = @transform_7, window_bounds = array<i64: 512, 128>}, {pipeline_mode = #tpu.pipeline_mode<synchronous>, transform_indices = @transform_8, window_bounds = array<i64: 1, 128>}, {transform_indices = @transform_9, window_bounds = array<i64: 16, 128>}]} {
    %c0 = arith.constant 0 : index
    %c0_0 = arith.constant 0 : index
    %0 = vector.load %arg1[%c0, %c0_0] : memref<16x128xbf16, #tpu.memory_space<vmem>>, vector<16x128xbf16>
    %c0_1 = arith.constant 0 : index
    %c0_2 = arith.constant 0 : index
    %1 = vector.load %arg2[%c0_1, %c0_2] : memref<128x512xbf16, #tpu.memory_space<vmem>>, vector<128x512xbf16>
    %cst = arith.constant dense<0.000000e+00> : vector<16x512xf32>
    %2 = tpu.matmul %0, %1, %cst {dimension_numbers = #tpu.dot_dimension_numbers<[1], [0], [0], [1], [0, 0, 1, 1], [], []>} : vector<16x128xbf16>, vector<128x512xbf16>, vector<16x512xf32> -> vector<16x512xf32>
    %c0_3 = arith.constant 0 : index
    %c0_4 = arith.constant 0 : index
    %3 = vector.load %arg3[%c0_3, %c0_4] : memref<1x512xf32, #tpu.memory_space<vmem>>, vector<1x512xf32>
    %4 = vector.broadcast %3 : vector<1x512xf32> to vector<16x512xf32>
    %5 = arith.addf %2, %4 : vector<16x512xf32>
    %cst_5 = arith.constant 0.000000e+00 : f32
    %6 = vector.broadcast %cst_5 : f32 to vector<16x512xf32>
    %7 = arith.maximumf %5, %6 : vector<16x512xf32>
    %8 = arith.truncf %7 : vector<16x512xf32> to vector<16x512xbf16>
    %c0_6 = arith.constant 0 : index
    %c0_7 = arith.constant 0 : index
    %9 = vector.load %arg4[%c0_6, %c0_7] : memref<512x512xbf16, #tpu.memory_space<vmem>>, vector<512x512xbf16>
    %cst_8 = arith.constant dense<0.000000e+00> : vector<16x512xf32>
    %10 = tpu.matmul %8, %9, %cst_8 {dimension_numbers = #tpu.dot_dimension_numbers<[1], [0], [0], [1], [0, 0, 1, 1], [], []>} : vector<16x512xbf16>, vector<512x512xbf16>, vector<16x512xf32> -> vector<16x512xf32>
    %c0_9 = arith.constant 0 : index
    %c0_10 = arith.constant 0 : index
    %11 = vector.load %arg5[%c0_9, %c0_10] : memref<1x512xf32, #tpu.memory_space<vmem>>, vector<1x512xf32>
    %12 = vector.broadcast %11 : vector<1x512xf32> to vector<16x512xf32>
    %13 = arith.addf %10, %12 : vector<16x512xf32>
    %cst_11 = arith.constant 0.000000e+00 : f32
    %14 = vector.broadcast %cst_11 : f32 to vector<16x512xf32>
    %15 = arith.maximumf %13, %14 : vector<16x512xf32>
    %16 = arith.truncf %15 : vector<16x512xf32> to vector<16x512xbf16>
    %c0_12 = arith.constant 0 : index
    %c0_13 = arith.constant 0 : index
    %17 = vector.load %arg6[%c0_12, %c0_13] : memref<512x512xbf16, #tpu.memory_space<vmem>>, vector<512x512xbf16>
    %cst_14 = arith.constant dense<0.000000e+00> : vector<16x512xf32>
    %18 = tpu.matmul %16, %17, %cst_14 {dimension_numbers = #tpu.dot_dimension_numbers<[1], [0], [0], [1], [0, 0, 1, 1], [], []>} : vector<16x512xbf16>, vector<512x512xbf16>, vector<16x512xf32> -> vector<16x512xf32>
    %c0_15 = arith.constant 0 : index
    %c0_16 = arith.constant 0 : index
    %19 = vector.load %arg7[%c0_15, %c0_16] : memref<1x512xf32, #tpu.memory_space<vmem>>, vector<1x512xf32>
    %20 = vector.broadcast %19 : vector<1x512xf32> to vector<16x512xf32>
    %21 = arith.addf %18, %20 : vector<16x512xf32>
    %cst_17 = arith.constant 0.000000e+00 : f32
    %22 = vector.broadcast %cst_17 : f32 to vector<16x512xf32>
    %23 = arith.maximumf %21, %22 : vector<16x512xf32>
    %24 = arith.truncf %23 : vector<16x512xf32> to vector<16x512xbf16>
    %c0_18 = arith.constant 0 : index
    %c0_19 = arith.constant 0 : index
    %25 = vector.load %arg8[%c0_18, %c0_19] : memref<512x128xbf16, #tpu.memory_space<vmem>>, vector<512x128xbf16>
    %cst_20 = arith.constant dense<0.000000e+00> : vector<16x128xf32>
    %26 = tpu.matmul %24, %25, %cst_20 {dimension_numbers = #tpu.dot_dimension_numbers<[1], [0], [0], [1], [0, 0, 1, 1], [], []>} : vector<16x512xbf16>, vector<512x128xbf16>, vector<16x128xf32> -> vector<16x128xf32>
    %c0_21 = arith.constant 0 : index
    %c0_22 = arith.constant 0 : index
    %27 = vector.load %arg9[%c0_21, %c0_22] : memref<1x128xf32, #tpu.memory_space<vmem>>, vector<1x128xf32>
    %28 = vector.broadcast %27 : vector<1x128xf32> to vector<16x128xf32>
    %29 = arith.addf %26, %28 : vector<16x128xf32>
    %c0_23 = arith.constant 0 : index
    %c0_24 = arith.constant 0 : index
    %30 = vector.load %arg10[%c0_23, %c0_24] : memref<16x128xf32, #tpu.memory_space<vmem>>, vector<16x128xf32>
    tpu.vector_store %arg10[%c0_23, %c0_24], %29 {strides = array<i32>} : memref<16x128xf32, #tpu.memory_space<vmem>>, vector<16x128xf32>,
    return
  }
  func.func @transform_0(%arg0: i32) -> (i32, i32) {
    %c0_i32 = arith.constant 0 : i32
    %c0_i32_0 = arith.constant 0 : i32
    return %arg0, %c0_i32 : i32, i32
  }
  func.func @transform_1(%arg0: i32) -> (i32, i32) {
    %c0_i32 = arith.constant 0 : i32
    %c0_i32_0 = arith.constant 0 : i32
    %c0_i32_1 = arith.constant 0 : i32
    return %c0_i32, %c0_i32_0 : i32, i32
  }
  func.func @transform_2(%arg0: i32) -> (i32, i32) {
    %c0_i32 = arith.constant 0 : i32
    %c0_i32_0 = arith.constant 0 : i32
    %c0_i32_1 = arith.constant 0 : i32
    return %c0_i32, %c0_i32_0 : i32, i32
  }
  func.func @transform_3(%arg0: i32) -> (i32, i32) {
    %c0_i32 = arith.constant 0 : i32
    %c0_i32_0 = arith.constant 0 : i32
    %c0_i32_1 = arith.constant 0 : i32
    return %c0_i32, %c0_i32_0 : i32, i32
  }
  func.func @transform_4(%arg0: i32) -> (i32, i32) {
    %c0_i32 = arith.constant 0 : i32
    %c0_i32_0 = arith.constant 0 : i32
    %c0_i32_1 = arith.constant 0 : i32
    return %c0_i32, %c0_i32_0 : i32, i32
  }
  func.func @transform_5(%arg0: i32) -> (i32, i32) {
    %c0_i32 = arith.constant 0 : i32
    %c0_i32_0 = arith.constant 0 : i32
    %c0_i32_1 = arith.constant 0 : i32
    return %c0_i32, %c0_i32_0 : i32, i32
  }
  func.func @transform_6(%arg0: i32) -> (i32, i32) {
    %c0_i32 = arith.constant 0 : i32
    %c0_i32_0 = arith.constant 0 : i32
    %c0_i32_1 = arith.constant 0 : i32
    return %c0_i32, %c0_i32_0 : i32, i32
  }
  func.func @transform_7(%arg0: i32) -> (i32, i32) {
    %c0_i32 = arith.constant 0 : i32
    %c0_i32_0 = arith.constant 0 : i32
    %c0_i32_1 = arith.constant 0 : i32
    return %c0_i32, %c0_i32_0 : i32, i32
  }
  func.func @transform_8(%arg0: i32) -> (i32, i32) {
    %c0_i32 = arith.constant 0 : i32
    %c0_i32_0 = arith.constant 0 : i32
    %c0_i32_1 = arith.constant 0 : i32
    return %c0_i32, %c0_i32_0 : i32, i32
  }
  func.func @transform_9(%arg0: i32) -> (i32, i32) {
    %c0_i32 = arith.constant 0 : i32
    %c0_i32_0 = arith.constant 0 : i32
    return %arg0, %c0_i32 : i32, i32
  }
}

</mosaic_0001>

<llo_original>
// kernel: tpu_custom_call.1
$region0: #{tpu_custom_call.1}
  #allocation0 [shape = 'u32[]', space=smem, size = 0x4, offset = 0x4, fixed_abs, tag = 'smem constant byte address 0x4 - core index']
  #allocation1 [shape = 'u32[72,128]{1,0:T(1,128)}', space=vmem, size = 0x9000, scoped, tag = 'internal scratch']
  %s0 = inlined_call_operand.hbm [shape: bf16[16,128], index: 0, kind: input, shape index: {}]
  %s1 = inlined_call_operand.hbm [shape: bf16[128,512], index: 1, kind: input, shape index: {}]
  %s2 = inlined_call_operand.hbm [shape: f32[1,512], index: 2, kind: input, shape index: {}]
  %s3 = inlined_call_operand.hbm [shape: bf16[512,512], index: 3, kind: input, shape index: {}]
  %s4 = inlined_call_operand.hbm [shape: f32[1,512], index: 4, kind: input, shape index: {}]
  %s5 = inlined_call_operand.hbm [shape: bf16[512,512], index: 5, kind: input, shape index: {}]
  %s6 = inlined_call_operand.vmem [shape: f32[1,512], index: 6, kind: input, shape index: {}]
  %s7 = inlined_call_operand.hbm [shape: bf16[512,128], index: 7, kind: input, shape index: {}]
  %s8 = inlined_call_operand.vmem [shape: f32[1,128], index: 8, kind: input, shape index: {}]
  %s9 = inlined_call_operand.hbm [shape: f32[16,128], index: 9, kind: output, shape index: {}]
  %s10 = sld [smem:[#allocation0]]
  $region74: #{tpu_custom_call.1} parent=0
    _
  %s12 = ssub.s32 1, %s10
  %s13 = scalar_select 0, %s12, %s10
  $region1: #{tpu_custom_call.1} parent=0
    #allocation2 [shape = 'u8[4096]{0}', space=vmem, size = 0x1000, scoped, tag = 'input window, operand 0, single buffered']
    #allocation3 [shape = 's32[1]{0}', space=sflag, size = 0x4, scoped, tag = 'scoped memory for tpu_custom_call.1']
    #allocation4 [shape = 's32[1]{0}', space=sflag, size = 0x4, scoped, tag = 'scoped memory for tpu_custom_call.1']
    #allocation5 [shape = 'u8[131072]{0}', space=vmem, size = 0x20000, scoped, tag = 'input window, operand 1, single buffered']
    #allocation6 [shape = 's32[1]{0}', space=sflag, size = 0x4, scoped, tag = 'scoped memory for tpu_custom_call.1']
    #allocation7 [shape = 'u8[2048]{0}', space=vmem, size = 0x800, scoped, tag = 'input window, operand 2, single buffered']
    #allocation8 [shape = 'u8[524288]{0}', space=vmem, size = 0x80000, scoped, tag = 'input window, operand 3, single buffered']
    #allocation9 [shape = 's32[1]{0}', space=sflag, size = 0x4, scoped, tag = 'scoped memory for tpu_custom_call.1']
    #allocation10 [shape = 'u8[2048]{0}', space=vmem, size = 0x800, scoped, tag = 'input window, operand 4, single buffered']
    #allocation11 [shape = 'u8[524288]{0}', space=vmem, size = 0x80000, scoped, tag = 'input window, operand 5, single buffered']
    #allocation12 [shape = 's32[1]{0}', space=sflag, size = 0x4, scoped, tag = 'scoped memory for tpu_custom_call.1']
    #allocation13 [shape = 'u8[131072]{0}', space=vmem, size = 0x20000, scoped, tag = 'input window, operand 7, single buffered']
    #allocation14 [shape = 'u8[8192]{0}', space=vmem, size = 0x2000, scoped, tag = 'output window, operand 0, single buffered']
    %14 = vsyncpa [#allocation3], 0
    %15 = vsyncpa [#allocation6], 0
    %16 = vsyncpa [#allocation9], 0
    %17 = vsyncpa [#allocation12], 0
    %18 = vsyncpa [#allocation4], 0
    // Predicated region
    $region2: #{tpu_custom_call.1} parent=1 // pred_check
      _
    $region3: #{tpu_custom_call.1} parent=1 // pred_check_branch
      %20 = sbr.rel (0) target = $region5
    $region4: #{tpu_custom_call.1} parent=1 // pred_region
      %22 = vsyncadd [#allocation3], 0
      %s23 = sshll.u32 %s0, 4
      %s24 = int_to_ptr.hbm [resolvable:$true] %s23
      %s25 = sshll.u32 [#allocation2], 4
      %s26 = int_to_ptr.vmem [resolvable:$true] %s25
      %31 = dma.hbm_to_vmem [thread:$0]  %s24, 128, %s26, [#allocation3], 64, 64, 4
    $region5: #{tpu_custom_call.1} parent=1 // pred_fallthru
      _
    // Predicated region
    $region6: #{tpu_custom_call.1} parent=1 // pred_check
      _
    $region7: #{tpu_custom_call.1} parent=1 // pred_check_branch
      %33 = sbr.rel (0) target = $region9
    $region8: #{tpu_custom_call.1} parent=1 // pred_region
      %35 = vsyncadd [#allocation6], 0
      %s36 = sshll.u32 %s1, 4
      %s37 = int_to_ptr.hbm [resolvable:$true] %s36
      %s38 = sshll.u32 [#allocation5], 4
      %s39 = int_to_ptr.vmem [resolvable:$true] %s38
      %44 = dma.hbm_to_vmem [thread:$0]  %s37, 4096, %s39, [#allocation6], 256, 256, 16
    $region9: #{tpu_custom_call.1} parent=1 // pred_fallthru
      _
    // Predicated region
    $region10: #{tpu_custom_call.1} parent=1 // pred_check
      _
    $region11: #{tpu_custom_call.1} parent=1 // pred_check_branch
      %46 = sbr.rel (0) target = $region13
    $region12: #{tpu_custom_call.1} parent=1 // pred_region
      %48 = vsyncadd [#allocation6], 0
      %s50 = sshll.u32 %s2, 4
      %s51 = int_to_ptr.hbm [resolvable:$true] %s50
      %s52 = sshll.u32 [#allocation7], 4
      %s53 = int_to_ptr.vmem [resolvable:$true] %s52
      %55 = dma.hbm_to_vmem [thread:$0]  %s51, 64, %s53, [#allocation6]
    $region13: #{tpu_custom_call.1} parent=1 // pred_fallthru
      _
    // Predicated region
    $region14: #{tpu_custom_call.1} parent=1 // pred_check
      _
    $region15: #{tpu_custom_call.1} parent=1 // pred_check_branch
      %57 = sbr.rel (0) target = $region17
    $region16: #{tpu_custom_call.1} parent=1 // pred_region
      %59 = vsyncadd [#allocation9], 0
      %s60 = sshll.u32 %s3, 4
      %s61 = int_to_ptr.hbm [resolvable:$true] %s60
      %s62 = sshll.u32 [#allocation8], 4
      %s63 = int_to_ptr.vmem [resolvable:$true] %s62
      %68 = dma.hbm_to_vmem [thread:$0]  %s61, 16384, %s63, [#allocation9], 256, 256, 16
    $region17: #{tpu_custom_call.1} parent=1 // pred_fallthru
      _
    // Predicated region
    $region18: #{tpu_custom_call.1} parent=1 // pred_check
      _
    $region19: #{tpu_custom_call.1} parent=1 // pred_check_branch
      %70 = sbr.rel (0) target = $region21
    $region20: #{tpu_custom_call.1} parent=1 // pred_region
      %72 = vsyncadd [#allocation9], 0
      %s74 = sshll.u32 %s4, 4
      %s75 = int_to_ptr.hbm [resolvable:$true] %s74
      %s76 = sshll.u32 [#allocation10], 4
      %s77 = int_to_ptr.vmem [resolvable:$true] %s76
      %79 = dma.hbm_to_vmem [thread:$0]  %s75, 64, %s77, [#allocation9]
    $region21: #{tpu_custom_call.1} parent=1 // pred_fallthru
      _
    // Predicated region
    $region22: #{tpu_custom_call.1} parent=1 // pred_check
      _
    $region23: #{tpu_custom_call.1} parent=1 // pred_check_branch
      %81 = sbr.rel (0) target = $region25
    $region24: #{tpu_custom_call.1} parent=1 // pred_region
      %83 = vsyncadd [#allocation12], 0
      %s84 = sshll.u32 %s5, 4
      %s85 = int_to_ptr.hbm [resolvable:$true] %s84
      %s86 = sshll.u32 [#allocation11], 4
      %s87 = int_to_ptr.vmem [resolvable:$true] %s86
      %92 = dma.hbm_to_vmem [thread:$0]  %s85, 16384, %s87, [#allocation12], 256, 256, 16
    $region25: #{tpu_custom_call.1} parent=1 // pred_fallthru
      _
    // Predicated region
    $region26: #{tpu_custom_call.1} parent=1 // pred_check
      _
    $region27: #{tpu_custom_call.1} parent=1 // pred_check_branch
      %94 = sbr.rel (0) target = $region29
    $region28: #{tpu_custom_call.1} parent=1 // pred_region
      _
    $region29: #{tpu_custom_call.1} parent=1 // pred_fallthru
      _
    // Predicated region
    $region30: #{tpu_custom_call.1} parent=1 // pred_check
      _
    $region31: #{tpu_custom_call.1} parent=1 // pred_check_branch
      %96 = sbr.rel (0) target = $region33
    $region32: #{tpu_custom_call.1} parent=1 // pred_region
      %98 = vsyncadd [#allocation12], 0
      %s99 = sshll.u32 %s7, 4
      %s100 = int_to_ptr.hbm [resolvable:$true] %s99
      %s101 = sshll.u32 [#allocation13], 4
      %s102 = int_to_ptr.vmem [resolvable:$true] %s101
      %107 = dma.hbm_to_vmem [thread:$0]  %s100, 4096, %s102, [#allocation12], 64, 64, 4
    $region33: #{tpu_custom_call.1} parent=1 // pred_fallthru
      _
    // Predicated region
    $region34: #{tpu_custom_call.1} parent=1 // pred_check
      _
    $region35: #{tpu_custom_call.1} parent=1 // pred_check_branch
      %109 = sbr.rel (0) target = $region37
    $region36: #{tpu_custom_call.1} parent=1 // pred_region
      _
    $region37: #{tpu_custom_call.1} parent=1 // pred_fallthru
      _
    // Predicated region
    $region38: #{tpu_custom_call.1} parent=1 // pred_check
      _
    $region39: #{tpu_custom_call.1} parent=1 // pred_check_branch
      %111 = sbr.rel (0) target = $region41
    $region40: #{tpu_custom_call.1} parent=1 // pred_region
      %113 = dma.done [#allocation3], 128
    $region41: #{tpu_custom_call.1} parent=1 // pred_fallthru
      _
    // Predicated region
    $region42: #{tpu_custom_call.1} parent=1 // pred_check
      _
    $region43: #{tpu_custom_call.1} parent=1 // pred_check_branch
      %115 = sbr.rel (0) target = $region45
    $region44: #{tpu_custom_call.1} parent=1 // pred_region
      %117 = dma.done [#allocation6], 4096
    $region45: #{tpu_custom_call.1} parent=1 // pred_fallthru
      _
    // Predicated region
    $region46: #{tpu_custom_call.1} parent=1 // pred_check
      _
    $region47: #{tpu_custom_call.1} parent=1 // pred_check_branch
      %119 = sbr.rel (0) target = $region49
    $region48: #{tpu_custom_call.1} parent=1 // pred_region
      %121 = dma.done [#allocation6], 64
    $region49: #{tpu_custom_call.1} parent=1 // pred_fallthru
      _
    // Predicated region
    $region50: #{tpu_custom_call.1} parent=1 // pred_check
      _
    $region51: #{tpu_custom_call.1} parent=1 // pred_check_branch
      %123 = sbr.rel (0) target = $region53
    $region52: #{tpu_custom_call.1} parent=1 // pred_region
      %125 = dma.done [#allocation9], 16384
    $region53: #{tpu_custom_call.1} parent=1 // pred_fallthru
      _
    // Predicated region
    $region54: #{tpu_custom_call.1} parent=1 // pred_check
      _
    $region55: #{tpu_custom_call.1} parent=1 // pred_check_branch
      %127 = sbr.rel (0) target = $region57
    $region56: #{tpu_custom_call.1} parent=1 // pred_region
      %129 = dma.done [#allocation9], 64
    $region57: #{tpu_custom_call.1} parent=1 // pred_fallthru
      _
    // Predicated region
    $region58: #{tpu_custom_call.1} parent=1 // pred_check
      _
    $region59: #{tpu_custom_call.1} parent=1 // pred_check_branch
      %131 = sbr.rel (0) target = $region61
    $region60: #{tpu_custom_call.1} parent=1 // pred_region
      %133 = dma.done [#allocation12], 16384
    $region61: #{tpu_custom_call.1} parent=1 // pred_fallthru
      _
    // Predicated region
    $region62: #{tpu_custom_call.1} parent=1 // pred_check
      _
    $region63: #{tpu_custom_call.1} parent=1 // pred_check_branch
      %135 = sbr.rel (0) target = $region65
    $region64: #{tpu_custom_call.1} parent=1 // pred_region
      %137 = dma.done [#allocation12], 4096
    $region65: #{tpu_custom_call.1} parent=1 // pred_fallthru
      _
    %v138 = vld [vmem:[#allocation2] sm:$0xf]
    %v139 = vld [vmem:[#allocation2 + $0x4] sm:$0xf]
    %v140 = vld [vmem:[#allocation5] sm:$0xff]
    %v141 = vld [vmem:[#allocation5 + $0x8] sm:$0xff]
    %v142 = vld [vmem:[#allocation5 + $0x10] sm:$0xff]
    %v143 = vld [vmem:[#allocation5 + $0x18] sm:$0xff]
    %v144 = vld [vmem:[#allocation5 + $0x20] sm:$0xff]
    %v145 = vld [vmem:[#allocation5 + $0x28] sm:$0xff]
    %v146 = vld [vmem:[#allocation5 + $0x30] sm:$0xff]
    %v147 = vld [vmem:[#allocation5 + $0x38] sm:$0xff]
    %v148 = vld [vmem:[#allocation5 + $0x40] sm:$0xff]
    %v149 = vld [vmem:[#allocation5 + $0x48] sm:$0xff]
    %v150 = vld [vmem:[#allocation5 + $0x50] sm:$0xff]
    %v151 = vld [vmem:[#allocation5 + $0x58] sm:$0xff]
    %v152 = vld [vmem:[#allocation5 + $0x60] sm:$0xff]
    %v153 = vld [vmem:[#allocation5 + $0x68] sm:$0xff]
    %v154 = vld [vmem:[#allocation5 + $0x70] sm:$0xff]
    %v155 = vld [vmem:[#allocation5 + $0x78] sm:$0xff]
    %v156 = vld [vmem:[#allocation5 + $0x80] sm:$0xff]
    %v157 = vld [vmem:[#allocation5 + $0x88] sm:$0xff]
    %v158 = vld [vmem:[#allocation5 + $0x90] sm:$0xff]
    %v159 = vld [vmem:[#allocation5 + $0x98] sm:$0xff]
    %v160 = vld [vmem:[#allocation5 + $0xa0] sm:$0xff]
    %v161 = vld [vmem:[#allocation5 + $0xa8] sm:$0xff]
    %v162 = vld [vmem:[#allocation5 + $0xb0] sm:$0xff]
    %v163 = vld [vmem:[#allocation5 + $0xb8] sm:$0xff]
    %v164 = vld [vmem:[#allocation5 + $0xc0] sm:$0xff]
    %v165 = vld [vmem:[#allocation5 + $0xc8] sm:$0xff]
    %v166 = vld [vmem:[#allocation5 + $0xd0] sm:$0xff]
    %v167 = vld [vmem:[#allocation5 + $0xd8] sm:$0xff]
    %v168 = vld [vmem:[#allocation5 + $0xe0] sm:$0xff]
    %v169 = vld [vmem:[#allocation5 + $0xe8] sm:$0xff]
    %v170 = vld [vmem:[#allocation5 + $0xf0] sm:$0xff]
    %v171 = vld [vmem:[#allocation5 + $0xf8] sm:$0xff]
    %v172 = vld [vmem:[#allocation7] sm:$0xf]
    %v174 = vperm.slane %v172, 0
    %v175 = vperm.slane %v172, 1
    %v176 = vperm.slane %v172, 2
    %v177 = vperm.slane %v172, 3
    %v184 = vunpack.c.l.b16 %v138
    %v185 = vunpack.c.l.b16 %v139
    %v186 = vpack.c.b16 %v185, %v184
    %v220 = vunpack.c.l.b16 %v140
    %v221 = vunpack.c.h.b16 %v140
    %v222 = vunpack.c.l.b16 %v141
    %v223 = vunpack.c.h.b16 %v141
    %v224 = vunpack.c.l.b16 %v142
    %v225 = vunpack.c.h.b16 %v142
    %v226 = vunpack.c.l.b16 %v143
    %v227 = vunpack.c.h.b16 %v143
    %v228 = vunpack.c.l.b16 %v144
    %v229 = vunpack.c.h.b16 %v144
    %v230 = vunpack.c.l.b16 %v145
    %v231 = vunpack.c.h.b16 %v145
    %v232 = vunpack.c.l.b16 %v146
    %v233 = vunpack.c.h.b16 %v146
    %v234 = vunpack.c.l.b16 %v147
    %v235 = vunpack.c.h.b16 %v147
    %v236 = vunpack.c.l.b16 %v148
    %v237 = vunpack.c.h.b16 %v148
    %v238 = vunpack.c.l.b16 %v149
    %v239 = vunpack.c.h.b16 %v149
    %v240 = vunpack.c.l.b16 %v150
    %v241 = vunpack.c.h.b16 %v150
    %v242 = vunpack.c.l.b16 %v151
    %v243 = vunpack.c.h.b16 %v151
    %v244 = vunpack.c.l.b16 %v152
    %v245 = vunpack.c.h.b16 %v152
    %v246 = vunpack.c.l.b16 %v153
    %v247 = vunpack.c.h.b16 %v153
    %v248 = vunpack.c.l.b16 %v154
    %v249 = vunpack.c.h.b16 %v154
    %v250 = vunpack.c.l.b16 %v155
    %v251 = vunpack.c.h.b16 %v155
    %v252 = vunpack.c.l.b16 %v156
    %v253 = vunpack.c.h.b16 %v156
    %v254 = vunpack.c.l.b16 %v157
    %v255 = vunpack.c.h.b16 %v157
    %v256 = vunpack.c.l.b16 %v158
    %v257 = vunpack.c.h.b16 %v158
    %v258 = vunpack.c.l.b16 %v159
    %v259 = vunpack.c.h.b16 %v159
    %v260 = vunpack.c.l.b16 %v160
    %v261 = vunpack.c.h.b16 %v160
    %v262 = vunpack.c.l.b16 %v161
    %v263 = vunpack.c.h.b16 %v161
    %v264 = vunpack.c.l.b16 %v162
    %v265 = vunpack.c.h.b16 %v162
    %v266 = vunpack.c.l.b16 %v163
    %v267 = vunpack.c.h.b16 %v163
    %v268 = vunpack.c.l.b16 %v164
    %v269 = vunpack.c.h.b16 %v164
    %v270 = vunpack.c.l.b16 %v165
    %v271 = vunpack.c.h.b16 %v165
    %v272 = vunpack.c.l.b16 %v166
    %v273 = vunpack.c.h.b16 %v166
    %v274 = vunpack.c.l.b16 %v167
    %v275 = vunpack.c.h.b16 %v167
    %v276 = vunpack.c.l.b16 %v168
    %v277 = vunpack.c.h.b16 %v168
    %v278 = vunpack.c.l.b16 %v169
    %v279 = vunpack.c.h.b16 %v169
    %v280 = vunpack.c.l.b16 %v170
    %v281 = vunpack.c.h.b16 %v170
    %v282 = vunpack.c.l.b16 %v171
    %v283 = vunpack.c.h.b16 %v171
    %v284 = vpack.c.b16 %v224, %v220
    %v285 = vpack.c.b16 %v225, %v221
    %v286 = vpack.c.b16 %v226, %v222
    %v287 = vpack.c.b16 %v227, %v223
    %v288 = vpack.c.b16 %v232, %v228
    %v289 = vpack.c.b16 %v233, %v229
    %v290 = vpack.c.b16 %v234, %v230
    %v291 = vpack.c.b16 %v235, %v231
    %v292 = vpack.c.b16 %v240, %v236
    %v293 = vpack.c.b16 %v241, %v237
    %v294 = vpack.c.b16 %v242, %v238
    %v295 = vpack.c.b16 %v243, %v239
    %v296 = vpack.c.b16 %v248, %v244
    %v297 = vpack.c.b16 %v249, %v245
    %v298 = vpack.c.b16 %v250, %v246
    %v299 = vpack.c.b16 %v251, %v247
    %v300 = vpack.c.b16 %v256, %v252
    %v301 = vpack.c.b16 %v257, %v253
    %v302 = vpack.c.b16 %v258, %v254
    %v303 = vpack.c.b16 %v259, %v255
    %v304 = vpack.c.b16 %v264, %v260
    %v305 = vpack.c.b16 %v265, %v261
    %v306 = vpack.c.b16 %v266, %v262
    %v307 = vpack.c.b16 %v267, %v263
    %v308 = vpack.c.b16 %v272, %v268
    %v309 = vpack.c.b16 %v273, %v269
    %v310 = vpack.c.b16 %v274, %v270
    %v311 = vpack.c.b16 %v275, %v271
    %v312 = vpack.c.b16 %v280, %v276
    %v313 = vpack.c.b16 %v281, %v277
    %v314 = vpack.c.b16 %v282, %v278
    %v315 = vpack.c.b16 %v283, %v279
    %348 = vmatpush.bf16.msra.mxu0 %v312
    %349 = vmatpush.bf16.msra.mxu0 %v308
    %350 = vmatpush.bf16.msra.mxu0 %v304
    %351 = vmatpush.bf16.msra.mxu0 %v300
    %352 = vmatpush.bf16.msra.mxu0 %v296
    %353 = vmatpush.bf16.msra.mxu0 %v292
    %354 = vmatpush.bf16.msra.mxu0 %v288
    %355 = vmatpush.bf16.msra.mxu0 %v284
    %356 = vmatmul.bf16.gmra.mxu0 %v186
    %v357 = vpop.f32.mrf.mxu0
    %v358 = vadd.f32 %v174, %v357
    %v359 = vpop.f32.mrf.mxu0
    %v360 = vadd.f32 %v174, %v359
    %361 = vdwg.mxu0
    %362 = vmatpush.bf16.msra.mxu0 %v313
    %363 = vmatpush.bf16.msra.mxu0 %v309
    %364 = vmatpush.bf16.msra.mxu0 %v305
    %365 = vmatpush.bf16.msra.mxu0 %v301
    %366 = vmatpush.bf16.msra.mxu0 %v297
    %367 = vmatpush.bf16.msra.mxu0 %v293
    %368 = vmatpush.bf16.msra.mxu0 %v289
    %369 = vmatpush.bf16.msra.mxu0 %v285
    %370 = vmatmul.bf16.gmra.mxu0 %v186
    %v371 = vpop.f32.mrf.mxu0
    %v372 = vadd.f32 %v175, %v371
    %v373 = vpop.f32.mrf.mxu0
    %v374 = vadd.f32 %v175, %v373
    %375 = vdwg.mxu0
    %376 = vmatpush.bf16.msra.mxu0 %v314
    %377 = vmatpush.bf16.msra.mxu0 %v310
    %378 = vmatpush.bf16.msra.mxu0 %v306
    %379 = vmatpush.bf16.msra.mxu0 %v302
    %380 = vmatpush.bf16.msra.mxu0 %v298
    %381 = vmatpush.bf16.msra.mxu0 %v294
    %382 = vmatpush.bf16.msra.mxu0 %v290
    %383 = vmatpush.bf16.msra.mxu0 %v286
    %384 = vmatmul.bf16.gmra.mxu0 %v186
    %v385 = vpop.f32.mrf.mxu0
    %v386 = vadd.f32 %v176, %v385
    %v387 = vpop.f32.mrf.mxu0
    %v388 = vadd.f32 %v176, %v387
    %389 = vdwg.mxu0
    %390 = vmatpush.bf16.msra.mxu0 %v315
    %391 = vmatpush.bf16.msra.mxu0 %v311
    %392 = vmatpush.bf16.msra.mxu0 %v307
    %393 = vmatpush.bf16.msra.mxu0 %v303
    %394 = vmatpush.bf16.msra.mxu0 %v299
    %395 = vmatpush.bf16.msra.mxu0 %v295
    %396 = vmatpush.bf16.msra.mxu0 %v291
    %397 = vmatpush.bf16.msra.mxu0 %v287
    %398 = vmatmul.bf16.gmra.mxu0 %v186
    %v399 = vpop.f32.mrf.mxu0
    %v400 = vadd.f32 %v177, %v399
    %v401 = vpop.f32.mrf.mxu0
    %v402 = vadd.f32 %v177, %v401
    %403 = vdwg.mxu0
    %v404 = vmax.f32 %v358, 0.0
    %v405 = vmax.f32 %v372, 0.0
    %v406 = vmax.f32 %v386, 0.0
    %v407 = vmax.f32 %v400, 0.0
    %v408 = vmax.f32 %v360, 0.0
    %v409 = vmax.f32 %v374, 0.0
    %v410 = vmax.f32 %v388, 0.0
    %v411 = vmax.f32 %v402, 0.0
    %v412 = vpack.c.bf16 %v408, %v404
    %v413 = vpack.c.bf16 %v409, %v405
    %v414 = vpack.c.bf16 %v410, %v406
    %v415 = vpack.c.bf16 %v411, %v407
    %v416 = vld [vmem:[#allocation8] sm:$0xff]
    %v417 = vld [vmem:[#allocation8 + $0x8] sm:$0xff]
    %v418 = vld [vmem:[#allocation8 + $0x10] sm:$0xff]
    %v419 = vld [vmem:[#allocation8 + $0x18] sm:$0xff]
    %v420 = vld [vmem:[#allocation8 + $0x20] sm:$0xff]
    %v421 = vld [vmem:[#allocation8 + $0x28] sm:$0xff]
    %v422 = vld [vmem:[#allocation8 + $0x30] sm:$0xff]
    %v423 = vld [vmem:[#allocation8 + $0x38] sm:$0xff]
    %v424 = vld [vmem:[#allocation8 + $0x40] sm:$0xff]
    %v425 = vld [vmem:[#allocation8 + $0x48] sm:$0xff]
    %v426 = vld [vmem:[#allocation8 + $0x50] sm:$0xff]
    %v427 = vld [vmem:[#allocation8 + $0x58] sm:$0xff]
    %v428 = vld [vmem:[#allocation8 + $0x60] sm:$0xff]
    %v429 = vld [vmem:[#allocation8 + $0x68] sm:$0xff]
    %v430 = vld [vmem:[#allocation8 + $0x70] sm:$0xff]
    %v431 = vld [vmem:[#allocation8 + $0x78] sm:$0xff]
    %v432 = vld [vmem:[#allocation8 + $0x80] sm:$0xff]
    %v433 = vld [vmem:[#allocation8 + $0x88] sm:$0xff]
    %v434 = vld [vmem:[#allocation8 + $0x90] sm:$0xff]
    %v435 = vld [vmem:[#allocation8 + $0x98] sm:$0xff]
    %v436 = vld [vmem:[#allocation8 + $0xa0] sm:$0xff]
    %v437 = vld [vmem:[#allocation8 + $0xa8] sm:$0xff]
    %v438 = vld [vmem:[#allocation8 + $0xb0] sm:$0xff]
    %v439 = vld [vmem:[#allocation8 + $0xb8] sm:$0xff]
    %v440 = vld [vmem:[#allocation8 + $0xc0] sm:$0xff]
    %v441 = vld [vmem:[#allocation8 + $0xc8] sm:$0xff]
    %v442 = vld [vmem:[#allocation8 + $0xd0] sm:$0xff]
    %v443 = vld [vmem:[#allocation8 + $0xd8] sm:$0xff]
    %v444 = vld [vmem:[#allocation8 + $0xe0] sm:$0xff]
    %v445 = vld [vmem:[#allocation8 + $0xe8] sm:$0xff]
    %v446 = vld [vmem:[#allocation8 + $0xf0] sm:$0xff]
    %v447 = vld [vmem:[#allocation8 + $0xf8] sm:$0xff]
    %v448 = vld [vmem:[#allocation8 + $0x100] sm:$0xff]
    %v449 = vld [vmem:[#allocation8 + $0x108] sm:$0xff]
    %v450 = vld [vmem:[#allocation8 + $0x110] sm:$0xff]
    %v451 = vld [vmem:[#allocation8 + $0x118] sm:$0xff]
    %v452 = vld [vmem:[#allocation8 + $0x120] sm:$0xff]
    %v453 = vld [vmem:[#allocation8 + $0x128] sm:$0xff]
    %v454 = vld [vmem:[#allocation8 + $0x130] sm:$0xff]
    %v455 = vld [vmem:[#allocation8 + $0x138] sm:$0xff]
    %v456 = vld [vmem:[#allocation8 + $0x140] sm:$0xff]
    %v457 = vld [vmem:[#allocation8 + $0x148] sm:$0xff]
    %v458 = vld [vmem:[#allocation8 + $0x150] sm:$0xff]
    %v459 = vld [vmem:[#allocation8 + $0x158] sm:$0xff]
    %v460 = vld [vmem:[#allocation8 + $0x160] sm:$0xff]
    %v461 = vld [vmem:[#allocation8 + $0x168] sm:$0xff]
    %v462 = vld [vmem:[#allocation8 + $0x170] sm:$0xff]
    %v463 = vld [vmem:[#allocation8 + $0x178] sm:$0xff]
    %v464 = vld [vmem:[#allocation8 + $0x180] sm:$0xff]
    %v465 = vld [vmem:[#allocation8 + $0x188] sm:$0xff]
    %v466 = vld [vmem:[#allocation8 + $0x190] sm:$0xff]
    %v467 = vld [vmem:[#allocation8 + $0x198] sm:$0xff]
    %v468 = vld [vmem:[#allocation8 + $0x1a0] sm:$0xff]
    %v469 = vld [vmem:[#allocation8 + $0x1a8] sm:$0xff]
    %v470 = vld [vmem:[#allocation8 + $0x1b0] sm:$0xff]
    %v471 = vld [vmem:[#allocation8 + $0x1b8] sm:$0xff]
    %v472 = vld [vmem:[#allocation8 + $0x1c0] sm:$0xff]
    %v473 = vld [vmem:[#allocation8 + $0x1c8] sm:$0xff]
    %v474 = vld [vmem:[#allocation8 + $0x1d0] sm:$0xff]
    %v475 = vld [vmem:[#allocation8 + $0x1d8] sm:$0xff]
    %v476 = vld [vmem:[#allocation8 + $0x1e0] sm:$0xff]
    %v477 = vld [vmem:[#allocation8 + $0x1e8] sm:$0xff]
    %v478 = vld [vmem:[#allocation8 + $0x1f0] sm:$0xff]
    %v479 = vld [vmem:[#allocation8 + $0x1f8] sm:$0xff]
    %v480 = vld [vmem:[#allocation8 + $0x200] sm:$0xff]
    %v481 = vld [vmem:[#allocation8 + $0x208] sm:$0xff]
    %v482 = vld [vmem:[#allocation8 + $0x210] sm:$0xff]
    %v483 = vld [vmem:[#allocation8 + $0x218] sm:$0xff]
    %v484 = vld [vmem:[#allocation8 + $0x220] sm:$0xff]
    %v485 = vld [vmem:[#allocation8 + $0x228] sm:$0xff]
    %v486 = vld [vmem:[#allocation8 + $0x230] sm:$0xff]
    %v487 = vld [vmem:[#allocation8 + $0x238] sm:$0xff]
    %v488 = vld [vmem:[#allocation8 + $0x240] sm:$0xff]
    %v489 = vld [vmem:[#allocation8 + $0x248] sm:$0xff]
    %v490 = vld [vmem:[#allocation8 + $0x250] sm:$0xff]
    %v491 = vld [vmem:[#allocation8 + $0x258] sm:$0xff]
    %v492 = vld [vmem:[#allocation8 + $0x260] sm:$0xff]
    %v493 = vld [vmem:[#allocation8 + $0x268] sm:$0xff]
    %v494 = vld [vmem:[#allocation8 + $0x270] sm:$0xff]
    %v495 = vld [vmem:[#allocation8 + $0x278] sm:$0xff]
    %v496 = vld [vmem:[#allocation8 + $0x280] sm:$0xff]
    %v497 = vld [vmem:[#allocation8 + $0x288] sm:$0xff]
    %v498 = vld [vmem:[#allocation8 + $0x290] sm:$0xff]
    %v499 = vld [vmem:[#allocation8 + $0x298] sm:$0xff]
    %v500 = vld [vmem:[#allocation8 + $0x2a0] sm:$0xff]
    %v501 = vld [vmem:[#allocation8 + $0x2a8] sm:$0xff]
    %v502 = vld [vmem:[#allocation8 + $0x2b0] sm:$0xff]
    %v503 = vld [vmem:[#allocation8 + $0x2b8] sm:$0xff]
    %v504 = vld [vmem:[#allocation8 + $0x2c0] sm:$0xff]
    %v505 = vld [vmem:[#allocation8 + $0x2c8] sm:$0xff]
    %v506 = vld [vmem:[#allocation8 + $0x2d0] sm:$0xff]
    %v507 = vld [vmem:[#allocation8 + $0x2d8] sm:$0xff]
    %v508 = vld [vmem:[#allocation8 + $0x2e0] sm:$0xff]
    %v509 = vld [vmem:[#allocation8 + $0x2e8] sm:$0xff]
    %v510 = vld [vmem:[#allocation8 + $0x2f0] sm:$0xff]
    %v511 = vld [vmem:[#allocation8 + $0x2f8] sm:$0xff]
    %v512 = vld [vmem:[#allocation8 + $0x300] sm:$0xff]
    %v513 = vld [vmem:[#allocation8 + $0x308] sm:$0xff]
    %v514 = vld [vmem:[#allocation8 + $0x310] sm:$0xff]
    %v515 = vld [vmem:[#allocation8 + $0x318] sm:$0xff]
    %v516 = vld [vmem:[#allocation8 + $0x320] sm:$0xff]
    %v517 = vld [vmem:[#allocation8 + $0x328] sm:$0xff]
    %v518 = vld [vmem:[#allocation8 + $0x330] sm:$0xff]
    %v519 = vld [vmem:[#allocation8 + $0x338] sm:$0xff]
    %v520 = vld [vmem:[#allocation8 + $0x340] sm:$0xff]
    %v521 = vld [vmem:[#allocation8 + $0x348] sm:$0xff]
    %v522 = vld [vmem:[#allocation8 + $0x350] sm:$0xff]
    %v523 = vld [vmem:[#allocation8 + $0x358] sm:$0xff]
    %v524 = vld [vmem:[#allocation8 + $0x360] sm:$0xff]
    %v525 = vld [vmem:[#allocation8 + $0x368] sm:$0xff]
    %v526 = vld [vmem:[#allocation8 + $0x370] sm:$0xff]
    %v527 = vld [vmem:[#allocation8 + $0x378] sm:$0xff]
    %v528 = vld [vmem:[#allocation8 + $0x380] sm:$0xff]
    %v529 = vld [vmem:[#allocation8 + $0x388] sm:$0xff]
    %v530 = vld [vmem:[#allocation8 + $0x390] sm:$0xff]
    %v531 = vld [vmem:[#allocation8 + $0x398] sm:$0xff]
    %v532 = vld [vmem:[#allocation8 + $0x3a0] sm:$0xff]
    %v533 = vld [vmem:[#allocation8 + $0x3a8] sm:$0xff]
    %v534 = vld [vmem:[#allocation8 + $0x3b0] sm:$0xff]
    %v535 = vld [vmem:[#allocation8 + $0x3b8] sm:$0xff]
    %v536 = vld [vmem:[#allocation8 + $0x3c0] sm:$0xff]
    %v537 = vld [vmem:[#allocation8 + $0x3c8] sm:$0xff]
    %v538 = vld [vmem:[#allocation8 + $0x3d0] sm:$0xff]
    %v539 = vld [vmem:[#allocation8 + $0x3d8] sm:$0xff]
    %v540 = vld [vmem:[#allocation8 + $0x3e0] sm:$0xff]
    %v541 = vld [vmem:[#allocation8 + $0x3e8] sm:$0xff]
    %v542 = vld [vmem:[#allocation8 + $0x3f0] sm:$0xff]
    %v543 = vld [vmem:[#allocation8 + $0x3f8] sm:$0xff]
    %v544 = vld [vmem:[#allocation10] sm:$0xf]
    %v546 = vperm.slane %v544, 0
    %v547 = vperm.slane %v544, 1
    %v548 = vperm.slane %v544, 2
    %v549 = vperm.slane %v544, 3
    %v682 = vunpack.c.l.b16 %v416
    %v683 = vunpack.c.h.b16 %v416
    %v684 = vunpack.c.l.b16 %v417
    %v685 = vunpack.c.h.b16 %v417
    %v686 = vunpack.c.l.b16 %v418
    %v687 = vunpack.c.h.b16 %v418
    %v688 = vunpack.c.l.b16 %v419
    %v689 = vunpack.c.h.b16 %v419
    %v690 = vunpack.c.l.b16 %v420
    %v691 = vunpack.c.h.b16 %v420
    %v692 = vunpack.c.l.b16 %v421
    %v693 = vunpack.c.h.b16 %v421
    %v694 = vunpack.c.l.b16 %v422
    %v695 = vunpack.c.h.b16 %v422
    %v696 = vunpack.c.l.b16 %v423
    %v697 = vunpack.c.h.b16 %v423
    %v698 = vunpack.c.l.b16 %v424
    %v699 = vunpack.c.h.b16 %v424
    %v700 = vunpack.c.l.b16 %v425
    %v701 = vunpack.c.h.b16 %v425
    %v702 = vunpack.c.l.b16 %v426
    %v703 = vunpack.c.h.b16 %v426
    %v704 = vunpack.c.l.b16 %v427
    %v705 = vunpack.c.h.b16 %v427
    %v706 = vunpack.c.l.b16 %v428
    %v707 = vunpack.c.h.b16 %v428
    %v708 = vunpack.c.l.b16 %v429
    %v709 = vunpack.c.h.b16 %v429
    %v710 = vunpack.c.l.b16 %v430
    %v711 = vunpack.c.h.b16 %v430
    %v712 = vunpack.c.l.b16 %v431
    %v713 = vunpack.c.h.b16 %v431
    %v714 = vunpack.c.l.b16 %v432
    %v715 = vunpack.c.h.b16 %v432
    %v716 = vunpack.c.l.b16 %v433
    %v717 = vunpack.c.h.b16 %v433
    %v718 = vunpack.c.l.b16 %v434
    %v719 = vunpack.c.h.b16 %v434
    %v720 = vunpack.c.l.b16 %v435
    %v721 = vunpack.c.h.b16 %v435
    %v722 = vunpack.c.l.b16 %v436
    %v723 = vunpack.c.h.b16 %v436
    %v724 = vunpack.c.l.b16 %v437
    %v725 = vunpack.c.h.b16 %v437
    %v726 = vunpack.c.l.b16 %v438
    %v727 = vunpack.c.h.b16 %v438
    %v728 = vunpack.c.l.b16 %v439
    %v729 = vunpack.c.h.b16 %v439
    %v730 = vunpack.c.l.b16 %v440
    %v731 = vunpack.c.h.b16 %v440
    %v732 = vunpack.c.l.b16 %v441
    %v733 = vunpack.c.h.b16 %v441
    %v734 = vunpack.c.l.b16 %v442
    %v735 = vunpack.c.h.b16 %v442
    %v736 = vunpack.c.l.b16 %v443
    %v737 = vunpack.c.h.b16 %v443
    %v738 = vunpack.c.l.b16 %v444
    %v739 = vunpack.c.h.b16 %v444
    %v740 = vunpack.c.l.b16 %v445
    %v741 = vunpack.c.h.b16 %v445
    %v742 = vunpack.c.l.b16 %v446
    %v743 = vunpack.c.h.b16 %v446
    %v744 = vunpack.c.l.b16 %v447
    %v745 = vunpack.c.h.b16 %v447
    %v746 = vunpack.c.l.b16 %v448
    %v747 = vunpack.c.h.b16 %v448
    %v748 = vunpack.c.l.b16 %v449
    %v749 = vunpack.c.h.b16 %v449
    %v750 = vunpack.c.l.b16 %v450
    %v751 = vunpack.c.h.b16 %v450
    %v752 = vunpack.c.l.b16 %v451
    %v753 = vunpack.c.h.b16 %v451
    %v754 = vunpack.c.l.b16 %v452
    %v755 = vunpack.c.h.b16 %v452
    %v756 = vunpack.c.l.b16 %v453
    %v757 = vunpack.c.h.b16 %v453
    %v758 = vunpack.c.l.b16 %v454
    %v759 = vunpack.c.h.b16 %v454
    %v760 = vunpack.c.l.b16 %v455
    %v761 = vunpack.c.h.b16 %v455
    %v762 = vunpack.c.l.b16 %v456
    %v763 = vunpack.c.h.b16 %v456
    %v764 = vunpack.c.l.b16 %v457
    %v765 = vunpack.c.h.b16 %v457
    %v766 = vunpack.c.l.b16 %v458
    %v767 = vunpack.c.h.b16 %v458
    %v768 = vunpack.c.l.b16 %v459
    %v769 = vunpack.c.h.b16 %v459
    %v770 = vunpack.c.l.b16 %v460
    %v771 = vunpack.c.h.b16 %v460
    %v772 = vunpack.c.l.b16 %v461
    %v773 = vunpack.c.h.b16 %v461
    %v774 = vunpack.c.l.b16 %v462
    %v775 = vunpack.c.h.b16 %v462
    %v776 = vunpack.c.l.b16 %v463
    %v777 = vunpack.c.h.b16 %v463
    %v778 = vunpack.c.l.b16 %v464
    %v779 = vunpack.c.h.b16 %v464
    %v780 = vunpack.c.l.b16 %v465
    %v781 = vunpack.c.h.b16 %v465
    %v782 = vunpack.c.l.b16 %v466
    %v783 = vunpack.c.h.b16 %v466
    %v784 = vunpack.c.l.b16 %v467
    %v785 = vunpack.c.h.b16 %v467
    %v786 = vunpack.c.l.b16 %v468
    %v787 = vunpack.c.h.b16 %v468
    %v788 = vunpack.c.l.b16 %v469
    %v789 = vunpack.c.h.b16 %v469
    %v790 = vunpack.c.l.b16 %v470
    %v791 = vunpack.c.h.b16 %v470
    %v792 = vunpack.c.l.b16 %v471
    %v793 = vunpack.c.h.b16 %v471
    %v794 = vunpack.c.l.b16 %v472
    %v795 = vunpack.c.h.b16 %v472
    %v796 = vunpack.c.l.b16 %v473
    %v797 = vunpack.c.h.b16 %v473
    %v798 = vunpack.c.l.b16 %v474
    %v799 = vunpack.c.h.b16 %v474
    %v800 = vunpack.c.l.b16 %v475
    %v801 = vunpack.c.h.b16 %v475
    %v802 = vunpack.c.l.b16 %v476
    %v803 = vunpack.c.h.b16 %v476
    %v804 = vunpack.c.l.b16 %v477
    %v805 = vunpack.c.h.b16 %v477
    %v806 = vunpack.c.l.b16 %v478
    %v807 = vunpack.c.h.b16 %v478
    %v808 = vunpack.c.l.b16 %v479
    %v809 = vunpack.c.h.b16 %v479
    %v810 = vunpack.c.l.b16 %v480
    %v811 = vunpack.c.h.b16 %v480
    %v812 = vunpack.c.l.b16 %v481
    %v813 = vunpack.c.h.b16 %v481
    %v814 = vunpack.c.l.b16 %v482
    %v815 = vunpack.c.h.b16 %v482
    %v816 = vunpack.c.l.b16 %v483
    %v817 = vunpack.c.h.b16 %v483
    %v818 = vunpack.c.l.b16 %v484
    %v819 = vunpack.c.h.b16 %v484
    %v820 = vunpack.c.l.b16 %v485
    %v821 = vunpack.c.h.b16 %v485
    %v822 = vunpack.c.l.b16 %v486
    %v823 = vunpack.c.h.b16 %v486
    %v824 = vunpack.c.l.b16 %v487
    %v825 = vunpack.c.h.b16 %v487
    %v826 = vunpack.c.l.b16 %v488
    %v827 = vunpack.c.h.b16 %v488
    %v828 = vunpack.c.l.b16 %v489
    %v829 = vunpack.c.h.b16 %v489
    %v830 = vunpack.c.l.b16 %v490
    %v831 = vunpack.c.h.b16 %v490
    %v832 = vunpack.c.l.b16 %v491
    %v833 = vunpack.c.h.b16 %v491
    %v834 = vunpack.c.l.b16 %v492
    %v835 = vunpack.c.h.b16 %v492
    %v836 = vunpack.c.l.b16 %v493
    %v837 = vunpack.c.h.b16 %v493
    %v838 = vunpack.c.l.b16 %v494
    %v839 = vunpack.c.h.b16 %v494
    %v840 = vunpack.c.l.b16 %v495
    %v841 = vunpack.c.h.b16 %v495
    %v842 = vunpack.c.l.b16 %v496
    %v843 = vunpack.c.h.b16 %v496
    %v844 = vunpack.c.l.b16 %v497
    %v845 = vunpack.c.h.b16 %v497
    %v846 = vunpack.c.l.b16 %v498
    %v847 = vunpack.c.h.b16 %v498
    %v848 = vunpack.c.l.b16 %v499
    %v849 = vunpack.c.h.b16 %v499
    %v850 = vunpack.c.l.b16 %v500
    %v851 = vunpack.c.h.b16 %v500
    %v852 = vunpack.c.l.b16 %v501
    %v853 = vunpack.c.h.b16 %v501
    %v854 = vunpack.c.l.b16 %v502
    %v855 = vunpack.c.h.b16 %v502
    %v856 = vunpack.c.l.b16 %v503
    %v857 = vunpack.c.h.b16 %v503
    %v858 = vunpack.c.l.b16 %v504
    %v859 = vunpack.c.h.b16 %v504
    %v860 = vunpack.c.l.b16 %v505
    %v861 = vunpack.c.h.b16 %v505
    %v862 = vunpack.c.l.b16 %v506
    %v863 = vunpack.c.h.b16 %v506
    %v864 = vunpack.c.l.b16 %v507
    %v865 = vunpack.c.h.b16 %v507
    %v866 = vunpack.c.l.b16 %v508
    %v867 = vunpack.c.h.b16 %v508
    %v868 = vunpack.c.l.b16 %v509
    %v869 = vunpack.c.h.b16 %v509
    %v870 = vunpack.c.l.b16 %v510
    %v871 = vunpack.c.h.b16 %v510
    %v872 = vunpack.c.l.b16 %v511
    %v873 = vunpack.c.h.b16 %v511
    %v874 = vunpack.c.l.b16 %v512
    %v875 = vunpack.c.h.b16 %v512
    %v876 = vunpack.c.l.b16 %v513
    %v877 = vunpack.c.h.b16 %v513
    %v878 = vunpack.c.l.b16 %v514
    %v879 = vunpack.c.h.b16 %v514
    %v880 = vunpack.c.l.b16 %v515
    %v881 = vunpack.c.h.b16 %v515
    %v882 = vunpack.c.l.b16 %v516
    %v883 = vunpack.c.h.b16 %v516
    %v884 = vunpack.c.l.b16 %v517
    %v885 = vunpack.c.h.b16 %v517
    %v886 = vunpack.c.l.b16 %v518
    %v887 = vunpack.c.h.b16 %v518
    %v888 = vunpack.c.l.b16 %v519
    %v889 = vunpack.c.h.b16 %v519
    %v890 = vunpack.c.l.b16 %v520
    %v891 = vunpack.c.h.b16 %v520
    %v892 = vunpack.c.l.b16 %v521
    %v893 = vunpack.c.h.b16 %v521
    %v894 = vunpack.c.l.b16 %v522
    %v895 = vunpack.c.h.b16 %v522
    %v896 = vunpack.c.l.b16 %v523
    %v897 = vunpack.c.h.b16 %v523
    %v898 = vunpack.c.l.b16 %v524
    %v899 = vunpack.c.h.b16 %v524
    %v900 = vunpack.c.l.b16 %v525
    %v901 = vunpack.c.h.b16 %v525
    %v902 = vunpack.c.l.b16 %v526
    %v903 = vunpack.c.h.b16 %v526
    %v904 = vunpack.c.l.b16 %v527
    %v905 = vunpack.c.h.b16 %v527
    %v906 = vunpack.c.l.b16 %v528
    %v907 = vunpack.c.h.b16 %v528
    %v908 = vunpack.c.l.b16 %v529
    %v909 = vunpack.c.h.b16 %v529
    %v910 = vunpack.c.l.b16 %v530
    %v911 = vunpack.c.h.b16 %v530
    %v912 = vunpack.c.l.b16 %v531
    %v913 = vunpack.c.h.b16 %v531
    %v914 = vunpack.c.l.b16 %v532
    %v915 = vunpack.c.h.b16 %v532
    %v916 = vunpack.c.l.b16 %v533
    %v917 = vunpack.c.h.b16 %v533
    %v918 = vunpack.c.l.b16 %v534
    %v919 = vunpack.c.h.b16 %v534
    %v920 = vunpack.c.l.b16 %v535
    %v921 = vunpack.c.h.b16 %v535
    %v922 = vunpack.c.l.b16 %v536
    %v923 = vunpack.c.h.b16 %v536
    %v924 = vunpack.c.l.b16 %v537
    %v925 = vunpack.c.h.b16 %v537
    %v926 = vunpack.c.l.b16 %v538
    %v927 = vunpack.c.h.b16 %v538
    %v928 = vunpack.c.l.b16 %v539
    %v929 = vunpack.c.h.b16 %v539
    %v930 = vunpack.c.l.b16 %v540
    %v931 = vunpack.c.h.b16 %v540
    %v932 = vunpack.c.l.b16 %v541
    %v933 = vunpack.c.h.b16 %v541
    %v934 = vunpack.c.l.b16 %v542
    %v935 = vunpack.c.h.b16 %v542
    %v936 = vunpack.c.l.b16 %v543
    %v937 = vunpack.c.h.b16 %v543
    %v938 = vpack.c.b16 %v686, %v682
    %v939 = vpack.c.b16 %v687, %v683
    %v940 = vpack.c.b16 %v688, %v684
    %v941 = vpack.c.b16 %v689, %v685
    %v942 = vpack.c.b16 %v694, %v690
    %v943 = vpack.c.b16 %v695, %v691
    %v944 = vpack.c.b16 %v696, %v692
    %v945 = vpack.c.b16 %v697, %v693
    %v946 = vpack.c.b16 %v702, %v698
    %v947 = vpack.c.b16 %v703, %v699
    %v948 = vpack.c.b16 %v704, %v700
    %v949 = vpack.c.b16 %v705, %v701
    %v950 = vpack.c.b16 %v710, %v706
    %v951 = vpack.c.b16 %v711, %v707
    %v952 = vpack.c.b16 %v712, %v708
    %v953 = vpack.c.b16 %v713, %v709
    %v954 = vpack.c.b16 %v718, %v714
    %v955 = vpack.c.b16 %v719, %v715
    %v956 = vpack.c.b16 %v720, %v716
    %v957 = vpack.c.b16 %v721, %v717
    %v958 = vpack.c.b16 %v726, %v722
    %v959 = vpack.c.b16 %v727, %v723
    %v960 = vpack.c.b16 %v728, %v724
    %v961 = vpack.c.b16 %v729, %v725
    %v962 = vpack.c.b16 %v734, %v730
    %v963 = vpack.c.b16 %v735, %v731
    %v964 = vpack.c.b16 %v736, %v732
    %v965 = vpack.c.b16 %v737, %v733
    %v966 = vpack.c.b16 %v742, %v738
    %v967 = vpack.c.b16 %v743, %v739
    %v968 = vpack.c.b16 %v744, %v740
    %v969 = vpack.c.b16 %v745, %v741
    %v970 = vpack.c.b16 %v750, %v746
    %v971 = vpack.c.b16 %v751, %v747
    %v972 = vpack.c.b16 %v752, %v748
    %v973 = vpack.c.b16 %v753, %v749
    %v974 = vpack.c.b16 %v758, %v754
    %v975 = vpack.c.b16 %v759, %v755
    %v976 = vpack.c.b16 %v760, %v756
    %v977 = vpack.c.b16 %v761, %v757
    %v978 = vpack.c.b16 %v766, %v762
    %v979 = vpack.c.b16 %v767, %v763
    %v980 = vpack.c.b16 %v768, %v764
    %v981 = vpack.c.b16 %v769, %v765
    %v982 = vpack.c.b16 %v774, %v770
    %v983 = vpack.c.b16 %v775, %v771
    %v984 = vpack.c.b16 %v776, %v772
    %v985 = vpack.c.b16 %v777, %v773
    %v986 = vpack.c.b16 %v782, %v778
    %v987 = vpack.c.b16 %v783, %v779
    %v988 = vpack.c.b16 %v784, %v780
    %v989 = vpack.c.b16 %v785, %v781
    %v990 = vpack.c.b16 %v790, %v786
    %v991 = vpack.c.b16 %v791, %v787
    %v992 = vpack.c.b16 %v792, %v788
    %v993 = vpack.c.b16 %v793, %v789
    %v994 = vpack.c.b16 %v798, %v794
    %v995 = vpack.c.b16 %v799, %v795
    %v996 = vpack.c.b16 %v800, %v796
    %v997 = vpack.c.b16 %v801, %v797
    %v998 = vpack.c.b16 %v806, %v802
    %v999 = vpack.c.b16 %v807, %v803
    %v1000 = vpack.c.b16 %v808, %v804
    %v1001 = vpack.c.b16 %v809, %v805
    %v1002 = vpack.c.b16 %v814, %v810
    %v1003 = vpack.c.b16 %v815, %v811
    %v1004 = vpack.c.b16 %v816, %v812
    %v1005 = vpack.c.b16 %v817, %v813
    %v1006 = vpack.c.b16 %v822, %v818
    %v1007 = vpack.c.b16 %v823, %v819
    %v1008 = vpack.c.b16 %v824, %v820
    %v1009 = vpack.c.b16 %v825, %v821
    %v1010 = vpack.c.b16 %v830, %v826
    %v1011 = vpack.c.b16 %v831, %v827
    %v1012 = vpack.c.b16 %v832, %v828
    %v1013 = vpack.c.b16 %v833, %v829
    %v1014 = vpack.c.b16 %v838, %v834
    %v1015 = vpack.c.b16 %v839, %v835
    %v1016 = vpack.c.b16 %v840, %v836
    %v1017 = vpack.c.b16 %v841, %v837
    %v1018 = vpack.c.b16 %v846, %v842
    %v1019 = vpack.c.b16 %v847, %v843
    %v1020 = vpack.c.b16 %v848, %v844
    %v1021 = vpack.c.b16 %v849, %v845
    %v1022 = vpack.c.b16 %v854, %v850
    %v1023 = vpack.c.b16 %v855, %v851
    %v1024 = vpack.c.b16 %v856, %v852
    %v1025 = vpack.c.b16 %v857, %v853
    %v1026 = vpack.c.b16 %v862, %v858
    %v1027 = vpack.c.b16 %v863, %v859
    %v1028 = vpack.c.b16 %v864, %v860
    %v1029 = vpack.c.b16 %v865, %v861
    %v1030 = vpack.c.b16 %v870, %v866
    %v1031 = vpack.c.b16 %v871, %v867
    %v1032 = vpack.c.b16 %v872, %v868
    %v1033 = vpack.c.b16 %v873, %v869
    %v1034 = vpack.c.b16 %v878, %v874
    %v1035 = vpack.c.b16 %v879, %v875
    %v1036 = vpack.c.b16 %v880, %v876
    %v1037 = vpack.c.b16 %v881, %v877
    %v1038 = vpack.c.b16 %v886, %v882
    %v1039 = vpack.c.b16 %v887, %v883
    %v1040 = vpack.c.b16 %v888, %v884
    %v1041 = vpack.c.b16 %v889, %v885
    %v1042 = vpack.c.b16 %v894, %v890
    %v1043 = vpack.c.b16 %v895, %v891
    %v1044 = vpack.c.b16 %v896, %v892
    %v1045 = vpack.c.b16 %v897, %v893
    %v1046 = vpack.c.b16 %v902, %v898
    %v1047 = vpack.c.b16 %v903, %v899
    %v1048 = vpack.c.b16 %v904, %v900
    %v1049 = vpack.c.b16 %v905, %v901
    %v1050 = vpack.c.b16 %v910, %v906
    %v1051 = vpack.c.b16 %v911, %v907
    %v1052 = vpack.c.b16 %v912, %v908
    %v1053 = vpack.c.b16 %v913, %v909
    %v1054 = vpack.c.b16 %v918, %v914
    %v1055 = vpack.c.b16 %v919, %v915
    %v1056 = vpack.c.b16 %v920, %v916
    %v1057 = vpack.c.b16 %v921, %v917
    %v1058 = vpack.c.b16 %v926, %v922
    %v1059 = vpack.c.b16 %v927, %v923
    %v1060 = vpack.c.b16 %v928, %v924
    %v1061 = vpack.c.b16 %v929, %v925
    %v1062 = vpack.c.b16 %v934, %v930
    %v1063 = vpack.c.b16 %v935, %v931
    %v1064 = vpack.c.b16 %v936, %v932
    %v1065 = vpack.c.b16 %v937, %v933
    %1194 = vmatpush.bf16.msra.mxu0 %v966
    %1195 = vmatpush.bf16.msra.mxu0 %v962
    %1196 = vmatpush.bf16.msra.mxu0 %v958
    %1197 = vmatpush.bf16.msra.mxu0 %v954
    %1198 = vmatpush.bf16.msra.mxu0 %v950
    %1199 = vmatpush.bf16.msra.mxu0 %v946
    %1200 = vmatpush.bf16.msra.mxu0 %v942
    %1201 = vmatpush.bf16.msra.mxu0 %v938
    %1202 = vmatmul.bf16.gmra.mxu0 %v412
    %v1203 = vpop.f32.mrf.mxu0
    %v1204 = vadd.f32 %v546, %v1203
    %v1205 = vpop.f32.mrf.mxu0
    %v1206 = vadd.f32 %v546, %v1205
    %1207 = vdwg.mxu0
    %1208 = vmatpush.bf16.msra.mxu0 %v998
    %1209 = vmatpush.bf16.msra.mxu0 %v994
    %1210 = vmatpush.bf16.msra.mxu0 %v990
    %1211 = vmatpush.bf16.msra.mxu0 %v986
    %1212 = vmatpush.bf16.msra.mxu0 %v982
    %1213 = vmatpush.bf16.msra.mxu0 %v978
    %1214 = vmatpush.bf16.msra.mxu0 %v974
    %1215 = vmatpush.bf16.msra.mxu0 %v970
    %1216 = vmatmul.bf16.gmra.mxu0 %v413
    %v1217 = vpop.f32.mrf.mxu0
    %v1218 = vadd.f32 %v1204, %v1217
    %v1219 = vpop.f32.mrf.mxu0
    %v1220 = vadd.f32 %v1206, %v1219
    %1221 = vdwg.mxu0
    %1222 = vmatpush.bf16.msra.mxu0 %v1030
    %1223 = vmatpush.bf16.msra.mxu0 %v1026
    %1224 = vmatpush.bf16.msra.mxu0 %v1022
    %1225 = vmatpush.bf16.msra.mxu0 %v1018
    %1226 = vmatpush.bf16.msra.mxu0 %v1014
    %1227 = vmatpush.bf16.msra.mxu0 %v1010
    %1228 = vmatpush.bf16.msra.mxu0 %v1006
    %1229 = vmatpush.bf16.msra.mxu0 %v1002
    %1230 = vmatmul.bf16.gmra.mxu0 %v414
    %v1231 = vpop.f32.mrf.mxu0
    %v1232 = vadd.f32 %v1218, %v1231
    %v1233 = vpop.f32.mrf.mxu0
    %v1234 = vadd.f32 %v1220, %v1233
    %1235 = vdwg.mxu0
    %1236 = vmatpush.bf16.msra.mxu0 %v1062
    %1237 = vmatpush.bf16.msra.mxu0 %v1058
    %1238 = vmatpush.bf16.msra.mxu0 %v1054
    %1239 = vmatpush.bf16.msra.mxu0 %v1050
    %1240 = vmatpush.bf16.msra.mxu0 %v1046
    %1241 = vmatpush.bf16.msra.mxu0 %v1042
    %1242 = vmatpush.bf16.msra.mxu0 %v1038
    %1243 = vmatpush.bf16.msra.mxu0 %v1034
    %1244 = vmatmul.bf16.gmra.mxu0 %v415
    %v1245 = vpop.f32.mrf.mxu0
    %v1246 = vadd.f32 %v1232, %v1245
    %v1247 = vpop.f32.mrf.mxu0
    %v1248 = vadd.f32 %v1234, %v1247
    %1249 = vdwg.mxu0
    %1250 = vmatpush.bf16.msra.mxu0 %v967
    %1251 = vmatpush.bf16.msra.mxu0 %v963
    %1252 = vmatpush.bf16.msra.mxu0 %v959
    %1253 = vmatpush.bf16.msra.mxu0 %v955
    %1254 = vmatpush.bf16.msra.mxu0 %v951
    %1255 = vmatpush.bf16.msra.mxu0 %v947
    %1256 = vmatpush.bf16.msra.mxu0 %v943
    %1257 = vmatpush.bf16.msra.mxu0 %v939
    %1258 = vmatmul.bf16.gmra.mxu0 %v412
    %v1259 = vpop.f32.mrf.mxu0
    %v1260 = vadd.f32 %v547, %v1259
    %v1261 = vpop.f32.mrf.mxu0
    %v1262 = vadd.f32 %v547, %v1261
    %1263 = vdwg.mxu0
    %1264 = vmatpush.bf16.msra.mxu0 %v999
    %1265 = vmatpush.bf16.msra.mxu0 %v995
    %1266 = vmatpush.bf16.msra.mxu0 %v991
    %1267 = vmatpush.bf16.msra.mxu0 %v987
    %1268 = vmatpush.bf16.msra.mxu0 %v983
    %1269 = vmatpush.bf16.msra.mxu0 %v979
    %1270 = vmatpush.bf16.msra.mxu0 %v975
    %1271 = vmatpush.bf16.msra.mxu0 %v971
    %1272 = vmatmul.bf16.gmra.mxu0 %v413
    %v1273 = vpop.f32.mrf.mxu0
    %v1274 = vadd.f32 %v1260, %v1273
    %v1275 = vpop.f32.mrf.mxu0
    %v1276 = vadd.f32 %v1262, %v1275
    %1277 = vdwg.mxu0
    %1278 = vmatpush.bf16.msra.mxu0 %v1031
    %1279 = vmatpush.bf16.msra.mxu0 %v1027
    %1280 = vmatpush.bf16.msra.mxu0 %v1023
    %1281 = vmatpush.bf16.msra.mxu0 %v1019
    %1282 = vmatpush.bf16.msra.mxu0 %v1015
    %1283 = vmatpush.bf16.msra.mxu0 %v1011
    %1284 = vmatpush.bf16.msra.mxu0 %v1007
    %1285 = vmatpush.bf16.msra.mxu0 %v1003
    %1286 = vmatmul.bf16.gmra.mxu0 %v414
    %v1287 = vpop.f32.mrf.mxu0
    %v1288 = vadd.f32 %v1274, %v1287
    %v1289 = vpop.f32.mrf.mxu0
    %v1290 = vadd.f32 %v1276, %v1289
    %1291 = vdwg.mxu0
    %1292 = vmatpush.bf16.msra.mxu0 %v1063
    %1293 = vmatpush.bf16.msra.mxu0 %v1059
    %1294 = vmatpush.bf16.msra.mxu0 %v1055
    %1295 = vmatpush.bf16.msra.mxu0 %v1051
    %1296 = vmatpush.bf16.msra.mxu0 %v1047
    %1297 = vmatpush.bf16.msra.mxu0 %v1043
    %1298 = vmatpush.bf16.msra.mxu0 %v1039
    %1299 = vmatpush.bf16.msra.mxu0 %v1035
    %1300 = vmatmul.bf16.gmra.mxu0 %v415
    %v1301 = vpop.f32.mrf.mxu0
    %v1302 = vadd.f32 %v1288, %v1301
    %v1303 = vpop.f32.mrf.mxu0
    %v1304 = vadd.f32 %v1290, %v1303
    %1305 = vdwg.mxu0
    %1306 = vmatpush.bf16.msra.mxu0 %v968
    %1307 = vmatpush.bf16.msra.mxu0 %v964
    %1308 = vmatpush.bf16.msra.mxu0 %v960
    %1309 = vmatpush.bf16.msra.mxu0 %v956
    %1310 = vmatpush.bf16.msra.mxu0 %v952
    %1311 = vmatpush.bf16.msra.mxu0 %v948
    %1312 = vmatpush.bf16.msra.mxu0 %v944
    %1313 = vmatpush.bf16.msra.mxu0 %v940
    %1314 = vmatmul.bf16.gmra.mxu0 %v412
    %v1315 = vpop.f32.mrf.mxu0
    %v1316 = vadd.f32 %v548, %v1315
    %v1317 = vpop.f32.mrf.mxu0
    %v1318 = vadd.f32 %v548, %v1317
    %1319 = vdwg.mxu0
    %1320 = vmatpush.bf16.msra.mxu0 %v1000
    %1321 = vmatpush.bf16.msra.mxu0 %v996
    %1322 = vmatpush.bf16.msra.mxu0 %v992
    %1323 = vmatpush.bf16.msra.mxu0 %v988
    %1324 = vmatpush.bf16.msra.mxu0 %v984
    %1325 = vmatpush.bf16.msra.mxu0 %v980
    %1326 = vmatpush.bf16.msra.mxu0 %v976
    %1327 = vmatpush.bf16.msra.mxu0 %v972
    %1328 = vmatmul.bf16.gmra.mxu0 %v413
    %v1329 = vpop.f32.mrf.mxu0
    %v1330 = vadd.f32 %v1316, %v1329
    %v1331 = vpop.f32.mrf.mxu0
    %v1332 = vadd.f32 %v1318, %v1331
    %1333 = vdwg.mxu0
    %1334 = vmatpush.bf16.msra.mxu0 %v1032
    %1335 = vmatpush.bf16.msra.mxu0 %v1028
    %1336 = vmatpush.bf16.msra.mxu0 %v1024
    %1337 = vmatpush.bf16.msra.mxu0 %v1020
    %1338 = vmatpush.bf16.msra.mxu0 %v1016
    %1339 = vmatpush.bf16.msra.mxu0 %v1012
    %1340 = vmatpush.bf16.msra.mxu0 %v1008
    %1341 = vmatpush.bf16.msra.mxu0 %v1004
    %1342 = vmatmul.bf16.gmra.mxu0 %v414
    %v1343 = vpop.f32.mrf.mxu0
    %v1344 = vadd.f32 %v1330, %v1343
    %v1345 = vpop.f32.mrf.mxu0
    %v1346 = vadd.f32 %v1332, %v1345
    %1347 = vdwg.mxu0
    %1348 = vmatpush.bf16.msra.mxu0 %v1064
    %1349 = vmatpush.bf16.msra.mxu0 %v1060
    %1350 = vmatpush.bf16.msra.mxu0 %v1056
    %1351 = vmatpush.bf16.msra.mxu0 %v1052
    %1352 = vmatpush.bf16.msra.mxu0 %v1048
    %1353 = vmatpush.bf16.msra.mxu0 %v1044
    %1354 = vmatpush.bf16.msra.mxu0 %v1040
    %1355 = vmatpush.bf16.msra.mxu0 %v1036
    %1356 = vmatmul.bf16.gmra.mxu0 %v415
    %v1357 = vpop.f32.mrf.mxu0
    %v1358 = vadd.f32 %v1344, %v1357
    %v1359 = vpop.f32.mrf.mxu0
    %v1360 = vadd.f32 %v1346, %v1359
    %1361 = vdwg.mxu0
    %1362 = vmatpush.bf16.msra.mxu0 %v969
    %1363 = vmatpush.bf16.msra.mxu0 %v965
    %1364 = vmatpush.bf16.msra.mxu0 %v961
    %1365 = vmatpush.bf16.msra.mxu0 %v957
    %1366 = vmatpush.bf16.msra.mxu0 %v953
    %1367 = vmatpush.bf16.msra.mxu0 %v949
    %1368 = vmatpush.bf16.msra.mxu0 %v945
    %1369 = vmatpush.bf16.msra.mxu0 %v941
    %1370 = vmatmul.bf16.gmra.mxu0 %v412
    %v1371 = vpop.f32.mrf.mxu0
    %v1372 = vadd.f32 %v549, %v1371
    %v1373 = vpop.f32.mrf.mxu0
    %v1374 = vadd.f32 %v549, %v1373
    %1375 = vdwg.mxu0
    %1376 = vmatpush.bf16.msra.mxu0 %v1001
    %1377 = vmatpush.bf16.msra.mxu0 %v997
    %1378 = vmatpush.bf16.msra.mxu0 %v993
    %1379 = vmatpush.bf16.msra.mxu0 %v989
    %1380 = vmatpush.bf16.msra.mxu0 %v985
    %1381 = vmatpush.bf16.msra.mxu0 %v981
    %1382 = vmatpush.bf16.msra.mxu0 %v977
    %1383 = vmatpush.bf16.msra.mxu0 %v973
    %1384 = vmatmul.bf16.gmra.mxu0 %v413
    %v1385 = vpop.f32.mrf.mxu0
    %v1386 = vadd.f32 %v1372, %v1385
    %v1387 = vpop.f32.mrf.mxu0
    %v1388 = vadd.f32 %v1374, %v1387
    %1389 = vdwg.mxu0
    %1390 = vmatpush.bf16.msra.mxu0 %v1033
    %1391 = vmatpush.bf16.msra.mxu0 %v1029
    %1392 = vmatpush.bf16.msra.mxu0 %v1025
    %1393 = vmatpush.bf16.msra.mxu0 %v1021
    %1394 = vmatpush.bf16.msra.mxu0 %v1017
    %1395 = vmatpush.bf16.msra.mxu0 %v1013
    %1396 = vmatpush.bf16.msra.mxu0 %v1009
    %1397 = vmatpush.bf16.msra.mxu0 %v1005
    %1398 = vmatmul.bf16.gmra.mxu0 %v414
    %v1399 = vpop.f32.mrf.mxu0
    %v1400 = vadd.f32 %v1386, %v1399
    %v1401 = vpop.f32.mrf.mxu0
    %v1402 = vadd.f32 %v1388, %v1401
    %1403 = vdwg.mxu0
    %1404 = vmatpush.bf16.msra.mxu0 %v1065
    %1405 = vmatpush.bf16.msra.mxu0 %v1061
    %1406 = vmatpush.bf16.msra.mxu0 %v1057
    %1407 = vmatpush.bf16.msra.mxu0 %v1053
    %1408 = vmatpush.bf16.msra.mxu0 %v1049
    %1409 = vmatpush.bf16.msra.mxu0 %v1045
    %1410 = vmatpush.bf16.msra.mxu0 %v1041
    %1411 = vmatpush.bf16.msra.mxu0 %v1037
    %1412 = vmatmul.bf16.gmra.mxu0 %v415
    %v1413 = vpop.f32.mrf.mxu0
    %v1414 = vadd.f32 %v1400, %v1413
    %v1415 = vpop.f32.mrf.mxu0
    %v1416 = vadd.f32 %v1402, %v1415
    %1417 = vdwg.mxu0
    %v1418 = vmax.f32 %v1246, 0.0
    %v1419 = vmax.f32 %v1302, 0.0
    %v1420 = vmax.f32 %v1358, 0.0
    %v1421 = vmax.f32 %v1414, 0.0
    %v1422 = vmax.f32 %v1248, 0.0
    %v1423 = vmax.f32 %v1304, 0.0
    %v1424 = vmax.f32 %v1360, 0.0
    %v1425 = vmax.f32 %v1416, 0.0
    %v1426 = vpack.c.bf16 %v1422, %v1418
    %v1427 = vpack.c.bf16 %v1423, %v1419
    %v1428 = vpack.c.bf16 %v1424, %v1420
    %v1429 = vpack.c.bf16 %v1425, %v1421
    %v1430 = vld [vmem:[#allocation11] sm:$0xff]
    %v1431 = vld [vmem:[#allocation11 + $0x8] sm:$0xff]
    %v1432 = vld [vmem:[#allocation11 + $0x10] sm:$0xff]
    %v1433 = vld [vmem:[#allocation11 + $0x18] sm:$0xff]
    %v1434 = vld [vmem:[#allocation11 + $0x20] sm:$0xff]
    %v1435 = vld [vmem:[#allocation11 + $0x28] sm:$0xff]
    %v1436 = vld [vmem:[#allocation11 + $0x30] sm:$0xff]
    %v1437 = vld [vmem:[#allocation11 + $0x38] sm:$0xff]
    %v1438 = vld [vmem:[#allocation11 + $0x40] sm:$0xff]
    %v1439 = vld [vmem:[#allocation11 + $0x48] sm:$0xff]
    %v1440 = vld [vmem:[#allocation11 + $0x50] sm:$0xff]
    %v1441 = vld [vmem:[#allocation11 + $0x58] sm:$0xff]
    %v1442 = vld [vmem:[#allocation11 + $0x60] sm:$0xff]
    %v1443 = vld [vmem:[#allocation11 + $0x68] sm:$0xff]
    %v1444 = vld [vmem:[#allocation11 + $0x70] sm:$0xff]
    %v1445 = vld [vmem:[#allocation11 + $0x78] sm:$0xff]
    %v1446 = vld [vmem:[#allocation11 + $0x80] sm:$0xff]
    %v1447 = vld [vmem:[#allocation11 + $0x88] sm:$0xff]
    %v1448 = vld [vmem:[#allocation11 + $0x90] sm:$0xff]
    %v1449 = vld [vmem:[#allocation11 + $0x98] sm:$0xff]
    %v1450 = vld [vmem:[#allocation11 + $0xa0] sm:$0xff]
    %v1451 = vld [vmem:[#allocation11 + $0xa8] sm:$0xff]
    %v1452 = vld [vmem:[#allocation11 + $0xb0] sm:$0xff]
    %v1453 = vld [vmem:[#allocation11 + $0xb8] sm:$0xff]
    %v1454 = vld [vmem:[#allocation11 + $0xc0] sm:$0xff]
    %v1455 = vld [vmem:[#allocation11 + $0xc8] sm:$0xff]
    %v1456 = vld [vmem:[#allocation11 + $0xd0] sm:$0xff]
    %v1457 = vld [vmem:[#allocation11 + $0xd8] sm:$0xff]
    %v1458 = vld [vmem:[#allocation11 + $0xe0] sm:$0xff]
    %v1459 = vld [vmem:[#allocation11 + $0xe8] sm:$0xff]
    %v1460 = vld [vmem:[#allocation11 + $0xf0] sm:$0xff]
    %v1461 = vld [vmem:[#allocation11 + $0xf8] sm:$0xff]
    %v1462 = vld [vmem:[#allocation11 + $0x100] sm:$0xff]
    %v1463 = vld [vmem:[#allocation11 + $0x108] sm:$0xff]
    %v1464 = vld [vmem:[#allocation11 + $0x110] sm:$0xff]
    %v1465 = vld [vmem:[#allocation11 + $0x118] sm:$0xff]
    %v1466 = vld [vmem:[#allocation11 + $0x120] sm:$0xff]
    %v1467 = vld [vmem:[#allocation11 + $0x128] sm:$0xff]
    %v1468 = vld [vmem:[#allocation11 + $0x130] sm:$0xff]
    %v1469 = vld [vmem:[#allocation11 + $0x138] sm:$0xff]
    %v1470 = vld [vmem:[#allocation11 + $0x140] sm:$0xff]
    %v1471 = vld [vmem:[#allocation11 + $0x148] sm:$0xff]
    %v1472 = vld [vmem:[#allocation11 + $0x150] sm:$0xff]
    %v1473 = vld [vmem:[#allocation11 + $0x158] sm:$0xff]
    %v1474 = vld [vmem:[#allocation11 + $0x160] sm:$0xff]
    %v1475 = vld [vmem:[#allocation11 + $0x168] sm:$0xff]
    %v1476 = vld [vmem:[#allocation11 + $0x170] sm:$0xff]
    %v1477 = vld [vmem:[#allocation11 + $0x178] sm:$0xff]
    %v1478 = vld [vmem:[#allocation11 + $0x180] sm:$0xff]
    %v1479 = vld [vmem:[#allocation11 + $0x188] sm:$0xff]
    %v1480 = vld [vmem:[#allocation11 + $0x190] sm:$0xff]
    %v1481 = vld [vmem:[#allocation11 + $0x198] sm:$0xff]
    %v1482 = vld [vmem:[#allocation11 + $0x1a0] sm:$0xff]
    %v1483 = vld [vmem:[#allocation11 + $0x1a8] sm:$0xff]
    %v1484 = vld [vmem:[#allocation11 + $0x1b0] sm:$0xff]
    %v1485 = vld [vmem:[#allocation11 + $0x1b8] sm:$0xff]
    %v1486 = vld [vmem:[#allocation11 + $0x1c0] sm:$0xff]
    %v1487 = vld [vmem:[#allocation11 + $0x1c8] sm:$0xff]
    %v1488 = vld [vmem:[#allocation11 + $0x1d0] sm:$0xff]
    %v1489 = vld [vmem:[#allocation11 + $0x1d8] sm:$0xff]
    %v1490 = vld [vmem:[#allocation11 + $0x1e0] sm:$0xff]
    %v1491 = vld [vmem:[#allocation11 + $0x1e8] sm:$0xff]
    %v1492 = vld [vmem:[#allocation11 + $0x1f0] sm:$0xff]
    %v1493 = vld [vmem:[#allocation11 + $0x1f8] sm:$0xff]
    %v1494 = vld [vmem:[#allocation11 + $0x200] sm:$0xff]
    %v1495 = vld [vmem:[#allocation11 + $0x208] sm:$0xff]
    %v1496 = vld [vmem:[#allocation11 + $0x210] sm:$0xff]
    %v1497 = vld [vmem:[#allocation11 + $0x218] sm:$0xff]
    %v1498 = vld [vmem:[#allocation11 + $0x220] sm:$0xff]
    %v1499 = vld [vmem:[#allocation11 + $0x228] sm:$0xff]
    %v1500 = vld [vmem:[#allocation11 + $0x230] sm:$0xff]
    %v1501 = vld [vmem:[#allocation11 + $0x238] sm:$0xff]
    %v1502 = vld [vmem:[#allocation11 + $0x240] sm:$0xff]
    %v1503 = vld [vmem:[#allocation11 + $0x248] sm:$0xff]
    %v1504 = vld [vmem:[#allocation11 + $0x250] sm:$0xff]
    %v1505 = vld [vmem:[#allocation11 + $0x258] sm:$0xff]
    %v1506 = vld [vmem:[#allocation11 + $0x260] sm:$0xff]
    %v1507 = vld [vmem:[#allocation11 + $0x268] sm:$0xff]
    %v1508 = vld [vmem:[#allocation11 + $0x270] sm:$0xff]
    %v1509 = vld [vmem:[#allocation11 + $0x278] sm:$0xff]
    %v1510 = vld [vmem:[#allocation11 + $0x280] sm:$0xff]
    %v1511 = vld [vmem:[#allocation11 + $0x288] sm:$0xff]
    %v1512 = vld [vmem:[#allocation11 + $0x290] sm:$0xff]
    %v1513 = vld [vmem:[#allocation11 + $0x298] sm:$0xff]
    %v1514 = vld [vmem:[#allocation11 + $0x2a0] sm:$0xff]
    %v1515 = vld [vmem:[#allocation11 + $0x2a8] sm:$0xff]
    %v1516 = vld [vmem:[#allocation11 + $0x2b0] sm:$0xff]
    %v1517 = vld [vmem:[#allocation11 + $0x2b8] sm:$0xff]
    %v1518 = vld [vmem:[#allocation11 + $0x2c0] sm:$0xff]
    %v1519 = vld [vmem:[#allocation11 + $0x2c8] sm:$0xff]
    %v1520 = vld [vmem:[#allocation11 + $0x2d0] sm:$0xff]
    %v1521 = vld [vmem:[#allocation11 + $0x2d8] sm:$0xff]
    %v1522 = vld [vmem:[#allocation11 + $0x2e0] sm:$0xff]
    %v1523 = vld [vmem:[#allocation11 + $0x2e8] sm:$0xff]
    %v1524 = vld [vmem:[#allocation11 + $0x2f0] sm:$0xff]
    %v1525 = vld [vmem:[#allocation11 + $0x2f8] sm:$0xff]
    %v1526 = vld [vmem:[#allocation11 + $0x300] sm:$0xff]
    %v1527 = vld [vmem:[#allocation11 + $0x308] sm:$0xff]
    %v1528 = vld [vmem:[#allocation11 + $0x310] sm:$0xff]
    %v1529 = vld [vmem:[#allocation11 + $0x318] sm:$0xff]
    %v1530 = vld [vmem:[#allocation11 + $0x320] sm:$0xff]
    %v1531 = vld [vmem:[#allocation11 + $0x328] sm:$0xff]
    %v1532 = vld [vmem:[#allocation11 + $0x330] sm:$0xff]
    %v1533 = vld [vmem:[#allocation11 + $0x338] sm:$0xff]
    %v1534 = vld [vmem:[#allocation11 + $0x340] sm:$0xff]
    %v1535 = vld [vmem:[#allocation11 + $0x348] sm:$0xff]
    %v1536 = vld [vmem:[#allocation11 + $0x350] sm:$0xff]
    %v1537 = vld [vmem:[#allocation11 + $0x358] sm:$0xff]
    %v1538 = vld [vmem:[#allocation11 + $0x360] sm:$0xff]
    %v1539 = vld [vmem:[#allocation11 + $0x368] sm:$0xff]
    %v1540 = vld [vmem:[#allocation11 + $0x370] sm:$0xff]
    %v1541 = vld [vmem:[#allocation11 + $0x378] sm:$0xff]
    %v1542 = vld [vmem:[#allocation11 + $0x380] sm:$0xff]
    %v1543 = vld [vmem:[#allocation11 + $0x388] sm:$0xff]
    %v1544 = vld [vmem:[#allocation11 + $0x390] sm:$0xff]
    %v1545 = vld [vmem:[#allocation11 + $0x398] sm:$0xff]
    %v1546 = vld [vmem:[#allocation11 + $0x3a0] sm:$0xff]
    %v1547 = vld [vmem:[#allocation11 + $0x3a8] sm:$0xff]
    %v1548 = vld [vmem:[#allocation11 + $0x3b0] sm:$0xff]
    %v1549 = vld [vmem:[#allocation11 + $0x3b8] sm:$0xff]
    %v1550 = vld [vmem:[#allocation11 + $0x3c0] sm:$0xff]
    %v1551 = vld [vmem:[#allocation11 + $0x3c8] sm:$0xff]
    %v1552 = vld [vmem:[#allocation11 + $0x3d0] sm:$0xff]
    %v1553 = vld [vmem:[#allocation11 + $0x3d8] sm:$0xff]
    %v1554 = vld [vmem:[#allocation11 + $0x3e0] sm:$0xff]
    %v1555 = vld [vmem:[#allocation11 + $0x3e8] sm:$0xff]
    %v1556 = vld [vmem:[#allocation11 + $0x3f0] sm:$0xff]
    %v1557 = vld [vmem:[#allocation11 + $0x3f8] sm:$0xff]
    %v1558 = vld [vmem:[%s6] sm:$0xf]
    %v1560 = vperm.slane %v1558, 0
    %v1561 = vperm.slane %v1558, 1
    %v1562 = vperm.slane %v1558, 2
    %v1563 = vperm.slane %v1558, 3
    %v1696 = vunpack.c.l.b16 %v1430
    %v1697 = vunpack.c.h.b16 %v1430
    %v1698 = vunpack.c.l.b16 %v1431
    %v1699 = vunpack.c.h.b16 %v1431
    %v1700 = vunpack.c.l.b16 %v1432
    %v1701 = vunpack.c.h.b16 %v1432
    %v1702 = vunpack.c.l.b16 %v1433
    %v1703 = vunpack.c.h.b16 %v1433
    %v1704 = vunpack.c.l.b16 %v1434
    %v1705 = vunpack.c.h.b16 %v1434
    %v1706 = vunpack.c.l.b16 %v1435
    %v1707 = vunpack.c.h.b16 %v1435
    %v1708 = vunpack.c.l.b16 %v1436
    %v1709 = vunpack.c.h.b16 %v1436
    %v1710 = vunpack.c.l.b16 %v1437
    %v1711 = vunpack.c.h.b16 %v1437
    %v1712 = vunpack.c.l.b16 %v1438
    %v1713 = vunpack.c.h.b16 %v1438
    %v1714 = vunpack.c.l.b16 %v1439
    %v1715 = vunpack.c.h.b16 %v1439
    %v1716 = vunpack.c.l.b16 %v1440
    %v1717 = vunpack.c.h.b16 %v1440
    %v1718 = vunpack.c.l.b16 %v1441
    %v1719 = vunpack.c.h.b16 %v1441
    %v1720 = vunpack.c.l.b16 %v1442
    %v1721 = vunpack.c.h.b16 %v1442
    %v1722 = vunpack.c.l.b16 %v1443
    %v1723 = vunpack.c.h.b16 %v1443
    %v1724 = vunpack.c.l.b16 %v1444
    %v1725 = vunpack.c.h.b16 %v1444
    %v1726 = vunpack.c.l.b16 %v1445
    %v1727 = vunpack.c.h.b16 %v1445
    %v1728 = vunpack.c.l.b16 %v1446
    %v1729 = vunpack.c.h.b16 %v1446
    %v1730 = vunpack.c.l.b16 %v1447
    %v1731 = vunpack.c.h.b16 %v1447
    %v1732 = vunpack.c.l.b16 %v1448
    %v1733 = vunpack.c.h.b16 %v1448
    %v1734 = vunpack.c.l.b16 %v1449
    %v1735 = vunpack.c.h.b16 %v1449
    %v1736 = vunpack.c.l.b16 %v1450
    %v1737 = vunpack.c.h.b16 %v1450
    %v1738 = vunpack.c.l.b16 %v1451
    %v1739 = vunpack.c.h.b16 %v1451
    %v1740 = vunpack.c.l.b16 %v1452
    %v1741 = vunpack.c.h.b16 %v1452
    %v1742 = vunpack.c.l.b16 %v1453
    %v1743 = vunpack.c.h.b16 %v1453
    %v1744 = vunpack.c.l.b16 %v1454
    %v1745 = vunpack.c.h.b16 %v1454
    %v1746 = vunpack.c.l.b16 %v1455
    %v1747 = vunpack.c.h.b16 %v1455
    %v1748 = vunpack.c.l.b16 %v1456
    %v1749 = vunpack.c.h.b16 %v1456
    %v1750 = vunpack.c.l.b16 %v1457
    %v1751 = vunpack.c.h.b16 %v1457
    %v1752 = vunpack.c.l.b16 %v1458
    %v1753 = vunpack.c.h.b16 %v1458
    %v1754 = vunpack.c.l.b16 %v1459
    %v1755 = vunpack.c.h.b16 %v1459
    %v1756 = vunpack.c.l.b16 %v1460
    %v1757 = vunpack.c.h.b16 %v1460
    %v1758 = vunpack.c.l.b16 %v1461
    %v1759 = vunpack.c.h.b16 %v1461
    %v1760 = vunpack.c.l.b16 %v1462
    %v1761 = vunpack.c.h.b16 %v1462
    %v1762 = vunpack.c.l.b16 %v1463
    %v1763 = vunpack.c.h.b16 %v1463
    %v1764 = vunpack.c.l.b16 %v1464
    %v1765 = vunpack.c.h.b16 %v1464
    %v1766 = vunpack.c.l.b16 %v1465
    %v1767 = vunpack.c.h.b16 %v1465
    %v1768 = vunpack.c.l.b16 %v1466
    %v1769 = vunpack.c.h.b16 %v1466
    %v1770 = vunpack.c.l.b16 %v1467
    %v1771 = vunpack.c.h.b16 %v1467
    %v1772 = vunpack.c.l.b16 %v1468
    %v1773 = vunpack.c.h.b16 %v1468
    %v1774 = vunpack.c.l.b16 %v1469
    %v1775 = vunpack.c.h.b16 %v1469
    %v1776 = vunpack.c.l.b16 %v1470
    %v1777 = vunpack.c.h.b16 %v1470
    %v1778 = vunpack.c.l.b16 %v1471
    %v1779 = vunpack.c.h.b16 %v1471
    %v1780 = vunpack.c.l.b16 %v1472
    %v1781 = vunpack.c.h.b16 %v1472
    %v1782 = vunpack.c.l.b16 %v1473
    %v1783 = vunpack.c.h.b16 %v1473
    %v1784 = vunpack.c.l.b16 %v1474
    %v1785 = vunpack.c.h.b16 %v1474
    %v1786 = vunpack.c.l.b16 %v1475
    %v1787 = vunpack.c.h.b16 %v1475
    %v1788 = vunpack.c.l.b16 %v1476
    %v1789 = vunpack.c.h.b16 %v1476
    %v1790 = vunpack.c.l.b16 %v1477
    %v1791 = vunpack.c.h.b16 %v1477
    %v1792 = vunpack.c.l.b16 %v1478
    %v1793 = vunpack.c.h.b16 %v1478
    %v1794 = vunpack.c.l.b16 %v1479
    %v1795 = vunpack.c.h.b16 %v1479
    %v1796 = vunpack.c.l.b16 %v1480
    %v1797 = vunpack.c.h.b16 %v1480
    %v1798 = vunpack.c.l.b16 %v1481
    %v1799 = vunpack.c.h.b16 %v1481
    %v1800 = vunpack.c.l.b16 %v1482
    %v1801 = vunpack.c.h.b16 %v1482
    %v1802 = vunpack.c.l.b16 %v1483
    %v1803 = vunpack.c.h.b16 %v1483
    %v1804 = vunpack.c.l.b16 %v1484
    %v1805 = vunpack.c.h.b16 %v1484
    %v1806 = vunpack.c.l.b16 %v1485
    %v1807 = vunpack.c.h.b16 %v1485
    %v1808 = vunpack.c.l.b16 %v1486
    %v1809 = vunpack.c.h.b16 %v1486
    %v1810 = vunpack.c.l.b16 %v1487
    %v1811 = vunpack.c.h.b16 %v1487
    %v1812 = vunpack.c.l.b16 %v1488
    %v1813 = vunpack.c.h.b16 %v1488
    %v1814 = vunpack.c.l.b16 %v1489
    %v1815 = vunpack.c.h.b16 %v1489
    %v1816 = vunpack.c.l.b16 %v1490
    %v1817 = vunpack.c.h.b16 %v1490
    %v1818 = vunpack.c.l.b16 %v1491
    %v1819 = vunpack.c.h.b16 %v1491
    %v1820 = vunpack.c.l.b16 %v1492
    %v1821 = vunpack.c.h.b16 %v1492
    %v1822 = vunpack.c.l.b16 %v1493
    %v1823 = vunpack.c.h.b16 %v1493
    %v1824 = vunpack.c.l.b16 %v1494
    %v1825 = vunpack.c.h.b16 %v1494
    %v1826 = vunpack.c.l.b16 %v1495
    %v1827 = vunpack.c.h.b16 %v1495
    %v1828 = vunpack.c.l.b16 %v1496
    %v1829 = vunpack.c.h.b16 %v1496
    %v1830 = vunpack.c.l.b16 %v1497
    %v1831 = vunpack.c.h.b16 %v1497
    %v1832 = vunpack.c.l.b16 %v1498
    %v1833 = vunpack.c.h.b16 %v1498
    %v1834 = vunpack.c.l.b16 %v1499
    %v1835 = vunpack.c.h.b16 %v1499
    %v1836 = vunpack.c.l.b16 %v1500
    %v1837 = vunpack.c.h.b16 %v1500
    %v1838 = vunpack.c.l.b16 %v1501
    %v1839 = vunpack.c.h.b16 %v1501
    %v1840 = vunpack.c.l.b16 %v1502
    %v1841 = vunpack.c.h.b16 %v1502
    %v1842 = vunpack.c.l.b16 %v1503
    %v1843 = vunpack.c.h.b16 %v1503
    %v1844 = vunpack.c.l.b16 %v1504
    %v1845 = vunpack.c.h.b16 %v1504
    %v1846 = vunpack.c.l.b16 %v1505
    %v1847 = vunpack.c.h.b16 %v1505
    %v1848 = vunpack.c.l.b16 %v1506
    %v1849 = vunpack.c.h.b16 %v1506
    %v1850 = vunpack.c.l.b16 %v1507
    %v1851 = vunpack.c.h.b16 %v1507
    %v1852 = vunpack.c.l.b16 %v1508
    %v1853 = vunpack.c.h.b16 %v1508
    %v1854 = vunpack.c.l.b16 %v1509
    %v1855 = vunpack.c.h.b16 %v1509
    %v1856 = vunpack.c.l.b16 %v1510
    %v1857 = vunpack.c.h.b16 %v1510
    %v1858 = vunpack.c.l.b16 %v1511
    %v1859 = vunpack.c.h.b16 %v1511
    %v1860 = vunpack.c.l.b16 %v1512
    %v1861 = vunpack.c.h.b16 %v1512
    %v1862 = vunpack.c.l.b16 %v1513
    %v1863 = vunpack.c.h.b16 %v1513
    %v1864 = vunpack.c.l.b16 %v1514
    %v1865 = vunpack.c.h.b16 %v1514
    %v1866 = vunpack.c.l.b16 %v1515
    %v1867 = vunpack.c.h.b16 %v1515
    %v1868 = vunpack.c.l.b16 %v1516
    %v1869 = vunpack.c.h.b16 %v1516
    %v1870 = vunpack.c.l.b16 %v1517
    %v1871 = vunpack.c.h.b16 %v1517
    %v1872 = vunpack.c.l.b16 %v1518
    %v1873 = vunpack.c.h.b16 %v1518
    %v1874 = vunpack.c.l.b16 %v1519
    %v1875 = vunpack.c.h.b16 %v1519
    %v1876 = vunpack.c.l.b16 %v1520
    %v1877 = vunpack.c.h.b16 %v1520
    %v1878 = vunpack.c.l.b16 %v1521
    %v1879 = vunpack.c.h.b16 %v1521
    %v1880 = vunpack.c.l.b16 %v1522
    %v1881 = vunpack.c.h.b16 %v1522
    %v1882 = vunpack.c.l.b16 %v1523
    %v1883 = vunpack.c.h.b16 %v1523
    %v1884 = vunpack.c.l.b16 %v1524
    %v1885 = vunpack.c.h.b16 %v1524
    %v1886 = vunpack.c.l.b16 %v1525
    %v1887 = vunpack.c.h.b16 %v1525
    %v1888 = vunpack.c.l.b16 %v1526
    %v1889 = vunpack.c.h.b16 %v1526
    %v1890 = vunpack.c.l.b16 %v1527
    %v1891 = vunpack.c.h.b16 %v1527
    %v1892 = vunpack.c.l.b16 %v1528
    %v1893 = vunpack.c.h.b16 %v1528
    %v1894 = vunpack.c.l.b16 %v1529
    %v1895 = vunpack.c.h.b16 %v1529
    %v1896 = vunpack.c.l.b16 %v1530
    %v1897 = vunpack.c.h.b16 %v1530
    %v1898 = vunpack.c.l.b16 %v1531
    %v1899 = vunpack.c.h.b16 %v1531
    %v1900 = vunpack.c.l.b16 %v1532
    %v1901 = vunpack.c.h.b16 %v1532
    %v1902 = vunpack.c.l.b16 %v1533
    %v1903 = vunpack.c.h.b16 %v1533
    %v1904 = vunpack.c.l.b16 %v1534
    %v1905 = vunpack.c.h.b16 %v1534
    %v1906 = vunpack.c.l.b16 %v1535
    %v1907 = vunpack.c.h.b16 %v1535
    %v1908 = vunpack.c.l.b16 %v1536
    %v1909 = vunpack.c.h.b16 %v1536
    %v1910 = vunpack.c.l.b16 %v1537
    %v1911 = vunpack.c.h.b16 %v1537
    %v1912 = vunpack.c.l.b16 %v1538
    %v1913 = vunpack.c.h.b16 %v1538
    %v1914 = vunpack.c.l.b16 %v1539
    %v1915 = vunpack.c.h.b16 %v1539
    %v1916 = vunpack.c.l.b16 %v1540
    %v1917 = vunpack.c.h.b16 %v1540
    %v1918 = vunpack.c.l.b16 %v1541
    %v1919 = vunpack.c.h.b16 %v1541
    %v1920 = vunpack.c.l.b16 %v1542
    %v1921 = vunpack.c.h.b16 %v1542
    %v1922 = vunpack.c.l.b16 %v1543
    %v1923 = vunpack.c.h.b16 %v1543
    %v1924 = vunpack.c.l.b16 %v1544
    %v1925 = vunpack.c.h.b16 %v1544
    %v1926 = vunpack.c.l.b16 %v1545
    %v1927 = vunpack.c.h.b16 %v1545
    %v1928 = vunpack.c.l.b16 %v1546
    %v1929 = vunpack.c.h.b16 %v1546
    %v1930 = vunpack.c.l.b16 %v1547
    %v1931 = vunpack.c.h.b16 %v1547
    %v1932 = vunpack.c.l.b16 %v1548
    %v1933 = vunpack.c.h.b16 %v1548
    %v1934 = vunpack.c.l.b16 %v1549
    %v1935 = vunpack.c.h.b16 %v1549
    %v1936 = vunpack.c.l.b16 %v1550
    %v1937 = vunpack.c.h.b16 %v1550
    %v1938 = vunpack.c.l.b16 %v1551
    %v1939 = vunpack.c.h.b16 %v1551
    %v1940 = vunpack.c.l.b16 %v1552
    %v1941 = vunpack.c.h.b16 %v1552
    %v1942 = vunpack.c.l.b16 %v1553
    %v1943 = vunpack.c.h.b16 %v1553
    %v1944 = vunpack.c.l.b16 %v1554
    %v1945 = vunpack.c.h.b16 %v1554
    %v1946 = vunpack.c.l.b16 %v1555
    %v1947 = vunpack.c.h.b16 %v1555
    %v1948 = vunpack.c.l.b16 %v1556
    %v1949 = vunpack.c.h.b16 %v1556
    %v1950 = vunpack.c.l.b16 %v1557
    %v1951 = vunpack.c.h.b16 %v1557
    %v1952 = vpack.c.b16 %v1700, %v1696
    %v1953 = vpack.c.b16 %v1701, %v1697
    %v1954 = vpack.c.b16 %v1702, %v1698
    %v1955 = vpack.c.b16 %v1703, %v1699
    %v1956 = vpack.c.b16 %v1708, %v1704
    %v1957 = vpack.c.b16 %v1709, %v1705
    %v1958 = vpack.c.b16 %v1710, %v1706
    %v1959 = vpack.c.b16 %v1711, %v1707
    %v1960 = vpack.c.b16 %v1716, %v1712
    %v1961 = vpack.c.b16 %v1717, %v1713
    %v1962 = vpack.c.b16 %v1718, %v1714
    %v1963 = vpack.c.b16 %v1719, %v1715
    %v1964 = vpack.c.b16 %v1724, %v1720
    %v1965 = vpack.c.b16 %v1725, %v1721
    %v1966 = vpack.c.b16 %v1726, %v1722
    %v1967 = vpack.c.b16 %v1727, %v1723
    %v1968 = vpack.c.b16 %v1732, %v1728
    %v1969 = vpack.c.b16 %v1733, %v1729
    %v1970 = vpack.c.b16 %v1734, %v1730
    %v1971 = vpack.c.b16 %v1735, %v1731
    %v1972 = vpack.c.b16 %v1740, %v1736
    %v1973 = vpack.c.b16 %v1741, %v1737
    %v1974 = vpack.c.b16 %v1742, %v1738
    %v1975 = vpack.c.b16 %v1743, %v1739
    %v1976 = vpack.c.b16 %v1748, %v1744
    %v1977 = vpack.c.b16 %v1749, %v1745
    %v1978 = vpack.c.b16 %v1750, %v1746
    %v1979 = vpack.c.b16 %v1751, %v1747
    %v1980 = vpack.c.b16 %v1756, %v1752
    %v1981 = vpack.c.b16 %v1757, %v1753
    %v1982 = vpack.c.b16 %v1758, %v1754
    %v1983 = vpack.c.b16 %v1759, %v1755
    %v1984 = vpack.c.b16 %v1764, %v1760
    %v1985 = vpack.c.b16 %v1765, %v1761
    %v1986 = vpack.c.b16 %v1766, %v1762
    %v1987 = vpack.c.b16 %v1767, %v1763
    %v1988 = vpack.c.b16 %v1772, %v1768
    %v1989 = vpack.c.b16 %v1773, %v1769
    %v1990 = vpack.c.b16 %v1774, %v1770
    %v1991 = vpack.c.b16 %v1775, %v1771
    %v1992 = vpack.c.b16 %v1780, %v1776
    %v1993 = vpack.c.b16 %v1781, %v1777
    %v1994 = vpack.c.b16 %v1782, %v1778
    %v1995 = vpack.c.b16 %v1783, %v1779
    %v1996 = vpack.c.b16 %v1788, %v1784
    %v1997 = vpack.c.b16 %v1789, %v1785
    %v1998 = vpack.c.b16 %v1790, %v1786
    %v1999 = vpack.c.b16 %v1791, %v1787
    %v2000 = vpack.c.b16 %v1796, %v1792
    %v2001 = vpack.c.b16 %v1797, %v1793
    %v2002 = vpack.c.b16 %v1798, %v1794
    %v2003 = vpack.c.b16 %v1799, %v1795
    %v2004 = vpack.c.b16 %v1804, %v1800
    %v2005 = vpack.c.b16 %v1805, %v1801
    %v2006 = vpack.c.b16 %v1806, %v1802
    %v2007 = vpack.c.b16 %v1807, %v1803
    %v2008 = vpack.c.b16 %v1812, %v1808
    %v2009 = vpack.c.b16 %v1813, %v1809
    %v2010 = vpack.c.b16 %v1814, %v1810
    %v2011 = vpack.c.b16 %v1815, %v1811
    %v2012 = vpack.c.b16 %v1820, %v1816
    %v2013 = vpack.c.b16 %v1821, %v1817
    %v2014 = vpack.c.b16 %v1822, %v1818
    %v2015 = vpack.c.b16 %v1823, %v1819
    %v2016 = vpack.c.b16 %v1828, %v1824
    %v2017 = vpack.c.b16 %v1829, %v1825
    %v2018 = vpack.c.b16 %v1830, %v1826
    %v2019 = vpack.c.b16 %v1831, %v1827
    %v2020 = vpack.c.b16 %v1836, %v1832
    %v2021 = vpack.c.b16 %v1837, %v1833
    %v2022 = vpack.c.b16 %v1838, %v1834
    %v2023 = vpack.c.b16 %v1839, %v1835
    %v2024 = vpack.c.b16 %v1844, %v1840
    %v2025 = vpack.c.b16 %v1845, %v1841
    %v2026 = vpack.c.b16 %v1846, %v1842
    %v2027 = vpack.c.b16 %v1847, %v1843
    %v2028 = vpack.c.b16 %v1852, %v1848
    %v2029 = vpack.c.b16 %v1853, %v1849
    %v2030 = vpack.c.b16 %v1854, %v1850
    %v2031 = vpack.c.b16 %v1855, %v1851
    %v2032 = vpack.c.b16 %v1860, %v1856
    %v2033 = vpack.c.b16 %v1861, %v1857
    %v2034 = vpack.c.b16 %v1862, %v1858
    %v2035 = vpack.c.b16 %v1863, %v1859
    %v2036 = vpack.c.b16 %v1868, %v1864
    %v2037 = vpack.c.b16 %v1869, %v1865
    %v2038 = vpack.c.b16 %v1870, %v1866
    %v2039 = vpack.c.b16 %v1871, %v1867
    %v2040 = vpack.c.b16 %v1876, %v1872
    %v2041 = vpack.c.b16 %v1877, %v1873
    %v2042 = vpack.c.b16 %v1878, %v1874
    %v2043 = vpack.c.b16 %v1879, %v1875
    %v2044 = vpack.c.b16 %v1884, %v1880
    %v2045 = vpack.c.b16 %v1885, %v1881
    %v2046 = vpack.c.b16 %v1886, %v1882
    %v2047 = vpack.c.b16 %v1887, %v1883
    %v2048 = vpack.c.b16 %v1892, %v1888
    %v2049 = vpack.c.b16 %v1893, %v1889
    %v2050 = vpack.c.b16 %v1894, %v1890
    %v2051 = vpack.c.b16 %v1895, %v1891
    %v2052 = vpack.c.b16 %v1900, %v1896
    %v2053 = vpack.c.b16 %v1901, %v1897
    %v2054 = vpack.c.b16 %v1902, %v1898
    %v2055 = vpack.c.b16 %v1903, %v1899
    %v2056 = vpack.c.b16 %v1908, %v1904
    %v2057 = vpack.c.b16 %v1909, %v1905
    %v2058 = vpack.c.b16 %v1910, %v1906
    %v2059 = vpack.c.b16 %v1911, %v1907
    %v2060 = vpack.c.b16 %v1916, %v1912
    %v2061 = vpack.c.b16 %v1917, %v1913
    %v2062 = vpack.c.b16 %v1918, %v1914
    %v2063 = vpack.c.b16 %v1919, %v1915
    %v2064 = vpack.c.b16 %v1924, %v1920
    %v2065 = vpack.c.b16 %v1925, %v1921
    %v2066 = vpack.c.b16 %v1926, %v1922
    %v2067 = vpack.c.b16 %v1927, %v1923
    %v2068 = vpack.c.b16 %v1932, %v1928
    %v2069 = vpack.c.b16 %v1933, %v1929
    %v2070 = vpack.c.b16 %v1934, %v1930
    %v2071 = vpack.c.b16 %v1935, %v1931
    %v2072 = vpack.c.b16 %v1940, %v1936
    %v2073 = vpack.c.b16 %v1941, %v1937
    %v2074 = vpack.c.b16 %v1942, %v1938
    %v2075 = vpack.c.b16 %v1943, %v1939
    %v2076 = vpack.c.b16 %v1948, %v1944
    %v2077 = vpack.c.b16 %v1949, %v1945
    %v2078 = vpack.c.b16 %v1950, %v1946
    %v2079 = vpack.c.b16 %v1951, %v1947
    %2208 = vmatpush.bf16.msra.mxu0 %v1980
    %2209 = vmatpush.bf16.msra.mxu0 %v1976
    %2210 = vmatpush.bf16.msra.mxu0 %v1972
    %2211 = vmatpush.bf16.msra.mxu0 %v1968
    %2212 = vmatpush.bf16.msra.mxu0 %v1964
    %2213 = vmatpush.bf16.msra.mxu0 %v1960
    %2214 = vmatpush.bf16.msra.mxu0 %v1956
    %2215 = vmatpush.bf16.msra.mxu0 %v1952
    %2216 = vmatmul.bf16.gmra.mxu0 %v1426
    %v2217 = vpop.f32.mrf.mxu0
    %v2218 = vadd.f32 %v1560, %v2217
    %v2219 = vpop.f32.mrf.mxu0
    %v2220 = vadd.f32 %v1560, %v2219
    %2221 = vdwg.mxu0
    %2222 = vmatpush.bf16.msra.mxu0 %v2012
    %2223 = vmatpush.bf16.msra.mxu0 %v2008
    %2224 = vmatpush.bf16.msra.mxu0 %v2004
    %2225 = vmatpush.bf16.msra.mxu0 %v2000
    %2226 = vmatpush.bf16.msra.mxu0 %v1996
    %2227 = vmatpush.bf16.msra.mxu0 %v1992
    %2228 = vmatpush.bf16.msra.mxu0 %v1988
    %2229 = vmatpush.bf16.msra.mxu0 %v1984
    %2230 = vmatmul.bf16.gmra.mxu0 %v1427
    %v2231 = vpop.f32.mrf.mxu0
    %v2232 = vadd.f32 %v2218, %v2231
    %v2233 = vpop.f32.mrf.mxu0
    %v2234 = vadd.f32 %v2220, %v2233
    %2235 = vdwg.mxu0
    %2236 = vmatpush.bf16.msra.mxu0 %v2044
    %2237 = vmatpush.bf16.msra.mxu0 %v2040
    %2238 = vmatpush.bf16.msra.mxu0 %v2036
    %2239 = vmatpush.bf16.msra.mxu0 %v2032
    %2240 = vmatpush.bf16.msra.mxu0 %v2028
    %2241 = vmatpush.bf16.msra.mxu0 %v2024
    %2242 = vmatpush.bf16.msra.mxu0 %v2020
    %2243 = vmatpush.bf16.msra.mxu0 %v2016
    %2244 = vmatmul.bf16.gmra.mxu0 %v1428
    %v2245 = vpop.f32.mrf.mxu0
    %v2246 = vadd.f32 %v2232, %v2245
    %v2247 = vpop.f32.mrf.mxu0
    %v2248 = vadd.f32 %v2234, %v2247
    %2249 = vdwg.mxu0
    %2250 = vmatpush.bf16.msra.mxu0 %v2076
    %2251 = vmatpush.bf16.msra.mxu0 %v2072
    %2252 = vmatpush.bf16.msra.mxu0 %v2068
    %2253 = vmatpush.bf16.msra.mxu0 %v2064
    %2254 = vmatpush.bf16.msra.mxu0 %v2060
    %2255 = vmatpush.bf16.msra.mxu0 %v2056
    %2256 = vmatpush.bf16.msra.mxu0 %v2052
    %2257 = vmatpush.bf16.msra.mxu0 %v2048
    %2258 = vmatmul.bf16.gmra.mxu0 %v1429
    %v2259 = vpop.f32.mrf.mxu0
    %v2260 = vadd.f32 %v2246, %v2259
    %v2261 = vpop.f32.mrf.mxu0
    %v2262 = vadd.f32 %v2248, %v2261
    %2263 = vdwg.mxu0
    %2264 = vmatpush.bf16.msra.mxu0 %v1981
    %2265 = vmatpush.bf16.msra.mxu0 %v1977
    %2266 = vmatpush.bf16.msra.mxu0 %v1973
    %2267 = vmatpush.bf16.msra.mxu0 %v1969
    %2268 = vmatpush.bf16.msra.mxu0 %v1965
    %2269 = vmatpush.bf16.msra.mxu0 %v1961
    %2270 = vmatpush.bf16.msra.mxu0 %v1957
    %2271 = vmatpush.bf16.msra.mxu0 %v1953
    %2272 = vmatmul.bf16.gmra.mxu0 %v1426
    %v2273 = vpop.f32.mrf.mxu0
    %v2274 = vadd.f32 %v1561, %v2273
    %v2275 = vpop.f32.mrf.mxu0
    %v2276 = vadd.f32 %v1561, %v2275
    %2277 = vdwg.mxu0
    %2278 = vmatpush.bf16.msra.mxu0 %v2013
    %2279 = vmatpush.bf16.msra.mxu0 %v2009
    %2280 = vmatpush.bf16.msra.mxu0 %v2005
    %2281 = vmatpush.bf16.msra.mxu0 %v2001
    %2282 = vmatpush.bf16.msra.mxu0 %v1997
    %2283 = vmatpush.bf16.msra.mxu0 %v1993
    %2284 = vmatpush.bf16.msra.mxu0 %v1989
    %2285 = vmatpush.bf16.msra.mxu0 %v1985
    %2286 = vmatmul.bf16.gmra.mxu0 %v1427
    %v2287 = vpop.f32.mrf.mxu0
    %v2288 = vadd.f32 %v2274, %v2287
    %v2289 = vpop.f32.mrf.mxu0
    %v2290 = vadd.f32 %v2276, %v2289
    %2291 = vdwg.mxu0
    %2292 = vmatpush.bf16.msra.mxu0 %v2045
    %2293 = vmatpush.bf16.msra.mxu0 %v2041
    %2294 = vmatpush.bf16.msra.mxu0 %v2037
    %2295 = vmatpush.bf16.msra.mxu0 %v2033
    %2296 = vmatpush.bf16.msra.mxu0 %v2029
    %2297 = vmatpush.bf16.msra.mxu0 %v2025
    %2298 = vmatpush.bf16.msra.mxu0 %v2021
    %2299 = vmatpush.bf16.msra.mxu0 %v2017
    %2300 = vmatmul.bf16.gmra.mxu0 %v1428
    %v2301 = vpop.f32.mrf.mxu0
    %v2302 = vadd.f32 %v2288, %v2301
    %v2303 = vpop.f32.mrf.mxu0
    %v2304 = vadd.f32 %v2290, %v2303
    %2305 = vdwg.mxu0
    %2306 = vmatpush.bf16.msra.mxu0 %v2077
    %2307 = vmatpush.bf16.msra.mxu0 %v2073
    %2308 = vmatpush.bf16.msra.mxu0 %v2069
    %2309 = vmatpush.bf16.msra.mxu0 %v2065
    %2310 = vmatpush.bf16.msra.mxu0 %v2061
    %2311 = vmatpush.bf16.msra.mxu0 %v2057
    %2312 = vmatpush.bf16.msra.mxu0 %v2053
    %2313 = vmatpush.bf16.msra.mxu0 %v2049
    %2314 = vmatmul.bf16.gmra.mxu0 %v1429
    %v2315 = vpop.f32.mrf.mxu0
    %v2316 = vadd.f32 %v2302, %v2315
    %v2317 = vpop.f32.mrf.mxu0
    %v2318 = vadd.f32 %v2304, %v2317
    %2319 = vdwg.mxu0
    %2320 = vmatpush.bf16.msra.mxu0 %v1982
    %2321 = vmatpush.bf16.msra.mxu0 %v1978
    %2322 = vmatpush.bf16.msra.mxu0 %v1974
    %2323 = vmatpush.bf16.msra.mxu0 %v1970
    %2324 = vmatpush.bf16.msra.mxu0 %v1966
    %2325 = vmatpush.bf16.msra.mxu0 %v1962
    %2326 = vmatpush.bf16.msra.mxu0 %v1958
    %2327 = vmatpush.bf16.msra.mxu0 %v1954
    %2328 = vmatmul.bf16.gmra.mxu0 %v1426
    %v2329 = vpop.f32.mrf.mxu0
    %v2330 = vadd.f32 %v1562, %v2329
    %v2331 = vpop.f32.mrf.mxu0
    %v2332 = vadd.f32 %v1562, %v2331
    %2333 = vdwg.mxu0
    %2334 = vmatpush.bf16.msra.mxu0 %v2014
    %2335 = vmatpush.bf16.msra.mxu0 %v2010
    %2336 = vmatpush.bf16.msra.mxu0 %v2006
    %2337 = vmatpush.bf16.msra.mxu0 %v2002
    %2338 = vmatpush.bf16.msra.mxu0 %v1998
    %2339 = vmatpush.bf16.msra.mxu0 %v1994
    %2340 = vmatpush.bf16.msra.mxu0 %v1990
    %2341 = vmatpush.bf16.msra.mxu0 %v1986
    %2342 = vmatmul.bf16.gmra.mxu0 %v1427
    %v2343 = vpop.f32.mrf.mxu0
    %v2344 = vadd.f32 %v2330, %v2343
    %v2345 = vpop.f32.mrf.mxu0
    %v2346 = vadd.f32 %v2332, %v2345
    %2347 = vdwg.mxu0
    %2348 = vmatpush.bf16.msra.mxu0 %v2046
    %2349 = vmatpush.bf16.msra.mxu0 %v2042
    %2350 = vmatpush.bf16.msra.mxu0 %v2038
    %2351 = vmatpush.bf16.msra.mxu0 %v2034
    %2352 = vmatpush.bf16.msra.mxu0 %v2030
    %2353 = vmatpush.bf16.msra.mxu0 %v2026
    %2354 = vmatpush.bf16.msra.mxu0 %v2022
    %2355 = vmatpush.bf16.msra.mxu0 %v2018
    %2356 = vmatmul.bf16.gmra.mxu0 %v1428
    %v2357 = vpop.f32.mrf.mxu0
    %v2358 = vadd.f32 %v2344, %v2357
    %v2359 = vpop.f32.mrf.mxu0
    %v2360 = vadd.f32 %v2346, %v2359
    %2361 = vdwg.mxu0
    %2362 = vmatpush.bf16.msra.mxu0 %v2078
    %2363 = vmatpush.bf16.msra.mxu0 %v2074
    %2364 = vmatpush.bf16.msra.mxu0 %v2070
    %2365 = vmatpush.bf16.msra.mxu0 %v2066
    %2366 = vmatpush.bf16.msra.mxu0 %v2062
    %2367 = vmatpush.bf16.msra.mxu0 %v2058
    %2368 = vmatpush.bf16.msra.mxu0 %v2054
    %2369 = vmatpush.bf16.msra.mxu0 %v2050
    %2370 = vmatmul.bf16.gmra.mxu0 %v1429
    %v2371 = vpop.f32.mrf.mxu0
    %v2372 = vadd.f32 %v2358, %v2371
    %v2373 = vpop.f32.mrf.mxu0
    %v2374 = vadd.f32 %v2360, %v2373
    %2375 = vdwg.mxu0
    %2376 = vmatpush.bf16.msra.mxu0 %v1983
    %2377 = vmatpush.bf16.msra.mxu0 %v1979
    %2378 = vmatpush.bf16.msra.mxu0 %v1975
    %2379 = vmatpush.bf16.msra.mxu0 %v1971
    %2380 = vmatpush.bf16.msra.mxu0 %v1967
    %2381 = vmatpush.bf16.msra.mxu0 %v1963
    %2382 = vmatpush.bf16.msra.mxu0 %v1959
    %2383 = vmatpush.bf16.msra.mxu0 %v1955
    %2384 = vmatmul.bf16.gmra.mxu0 %v1426
    %v2385 = vpop.f32.mrf.mxu0
    %v2386 = vadd.f32 %v1563, %v2385
    %v2387 = vpop.f32.mrf.mxu0
    %v2388 = vadd.f32 %v1563, %v2387
    %2389 = vdwg.mxu0
    %2390 = vmatpush.bf16.msra.mxu0 %v2015
    %2391 = vmatpush.bf16.msra.mxu0 %v2011
    %2392 = vmatpush.bf16.msra.mxu0 %v2007
    %2393 = vmatpush.bf16.msra.mxu0 %v2003
    %2394 = vmatpush.bf16.msra.mxu0 %v1999
    %2395 = vmatpush.bf16.msra.mxu0 %v1995
    %2396 = vmatpush.bf16.msra.mxu0 %v1991
    %2397 = vmatpush.bf16.msra.mxu0 %v1987
    %2398 = vmatmul.bf16.gmra.mxu0 %v1427
    %v2399 = vpop.f32.mrf.mxu0
    %v2400 = vadd.f32 %v2386, %v2399
    %v2401 = vpop.f32.mrf.mxu0
    %v2402 = vadd.f32 %v2388, %v2401
    %2403 = vdwg.mxu0
    %2404 = vmatpush.bf16.msra.mxu0 %v2047
    %2405 = vmatpush.bf16.msra.mxu0 %v2043
    %2406 = vmatpush.bf16.msra.mxu0 %v2039
    %2407 = vmatpush.bf16.msra.mxu0 %v2035
    %2408 = vmatpush.bf16.msra.mxu0 %v2031
    %2409 = vmatpush.bf16.msra.mxu0 %v2027
    %2410 = vmatpush.bf16.msra.mxu0 %v2023
    %2411 = vmatpush.bf16.msra.mxu0 %v2019
    %2412 = vmatmul.bf16.gmra.mxu0 %v1428
    %v2413 = vpop.f32.mrf.mxu0
    %v2414 = vadd.f32 %v2400, %v2413
    %v2415 = vpop.f32.mrf.mxu0
    %v2416 = vadd.f32 %v2402, %v2415
    %2417 = vdwg.mxu0
    %2418 = vmatpush.bf16.msra.mxu0 %v2079
    %2419 = vmatpush.bf16.msra.mxu0 %v2075
    %2420 = vmatpush.bf16.msra.mxu0 %v2071
    %2421 = vmatpush.bf16.msra.mxu0 %v2067
    %2422 = vmatpush.bf16.msra.mxu0 %v2063
    %2423 = vmatpush.bf16.msra.mxu0 %v2059
    %2424 = vmatpush.bf16.msra.mxu0 %v2055
    %2425 = vmatpush.bf16.msra.mxu0 %v2051
    %2426 = vmatmul.bf16.gmra.mxu0 %v1429
    %v2427 = vpop.f32.mrf.mxu0
    %v2428 = vadd.f32 %v2414, %v2427
    %v2429 = vpop.f32.mrf.mxu0
    %v2430 = vadd.f32 %v2416, %v2429
    %2431 = vdwg.mxu0
    %v2432 = vmax.f32 %v2260, 0.0
    %v2433 = vmax.f32 %v2316, 0.0
    %v2434 = vmax.f32 %v2372, 0.0
    %v2435 = vmax.f32 %v2428, 0.0
    %v2436 = vmax.f32 %v2262, 0.0
    %v2437 = vmax.f32 %v2318, 0.0
    %v2438 = vmax.f32 %v2374, 0.0
    %v2439 = vmax.f32 %v2430, 0.0
    %v2440 = vpack.c.bf16 %v2436, %v2432
    %v2441 = vpack.c.bf16 %v2437, %v2433
    %v2442 = vpack.c.bf16 %v2438, %v2434
    %v2443 = vpack.c.bf16 %v2439, %v2435
    %v2444 = vld [vmem:[#allocation13] sm:$0xf]
    %v2445 = vld [vmem:[#allocation13 + $0x4] sm:$0xf]
    %v2446 = vld [vmem:[#allocation13 + $0x8] sm:$0xf]
    %v2447 = vld [vmem:[#allocation13 + $0xc] sm:$0xf]
    %v2448 = vld [vmem:[#allocation13 + $0x10] sm:$0xf]
    %v2449 = vld [vmem:[#allocation13 + $0x14] sm:$0xf]
    %v2450 = vld [vmem:[#allocation13 + $0x18] sm:$0xf]
    %v2451 = vld [vmem:[#allocation13 + $0x1c] sm:$0xf]
    %v2452 = vld [vmem:[#allocation13 + $0x20] sm:$0xf]
    %v2453 = vld [vmem:[#allocation13 + $0x24] sm:$0xf]
    %v2454 = vld [vmem:[#allocation13 + $0x28] sm:$0xf]
    %v2455 = vld [vmem:[#allocation13 + $0x2c] sm:$0xf]
    %v2456 = vld [vmem:[#allocation13 + $0x30] sm:$0xf]
    %v2457 = vld [vmem:[#allocation13 + $0x34] sm:$0xf]
    %v2458 = vld [vmem:[#allocation13 + $0x38] sm:$0xf]
    %v2459 = vld [vmem:[#allocation13 + $0x3c] sm:$0xf]
    %v2460 = vld [vmem:[#allocation13 + $0x40] sm:$0xf]
    %v2461 = vld [vmem:[#allocation13 + $0x44] sm:$0xf]
    %v2462 = vld [vmem:[#allocation13 + $0x48] sm:$0xf]
    %v2463 = vld [vmem:[#allocation13 + $0x4c] sm:$0xf]
    %v2464 = vld [vmem:[#allocation13 + $0x50] sm:$0xf]
    %v2465 = vld [vmem:[#allocation13 + $0x54] sm:$0xf]
    %v2466 = vld [vmem:[#allocation13 + $0x58] sm:$0xf]
    %v2467 = vld [vmem:[#allocation13 + $0x5c] sm:$0xf]
    %v2468 = vld [vmem:[#allocation13 + $0x60] sm:$0xf]
    %v2469 = vld [vmem:[#allocation13 + $0x64] sm:$0xf]
    %v2470 = vld [vmem:[#allocation13 + $0x68] sm:$0xf]
    %v2471 = vld [vmem:[#allocation13 + $0x6c] sm:$0xf]
    %v2472 = vld [vmem:[#allocation13 + $0x70] sm:$0xf]
    %v2473 = vld [vmem:[#allocation13 + $0x74] sm:$0xf]
    %v2474 = vld [vmem:[#allocation13 + $0x78] sm:$0xf]
    %v2475 = vld [vmem:[#allocation13 + $0x7c] sm:$0xf]
    %v2476 = vld [vmem:[#allocation13 + $0x80] sm:$0xf]
    %v2477 = vld [vmem:[#allocation13 + $0x84] sm:$0xf]
    %v2478 = vld [vmem:[#allocation13 + $0x88] sm:$0xf]
    %v2479 = vld [vmem:[#allocation13 + $0x8c] sm:$0xf]
    %v2480 = vld [vmem:[#allocation13 + $0x90] sm:$0xf]
    %v2481 = vld [vmem:[#allocation13 + $0x94] sm:$0xf]
    %v2482 = vld [vmem:[#allocation13 + $0x98] sm:$0xf]
    %v2483 = vld [vmem:[#allocation13 + $0x9c] sm:$0xf]
    %v2484 = vld [vmem:[#allocation13 + $0xa0] sm:$0xf]
    %v2485 = vld [vmem:[#allocation13 + $0xa4] sm:$0xf]
    %v2486 = vld [vmem:[#allocation13 + $0xa8] sm:$0xf]
    %v2487 = vld [vmem:[#allocation13 + $0xac] sm:$0xf]
    %v2488 = vld [vmem:[#allocation13 + $0xb0] sm:$0xf]
    %v2489 = vld [vmem:[#allocation13 + $0xb4] sm:$0xf]
    %v2490 = vld [vmem:[#allocation13 + $0xb8] sm:$0xf]
    %v2491 = vld [vmem:[#allocation13 + $0xbc] sm:$0xf]
    %v2492 = vld [vmem:[#allocation13 + $0xc0] sm:$0xf]
    %v2493 = vld [vmem:[#allocation13 + $0xc4] sm:$0xf]
    %v2494 = vld [vmem:[#allocation13 + $0xc8] sm:$0xf]
    %v2495 = vld [vmem:[#allocation13 + $0xcc] sm:$0xf]
    %v2496 = vld [vmem:[#allocation13 + $0xd0] sm:$0xf]
    %v2497 = vld [vmem:[#allocation13 + $0xd4] sm:$0xf]
    %v2498 = vld [vmem:[#allocation13 + $0xd8] sm:$0xf]
    %v2499 = vld [vmem:[#allocation13 + $0xdc] sm:$0xf]
    %v2500 = vld [vmem:[#allocation13 + $0xe0] sm:$0xf]
    %v2501 = vld [vmem:[#allocation13 + $0xe4] sm:$0xf]
    %v2502 = vld [vmem:[#allocation13 + $0xe8] sm:$0xf]
    %v2503 = vld [vmem:[#allocation13 + $0xec] sm:$0xf]
    %v2504 = vld [vmem:[#allocation13 + $0xf0] sm:$0xf]
    %v2505 = vld [vmem:[#allocation13 + $0xf4] sm:$0xf]
    %v2506 = vld [vmem:[#allocation13 + $0xf8] sm:$0xf]
    %v2507 = vld [vmem:[#allocation13 + $0xfc] sm:$0xf]
    %v2508 = vld [vmem:[%s8] sm:$0x1]
    %v2510 = vperm.slane %v2508, 0
    %v2576 = vunpack.c.l.b16 %v2444
    %v2577 = vunpack.c.l.b16 %v2445
    %v2578 = vunpack.c.l.b16 %v2446
    %v2579 = vunpack.c.l.b16 %v2447
    %v2580 = vunpack.c.l.b16 %v2448
    %v2581 = vunpack.c.l.b16 %v2449
    %v2582 = vunpack.c.l.b16 %v2450
    %v2583 = vunpack.c.l.b16 %v2451
    %v2584 = vunpack.c.l.b16 %v2452
    %v2585 = vunpack.c.l.b16 %v2453
    %v2586 = vunpack.c.l.b16 %v2454
    %v2587 = vunpack.c.l.b16 %v2455
    %v2588 = vunpack.c.l.b16 %v2456
    %v2589 = vunpack.c.l.b16 %v2457
    %v2590 = vunpack.c.l.b16 %v2458
    %v2591 = vunpack.c.l.b16 %v2459
    %v2592 = vunpack.c.l.b16 %v2460
    %v2593 = vunpack.c.l.b16 %v2461
    %v2594 = vunpack.c.l.b16 %v2462
    %v2595 = vunpack.c.l.b16 %v2463
    %v2596 = vunpack.c.l.b16 %v2464
    %v2597 = vunpack.c.l.b16 %v2465
    %v2598 = vunpack.c.l.b16 %v2466
    %v2599 = vunpack.c.l.b16 %v2467
    %v2600 = vunpack.c.l.b16 %v2468
    %v2601 = vunpack.c.l.b16 %v2469
    %v2602 = vunpack.c.l.b16 %v2470
    %v2603 = vunpack.c.l.b16 %v2471
    %v2604 = vunpack.c.l.b16 %v2472
    %v2605 = vunpack.c.l.b16 %v2473
    %v2606 = vunpack.c.l.b16 %v2474
    %v2607 = vunpack.c.l.b16 %v2475
    %v2608 = vunpack.c.l.b16 %v2476
    %v2609 = vunpack.c.l.b16 %v2477
    %v2610 = vunpack.c.l.b16 %v2478
    %v2611 = vunpack.c.l.b16 %v2479
    %v2612 = vunpack.c.l.b16 %v2480
    %v2613 = vunpack.c.l.b16 %v2481
    %v2614 = vunpack.c.l.b16 %v2482
    %v2615 = vunpack.c.l.b16 %v2483
    %v2616 = vunpack.c.l.b16 %v2484
    %v2617 = vunpack.c.l.b16 %v2485
    %v2618 = vunpack.c.l.b16 %v2486
    %v2619 = vunpack.c.l.b16 %v2487
    %v2620 = vunpack.c.l.b16 %v2488
    %v2621 = vunpack.c.l.b16 %v2489
    %v2622 = vunpack.c.l.b16 %v2490
    %v2623 = vunpack.c.l.b16 %v2491
    %v2624 = vunpack.c.l.b16 %v2492
    %v2625 = vunpack.c.l.b16 %v2493
    %v2626 = vunpack.c.l.b16 %v2494
    %v2627 = vunpack.c.l.b16 %v2495
    %v2628 = vunpack.c.l.b16 %v2496
    %v2629 = vunpack.c.l.b16 %v2497
    %v2630 = vunpack.c.l.b16 %v2498
    %v2631 = vunpack.c.l.b16 %v2499
    %v2632 = vunpack.c.l.b16 %v2500
    %v2633 = vunpack.c.l.b16 %v2501
    %v2634 = vunpack.c.l.b16 %v2502
    %v2635 = vunpack.c.l.b16 %v2503
    %v2636 = vunpack.c.l.b16 %v2504
    %v2637 = vunpack.c.l.b16 %v2505
    %v2638 = vunpack.c.l.b16 %v2506
    %v2639 = vunpack.c.l.b16 %v2507
    %v2640 = vpack.c.b16 %v2577, %v2576
    %v2641 = vpack.c.b16 %v2579, %v2578
    %v2642 = vpack.c.b16 %v2581, %v2580
    %v2643 = vpack.c.b16 %v2583, %v2582
    %v2644 = vpack.c.b16 %v2585, %v2584
    %v2645 = vpack.c.b16 %v2587, %v2586
    %v2646 = vpack.c.b16 %v2589, %v2588
    %v2647 = vpack.c.b16 %v2591, %v2590
    %v2648 = vpack.c.b16 %v2593, %v2592
    %v2649 = vpack.c.b16 %v2595, %v2594
    %v2650 = vpack.c.b16 %v2597, %v2596
    %v2651 = vpack.c.b16 %v2599, %v2598
    %v2652 = vpack.c.b16 %v2601, %v2600
    %v2653 = vpack.c.b16 %v2603, %v2602
    %v2654 = vpack.c.b16 %v2605, %v2604
    %v2655 = vpack.c.b16 %v2607, %v2606
    %v2656 = vpack.c.b16 %v2609, %v2608
    %v2657 = vpack.c.b16 %v2611, %v2610
    %v2658 = vpack.c.b16 %v2613, %v2612
    %v2659 = vpack.c.b16 %v2615, %v2614
    %v2660 = vpack.c.b16 %v2617, %v2616
    %v2661 = vpack.c.b16 %v2619, %v2618
    %v2662 = vpack.c.b16 %v2621, %v2620
    %v2663 = vpack.c.b16 %v2623, %v2622
    %v2664 = vpack.c.b16 %v2625, %v2624
    %v2665 = vpack.c.b16 %v2627, %v2626
    %v2666 = vpack.c.b16 %v2629, %v2628
    %v2667 = vpack.c.b16 %v2631, %v2630
    %v2668 = vpack.c.b16 %v2633, %v2632
    %v2669 = vpack.c.b16 %v2635, %v2634
    %v2670 = vpack.c.b16 %v2637, %v2636
    %v2671 = vpack.c.b16 %v2639, %v2638
    %2704 = vmatpush.bf16.msra.mxu0 %v2647
    %2705 = vmatpush.bf16.msra.mxu0 %v2646
    %2706 = vmatpush.bf16.msra.mxu0 %v2645
    %2707 = vmatpush.bf16.msra.mxu0 %v2644
    %2708 = vmatpush.bf16.msra.mxu0 %v2643
    %2709 = vmatpush.bf16.msra.mxu0 %v2642
    %2710 = vmatpush.bf16.msra.mxu0 %v2641
    %2711 = vmatpush.bf16.msra.mxu0 %v2640
    %2712 = vmatmul.bf16.gmra.mxu0 %v2440
    %v2713 = vpop.f32.mrf.mxu0
    %v2714 = vadd.f32 %v2510, %v2713
    %v2715 = vpop.f32.mrf.mxu0
    %v2716 = vadd.f32 %v2510, %v2715
    %2717 = vdwg.mxu0
    %2718 = vmatpush.bf16.msra.mxu0 %v2655
    %2719 = vmatpush.bf16.msra.mxu0 %v2654
    %2720 = vmatpush.bf16.msra.mxu0 %v2653
    %2721 = vmatpush.bf16.msra.mxu0 %v2652
    %2722 = vmatpush.bf16.msra.mxu0 %v2651
    %2723 = vmatpush.bf16.msra.mxu0 %v2650
    %2724 = vmatpush.bf16.msra.mxu0 %v2649
    %2725 = vmatpush.bf16.msra.mxu0 %v2648
    %2726 = vmatmul.bf16.gmra.mxu0 %v2441
    %v2727 = vpop.f32.mrf.mxu0
    %v2728 = vadd.f32 %v2714, %v2727
    %v2729 = vpop.f32.mrf.mxu0
    %v2730 = vadd.f32 %v2716, %v2729
    %2731 = vdwg.mxu0
    %2732 = vmatpush.bf16.msra.mxu0 %v2663
    %2733 = vmatpush.bf16.msra.mxu0 %v2662
    %2734 = vmatpush.bf16.msra.mxu0 %v2661
    %2735 = vmatpush.bf16.msra.mxu0 %v2660
    %2736 = vmatpush.bf16.msra.mxu0 %v2659
    %2737 = vmatpush.bf16.msra.mxu0 %v2658
    %2738 = vmatpush.bf16.msra.mxu0 %v2657
    %2739 = vmatpush.bf16.msra.mxu0 %v2656
    %2740 = vmatmul.bf16.gmra.mxu0 %v2442
    %v2741 = vpop.f32.mrf.mxu0
    %v2742 = vadd.f32 %v2728, %v2741
    %v2743 = vpop.f32.mrf.mxu0
    %v2744 = vadd.f32 %v2730, %v2743
    %2745 = vdwg.mxu0
    %2746 = vmatpush.bf16.msra.mxu0 %v2671
    %2747 = vmatpush.bf16.msra.mxu0 %v2670
    %2748 = vmatpush.bf16.msra.mxu0 %v2669
    %2749 = vmatpush.bf16.msra.mxu0 %v2668
    %2750 = vmatpush.bf16.msra.mxu0 %v2667
    %2751 = vmatpush.bf16.msra.mxu0 %v2666
    %2752 = vmatpush.bf16.msra.mxu0 %v2665
    %2753 = vmatpush.bf16.msra.mxu0 %v2664
    %2754 = vmatmul.bf16.gmra.mxu0 %v2443
    %v2755 = vpop.f32.mrf.mxu0
    %v2756 = vadd.f32 %v2742, %v2755
    %v2757 = vpop.f32.mrf.mxu0
    %v2758 = vadd.f32 %v2744, %v2757
    %2759 = vdwg.mxu0
    %2760 = vst [vmem:[#allocation14] sm:$0xff] %v2756
    %2761 = vst [vmem:[#allocation14 + $0x8] sm:$0xff] %v2758
    // Predicated region
    $region66: #{tpu_custom_call.1} parent=1 // pred_check
      _
    $region67: #{tpu_custom_call.1} parent=1 // pred_check_branch
      %2763 = sbr.rel (0) target = $region69
    $region68: #{tpu_custom_call.1} parent=1 // pred_region
      %2765 = vsyncadd [#allocation4], 0
      %s2766 = sshll.u32 [#allocation14], 4
      %s2767 = int_to_ptr.vmem [resolvable:$true] %s2766
      %s2768 = sshll.u32 %s9, 4
      %s2769 = int_to_ptr.hbm [resolvable:$true] %s2768
      %2774 = dma.vmem_to_hbm [thread:$0]  %s2767, 256, %s2769, [#allocation4], 128, 128, 8
    $region69: #{tpu_custom_call.1} parent=1 // pred_fallthru
      _
    // Predicated region
    $region70: #{tpu_custom_call.1} parent=1 // pred_check
      _
    $region71: #{tpu_custom_call.1} parent=1 // pred_check_branch
      %2776 = sbr.rel (0) target = $region73
    $region72: #{tpu_custom_call.1} parent=1 // pred_region
      %2778 = dma.done [#allocation4], 256
    $region73: #{tpu_custom_call.1} parent=1 // pred_fallthru
      _
    %2779 = vsyncpa [#allocation3], 1
    %2780 = vsyncpa [#allocation6], 1
    %2781 = vsyncpa [#allocation9], 1
    %2782 = vsyncpa [#allocation12], 1
    %2783 = vsyncpa [#allocation4], 1

// kernel: tpu_custom_call.1
$region0: #{tpu_custom_call.1}
  #allocation0 [shape = 'u32[]', space=smem, size = 0x4, offset = 0x4, fixed_abs, tag = 'smem constant byte address 0x4 - core index']
  #allocation1 [shape = 'u32[72,128]{1,0:T(1,128)}', space=vmem, size = 0x9000, scoped, tag = 'internal scratch']
  %s0 = inlined_call_operand.hbm [shape: bf16[16,128], index: 0, kind: input, shape index: {}]
  %s1 = inlined_call_operand.hbm [shape: bf16[128,512], index: 1, kind: input, shape index: {}]
  %s2 = inlined_call_operand.hbm [shape: f32[1,512], index: 2, kind: input, shape index: {}]
  %s3 = inlined_call_operand.hbm [shape: bf16[512,512], index: 3, kind: input, shape index: {}]
  %s4 = inlined_call_operand.hbm [shape: f32[1,512], index: 4, kind: input, shape index: {}]
  %s5 = inlined_call_operand.hbm [shape: bf16[512,512], index: 5, kind: input, shape index: {}]
  %s6 = inlined_call_operand.vmem [shape: f32[1,512], index: 6, kind: input, shape index: {}]
  %s7 = inlined_call_operand.hbm [shape: bf16[512,128], index: 7, kind: input, shape index: {}]
  %s8 = inlined_call_operand.vmem [shape: f32[1,128], index: 8, kind: input, shape index: {}]
  %s9 = inlined_call_operand.hbm [shape: f32[16,128], index: 9, kind: output, shape index: {}]
  %s10 = sld [smem:[#allocation0]]
  $region74: #{tpu_custom_call.1} parent=0
    _
  %s12 = ssub.s32 1, %s10
  %s13 = scalar_select 0, %s12, %s10
  $region1: #{tpu_custom_call.1} parent=0
    #allocation2 [shape = 'u8[4096]{0}', space=vmem, size = 0x1000, scoped, tag = 'input window, operand 0, single buffered']
    #allocation3 [shape = 's32[1]{0}', space=sflag, size = 0x4, scoped, tag = 'scoped memory for tpu_custom_call.1']
    #allocation4 [shape = 's32[1]{0}', space=sflag, size = 0x4, scoped, tag = 'scoped memory for tpu_custom_call.1']
    #allocation5 [shape = 'u8[131072]{0}', space=vmem, size = 0x20000, scoped, tag = 'input window, operand 1, single buffered']
    #allocation6 [shape = 's32[1]{0}', space=sflag, size = 0x4, scoped, tag = 'scoped memory for tpu_custom_call.1']
    #allocation7 [shape = 'u8[2048]{0}', space=vmem, size = 0x800, scoped, tag = 'input window, operand 2, single buffered']
    #allocation8 [shape = 'u8[524288]{0}', space=vmem, size = 0x80000, scoped, tag = 'input window, operand 3, single buffered']
    #allocation9 [shape = 's32[1]{0}', space=sflag, size = 0x4, scoped, tag = 'scoped memory for tpu_custom_call.1']
    #allocation10 [shape = 'u8[2048]{0}', space=vmem, size = 0x800, scoped, tag = 'input window, operand 4, single buffered']
    #allocation11 [shape = 'u8[524288]{0}', space=vmem, size = 0x80000, scoped, tag = 'input window, operand 5, single buffered']
    #allocation12 [shape = 's32[1]{0}', space=sflag, size = 0x4, scoped, tag = 'scoped memory for tpu_custom_call.1']
    #allocation13 [shape = 'u8[131072]{0}', space=vmem, size = 0x20000, scoped, tag = 'input window, operand 7, single buffered']
    #allocation14 [shape = 'u8[8192]{0}', space=vmem, size = 0x2000, scoped, tag = 'output window, operand 0, single buffered']
    %14 = vsyncpa [#allocation3], 0
    %15 = vsyncpa [#allocation6], 0
    %16 = vsyncpa [#allocation9], 0
    %17 = vsyncpa [#allocation12], 0
    %18 = vsyncpa [#allocation4], 0
    // Predicated region
    $region2: #{tpu_custom_call.1} parent=1 // pred_check
      _
    $region3: #{tpu_custom_call.1} parent=1 // pred_check_branch
      %20 = sbr.rel (0) target = $region5
    $region4: #{tpu_custom_call.1} parent=1 // pred_region
      %22 = vsyncadd [#allocation3], 0
      %s23 = sshll.u32 %s0, 4
      %s24 = int_to_ptr.hbm [resolvable:$true] %s23
      %s25 = sshll.u32 [#allocation2], 4
      %s26 = int_to_ptr.vmem [resolvable:$true] %s25
      %31 = dma.hbm_to_vmem [thread:$0]  %s24, 128, %s26, [#allocation3], 64, 64, 4
    $region5: #{tpu_custom_call.1} parent=1 // pred_fallthru
      _
    // Predicated region
    $region6: #{tpu_custom_call.1} parent=1 // pred_check
      _
    $region7: #{tpu_custom_call.1} parent=1 // pred_check_branch
      %33 = sbr.rel (0) target = $region9
    $region8: #{tpu_custom_call.1} parent=1 // pred_region
      %35 = vsyncadd [#allocation6], 0
      %s36 = sshll.u32 %s1, 4
      %s37 = int_to_ptr.hbm [resolvable:$true] %s36
      %s38 = sshll.u32 [#allocation5], 4
      %s39 = int_to_ptr.vmem [resolvable:$true] %s38
      %44 = dma.hbm_to_vmem [thread:$0]  %s37, 4096, %s39, [#allocation6], 256, 256, 16
    $region9: #{tpu_custom_call.1} parent=1 // pred_fallthru
      _
    // Predicated region
    $region10: #{tpu_custom_call.1} parent=1 // pred_check
      _
    $region11: #{tpu_custom_call.1} parent=1 // pred_check_branch
      %46 = sbr.rel (0) target = $region13
    $region12: #{tpu_custom_call.1} parent=1 // pred_region
      %48 = vsyncadd [#allocation6], 0
      %s50 = sshll.u32 %s2, 4
      %s51 = int_to_ptr.hbm [resolvable:$true] %s50
      %s52 = sshll.u32 [#allocation7], 4
      %s53 = int_to_ptr.vmem [resolvable:$true] %s52
      %55 = dma.hbm_to_vmem [thread:$0]  %s51, 64, %s53, [#allocation6]
    $region13: #{tpu_custom_call.1} parent=1 // pred_fallthru
      _
    // Predicated region
    $region14: #{tpu_custom_call.1} parent=1 // pred_check
      _
    $region15: #{tpu_custom_call.1} parent=1 // pred_check_branch
      %57 = sbr.rel (0) target = $region17
    $region16: #{tpu_custom_call.1} parent=1 // pred_region
      %59 = vsyncadd [#allocation9], 0
      %s60 = sshll.u32 %s3, 4
      %s61 = int_to_ptr.hbm [resolvable:$true] %s60
      %s62 = sshll.u32 [#allocation8], 4
      %s63 = int_to_ptr.vmem [resolvable:$true] %s62
      %68 = dma.hbm_to_vmem [thread:$0]  %s61, 16384, %s63, [#allocation9], 256, 256, 16
    $region17: #{tpu_custom_call.1} parent=1 // pred_fallthru
      _
    // Predicated region
    $region18: #{tpu_custom_call.1} parent=1 // pred_check
      _
    $region19: #{tpu_custom_call.1} parent=1 // pred_check_branch
      %70 = sbr.rel (0) target = $region21
    $region20: #{tpu_custom_call.1} parent=1 // pred_region
      %72 = vsyncadd [#allocation9], 0
      %s74 = sshll.u32 %s4, 4
      %s75 = int_to_ptr.hbm [resolvable:$true] %s74
      %s76 = sshll.u32 [#allocation10], 4
      %s77 = int_to_ptr.vmem [resolvable:$true] %s76
      %79 = dma.hbm_to_vmem [thread:$0]  %s75, 64, %s77, [#allocation9]
    $region21: #{tpu_custom_call.1} parent=1 // pred_fallthru
      _
    // Predicated region
    $region22: #{tpu_custom_call.1} parent=1 // pred_check
      _
    $region23: #{tpu_custom_call.1} parent=1 // pred_check_branch
      %81 = sbr.rel (0) target = $region25
    $region24: #{tpu_custom_call.1} parent=1 // pred_region
      %83 = vsyncadd [#allocation12], 0
      %s84 = sshll.u32 %s5, 4
      %s85 = int_to_ptr.hbm [resolvable:$true] %s84
      %s86 = sshll.u32 [#allocation11], 4
      %s87 = int_to_ptr.vmem [resolvable:$true] %s86
      %92 = dma.hbm_to_vmem [thread:$0]  %s85, 16384, %s87, [#allocation12], 256, 256, 16
    $region25: #{tpu_custom_call.1} parent=1 // pred_fallthru
      _
    // Predicated region
    $region26: #{tpu_custom_call.1} parent=1 // pred_check
      _
    $region27: #{tpu_custom_call.1} parent=1 // pred_check_branch
      %94 = sbr.rel (0) target = $region29
    $region28: #{tpu_custom_call.1} parent=1 // pred_region
      _
    $region29: #{tpu_custom_call.1} parent=1 // pred_fallthru
      _
    // Predicated region
    $region30: #{tpu_custom_call.1} parent=1 // pred_check
      _
    $region31: #{tpu_custom_call.1} parent=1 // pred_check_branch
      %96 = sbr.rel (0) target = $region33
    $region32: #{tpu_custom_call.1} parent=1 // pred_region
      %98 = vsyncadd [#allocation12], 0
      %s99 = sshll.u32 %s7, 4
      %s100 = int_to_ptr.hbm [resolvable:$true] %s99
      %s101 = sshll.u32 [#allocation13], 4
      %s102 = int_to_ptr.vmem [resolvable:$true] %s101
      %107 = dma.hbm_to_vmem [thread:$0]  %s100, 4096, %s102, [#allocation12], 64, 64, 4
    $region33: #{tpu_custom_call.1} parent=1 // pred_fallthru
      _
    // Predicated region
    $region34: #{tpu_custom_call.1} parent=1 // pred_check
      _
    $region35: #{tpu_custom_call.1} parent=1 // pred_check_branch
      %109 = sbr.rel (0) target = $region37
    $region36: #{tpu_custom_call.1} parent=1 // pred_region
      _
    $region37: #{tpu_custom_call.1} parent=1 // pred_fallthru
      _
    // Predicated region
    $region38: #{tpu_custom_call.1} parent=1 // pred_check
      _
    $region39: #{tpu_custom_call.1} parent=1 // pred_check_branch
      %111 = sbr.rel (0) target = $region41
    $region40: #{tpu_custom_call.1} parent=1 // pred_region
      %113 = dma.done [#allocation3], 128
    $region41: #{tpu_custom_call.1} parent=1 // pred_fallthru
      _
    // Predicated region
    $region42: #{tpu_custom_call.1} parent=1 // pred_check
      _
    $region43: #{tpu_custom_call.1} parent=1 // pred_check_branch
      %115 = sbr.rel (0) target = $region45
    $region44: #{tpu_custom_call.1} parent=1 // pred_region
      %117 = dma.done [#allocation6], 4096
    $region45: #{tpu_custom_call.1} parent=1 // pred_fallthru
      _
    // Predicated region
    $region46: #{tpu_custom_call.1} parent=1 // pred_check
      _
    $region47: #{tpu_custom_call.1} parent=1 // pred_check_branch
      %119 = sbr.rel (0) target = $region49
    $region48: #{tpu_custom_call.1} parent=1 // pred_region
      %121 = dma.done [#allocation6], 64
    $region49: #{tpu_custom_call.1} parent=1 // pred_fallthru
      _
    // Predicated region
    $region50: #{tpu_custom_call.1} parent=1 // pred_check
      _
    $region51: #{tpu_custom_call.1} parent=1 // pred_check_branch
      %123 = sbr.rel (0) target = $region53
    $region52: #{tpu_custom_call.1} parent=1 // pred_region
      %125 = dma.done [#allocation9], 16384
    $region53: #{tpu_custom_call.1} parent=1 // pred_fallthru
      _
    // Predicated region
    $region54: #{tpu_custom_call.1} parent=1 // pred_check
      _
    $region55: #{tpu_custom_call.1} parent=1 // pred_check_branch
      %127 = sbr.rel (0) target = $region57
    $region56: #{tpu_custom_call.1} parent=1 // pred_region
      %129 = dma.done [#allocation9], 64
    $region57: #{tpu_custom_call.1} parent=1 // pred_fallthru
      _
    // Predicated region
    $region58: #{tpu_custom_call.1} parent=1 // pred_check
      _
    $region59: #{tpu_custom_call.1} parent=1 // pred_check_branch
      %131 = sbr.rel (0) target = $region61
    $region60: #{tpu_custom_call.1} parent=1 // pred_region
      %133 = dma.done [#allocation12], 16384
    $region61: #{tpu_custom_call.1} parent=1 // pred_fallthru
      _
    // Predicated region
    $region62: #{tpu_custom_call.1} parent=1 // pred_check
      _
    $region63: #{tpu_custom_call.1} parent=1 // pred_check_branch
      %135 = sbr.rel (0) target = $region65
    $region64: #{tpu_custom_call.1} parent=1 // pred_region
      %137 = dma.done [#allocation12], 4096
    $region65: #{tpu_custom_call.1} parent=1 // pred_fallthru
      _
    %v138 = vld [vmem:[#allocation2] sm:$0xf]
    %v139 = vld [vmem:[#allocation2 + $0x4] sm:$0xf]
    %v140 = vld [vmem:[#allocation5] sm:$0xff]
    %v141 = vld [vmem:[#allocation5 + $0x8] sm:$0xff]
    %v142 = vld [vmem:[#allocation5 + $0x10] sm:$0xff]
    %v143 = vld [vmem:[#allocation5 + $0x18] sm:$0xff]
    %v144 = vld [vmem:[#allocation5 + $0x20] sm:$0xff]
    %v145 = vld [vmem:[#allocation5 + $0x28] sm:$0xff]
    %v146 = vld [vmem:[#allocation5 + $0x30] sm:$0xff]
    %v147 = vld [vmem:[#allocation5 + $0x38] sm:$0xff]
    %v148 = vld [vmem:[#allocation5 + $0x40] sm:$0xff]
    %v149 = vld [vmem:[#allocation5 + $0x48] sm:$0xff]
    %v150 = vld [vmem:[#allocation5 + $0x50] sm:$0xff]
    %v151 = vld [vmem:[#allocation5 + $0x58] sm:$0xff]
    %v152 = vld [vmem:[#allocation5 + $0x60] sm:$0xff]
    %v153 = vld [vmem:[#allocation5 + $0x68] sm:$0xff]
    %v154 = vld [vmem:[#allocation5 + $0x70] sm:$0xff]
    %v155 = vld [vmem:[#allocation5 + $0x78] sm:$0xff]
    %v156 = vld [vmem:[#allocation5 + $0x80] sm:$0xff]
    %v157 = vld [vmem:[#allocation5 + $0x88] sm:$0xff]
    %v158 = vld [vmem:[#allocation5 + $0x90] sm:$0xff]
    %v159 = vld [vmem:[#allocation5 + $0x98] sm:$0xff]
    %v160 = vld [vmem:[#allocation5 + $0xa0] sm:$0xff]
    %v161 = vld [vmem:[#allocation5 + $0xa8] sm:$0xff]
    %v162 = vld [vmem:[#allocation5 + $0xb0] sm:$0xff]
    %v163 = vld [vmem:[#allocation5 + $0xb8] sm:$0xff]
    %v164 = vld [vmem:[#allocation5 + $0xc0] sm:$0xff]
    %v165 = vld [vmem:[#allocation5 + $0xc8] sm:$0xff]
    %v166 = vld [vmem:[#allocation5 + $0xd0] sm:$0xff]
    %v167 = vld [vmem:[#allocation5 + $0xd8] sm:$0xff]
    %v168 = vld [vmem:[#allocation5 + $0xe0] sm:$0xff]
    %v169 = vld [vmem:[#allocation5 + $0xe8] sm:$0xff]
    %v170 = vld [vmem:[#allocation5 + $0xf0] sm:$0xff]
    %v171 = vld [vmem:[#allocation5 + $0xf8] sm:$0xff]
    %v172 = vld [vmem:[#allocation7] sm:$0xf]
    %v174 = vperm.slane %v172, 0
    %v175 = vperm.slane %v172, 1
    %v176 = vperm.slane %v172, 2
    %v177 = vperm.slane %v172, 3
    %v184 = vunpack.c.l.b16 %v138
    %v185 = vunpack.c.l.b16 %v139
    %v186 = vpack.c.b16 %v185, %v184
    %v220 = vunpack.c.l.b16 %v140
    %v221 = vunpack.c.h.b16 %v140
    %v222 = vunpack.c.l.b16 %v141
    %v223 = vunpack.c.h.b16 %v141
    %v224 = vunpack.c.l.b16 %v142
    %v225 = vunpack.c.h.b16 %v142
    %v226 = vunpack.c.l.b16 %v143
    %v227 = vunpack.c.h.b16 %v143
    %v228 = vunpack.c.l.b16 %v144
    %v229 = vunpack.c.h.b16 %v144
    %v230 = vunpack.c.l.b16 %v145
    %v231 = vunpack.c.h.b16 %v145
    %v232 = vunpack.c.l.b16 %v146
    %v233 = vunpack.c.h.b16 %v146
    %v234 = vunpack.c.l.b16 %v147
    %v235 = vunpack.c.h.b16 %v147
    %v236 = vunpack.c.l.b16 %v148
    %v237 = vunpack.c.h.b16 %v148
    %v238 = vunpack.c.l.b16 %v149
    %v239 = vunpack.c.h.b16 %v149
    %v240 = vunpack.c.l.b16 %v150
    %v241 = vunpack.c.h.b16 %v150
    %v242 = vunpack.c.l.b16 %v151
    %v243 = vunpack.c.h.b16 %v151
    %v244 = vunpack.c.l.b16 %v152
    %v245 = vunpack.c.h.b16 %v152
    %v246 = vunpack.c.l.b16 %v153
    %v247 = vunpack.c.h.b16 %v153
    %v248 = vunpack.c.l.b16 %v154
    %v249 = vunpack.c.h.b16 %v154
    %v250 = vunpack.c.l.b16 %v155
    %v251 = vunpack.c.h.b16 %v155
    %v252 = vunpack.c.l.b16 %v156
    %v253 = vunpack.c.h.b16 %v156
    %v254 = vunpack.c.l.b16 %v157
    %v255 = vunpack.c.h.b16 %v157
    %v256 = vunpack.c.l.b16 %v158
    %v257 = vunpack.c.h.b16 %v158
    %v258 = vunpack.c.l.b16 %v159
    %v259 = vunpack.c.h.b16 %v159
    %v260 = vunpack.c.l.b16 %v160
    %v261 = vunpack.c.h.b16 %v160
    %v262 = vunpack.c.l.b16 %v161
    %v263 = vunpack.c.h.b16 %v161
    %v264 = vunpack.c.l.b16 %v162
    %v265 = vunpack.c.h.b16 %v162
    %v266 = vunpack.c.l.b16 %v163
    %v267 = vunpack.c.h.b16 %v163
    %v268 = vunpack.c.l.b16 %v164
    %v269 = vunpack.c.h.b16 %v164
    %v270 = vunpack.c.l.b16 %v165
    %v271 = vunpack.c.h.b16 %v165
    %v272 = vunpack.c.l.b16 %v166
    %v273 = vunpack.c.h.b16 %v166
    %v274 = vunpack.c.l.b16 %v167
    %v275 = vunpack.c.h.b16 %v167
    %v276 = vunpack.c.l.b16 %v168
    %v277 = vunpack.c.h.b16 %v168
    %v278 = vunpack.c.l.b16 %v169
    %v279 = vunpack.c.h.b16 %v169
    %v280 = vunpack.c.l.b16 %v170
    %v281 = vunpack.c.h.b16 %v170
    %v282 = vunpack.c.l.b16 %v171
    %v283 = vunpack.c.h.b16 %v171
    %v284 = vpack.c.b16 %v224, %v220
    %v285 = vpack.c.b16 %v225, %v221
    %v286 = vpack.c.b16 %v226, %v222
    %v287 = vpack.c.b16 %v227, %v223
    %v288 = vpack.c.b16 %v232, %v228
    %v289 = vpack.c.b16 %v233, %v229
    %v290 = vpack.c.b16 %v234, %v230
    %v291 = vpack.c.b16 %v235, %v231
    %v292 = vpack.c.b16 %v240, %v236
    %v293 = vpack.c.b16 %v241, %v237
    %v294 = vpack.c.b16 %v242, %v238
    %v295 = vpack.c.b16 %v243, %v239
    %v296 = vpack.c.b16 %v248, %v244
    %v297 = vpack.c.b16 %v249, %v245
    %v298 = vpack.c.b16 %v250, %v246
    %v299 = vpack.c.b16 %v251, %v247
    %v300 = vpack.c.b16 %v256, %v252
    %v301 = vpack.c.b16 %v257, %v253
    %v302 = vpack.c.b16 %v258, %v254
    %v303 = vpack.c.b16 %v259, %v255
    %v304 = vpack.c.b16 %v264, %v260
    %v305 = vpack.c.b16 %v265, %v261
    %v306 = vpack.c.b16 %v266, %v262
    %v307 = vpack.c.b16 %v267, %v263
    %v308 = vpack.c.b16 %v272, %v268
    %v309 = vpack.c.b16 %v273, %v269
    %v310 = vpack.c.b16 %v274, %v270
    %v311 = vpack.c.b16 %v275, %v271
    %v312 = vpack.c.b16 %v280, %v276
    %v313 = vpack.c.b16 %v281, %v277
    %v314 = vpack.c.b16 %v282, %v278
    %v315 = vpack.c.b16 %v283, %v279
    %348 = vmatpush.bf16.msra.mxu0 %v312
    %349 = vmatpush.bf16.msra.mxu0 %v308
    %350 = vmatpush.bf16.msra.mxu0 %v304
    %351 = vmatpush.bf16.msra.mxu0 %v300
    %352 = vmatpush.bf16.msra.mxu0 %v296
    %353 = vmatpush.bf16.msra.mxu0 %v292
    %354 = vmatpush.bf16.msra.mxu0 %v288
    %355 = vmatpush.bf16.msra.mxu0 %v284
    %356 = vmatmul.bf16.gmra.mxu0 %v186
    %v357 = vpop.f32.mrf.mxu0
    %v358 = vadd.f32 %v174, %v357
    %v359 = vpop.f32.mrf.mxu0
    %v360 = vadd.f32 %v174, %v359
    %361 = vdwg.mxu0
    %362 = vmatpush.bf16.msra.mxu0 %v313
    %363 = vmatpush.bf16.msra.mxu0 %v309
    %364 = vmatpush.bf16.msra.mxu0 %v305
    %365 = vmatpush.bf16.msra.mxu0 %v301
    %366 = vmatpush.bf16.msra.mxu0 %v297
    %367 = vmatpush.bf16.msra.mxu0 %v293
    %368 = vmatpush.bf16.msra.mxu0 %v289
    %369 = vmatpush.bf16.msra.mxu0 %v285
    %370 = vmatmul.bf16.gmra.mxu0 %v186
    %v371 = vpop.f32.mrf.mxu0
    %v372 = vadd.f32 %v175, %v371
    %v373 = vpop.f32.mrf.mxu0
    %v374 = vadd.f32 %v175, %v373
    %375 = vdwg.mxu0
    %376 = vmatpush.bf16.msra.mxu0 %v314
    %377 = vmatpush.bf16.msra.mxu0 %v310
    %378 = vmatpush.bf16.msra.mxu0 %v306
    %379 = vmatpush.bf16.msra.mxu0 %v302
    %380 = vmatpush.bf16.msra.mxu0 %v298
    %381 = vmatpush.bf16.msra.mxu0 %v294
    %382 = vmatpush.bf16.msra.mxu0 %v290
    %383 = vmatpush.bf16.msra.mxu0 %v286
    %384 = vmatmul.bf16.gmra.mxu0 %v186
    %v385 = vpop.f32.mrf.mxu0
    %v386 = vadd.f32 %v176, %v385
    %v387 = vpop.f32.mrf.mxu0
    %v388 = vadd.f32 %v176, %v387
    %389 = vdwg.mxu0
    %390 = vmatpush.bf16.msra.mxu0 %v315
    %391 = vmatpush.bf16.msra.mxu0 %v311
    %392 = vmatpush.bf16.msra.mxu0 %v307
    %393 = vmatpush.bf16.msra.mxu0 %v303
    %394 = vmatpush.bf16.msra.mxu0 %v299
    %395 = vmatpush.bf16.msra.mxu0 %v295
    %396 = vmatpush.bf16.msra.mxu0 %v291
    %397 = vmatpush.bf16.msra.mxu0 %v287
    %398 = vmatmul.bf16.gmra.mxu0 %v186
    %v399 = vpop.f32.mrf.mxu0
    %v400 = vadd.f32 %v177, %v399
    %v401 = vpop.f32.mrf.mxu0
    %v402 = vadd.f32 %v177, %v401
    %403 = vdwg.mxu0
    %v404 = vmax.f32 %v358, 0.0
    %v405 = vmax.f32 %v372, 0.0
    %v406 = vmax.f32 %v386, 0.0
    %v407 = vmax.f32 %v400, 0.0
    %v408 = vmax.f32 %v360, 0.0
    %v409 = vmax.f32 %v374, 0.0
    %v410 = vmax.f32 %v388, 0.0
    %v411 = vmax.f32 %v402, 0.0
    %v412 = vpack.c.bf16 %v408, %v404
    %v413 = vpack.c.bf16 %v409, %v405
    %v414 = vpack.c.bf16 %v410, %v406
    %v415 = vpack.c.bf16 %v411, %v407
    %v416 = vld [vmem:[#allocation8] sm:$0xff]
    %v417 = vld [vmem:[#allocation8 + $0x8] sm:$0xff]
    %v418 = vld [vmem:[#allocation8 + $0x10] sm:$0xff]
    %v419 = vld [vmem:[#allocation8 + $0x18] sm:$0xff]
    %v420 = vld [vmem:[#allocation8 + $0x20] sm:$0xff]
    %v421 = vld [vmem:[#allocation8 + $0x28] sm:$0xff]
    %v422 = vld [vmem:[#allocation8 + $0x30] sm:$0xff]
    %v423 = vld [vmem:[#allocation8 + $0x38] sm:$0xff]
    %v424 = vld [vmem:[#allocation8 + $0x40] sm:$0xff]
    %v425 = vld [vmem:[#allocation8 + $0x48] sm:$0xff]
    %v426 = vld [vmem:[#allocation8 + $0x50] sm:$0xff]
    %v427 = vld [vmem:[#allocation8 + $0x58] sm:$0xff]
    %v428 = vld [vmem:[#allocation8 + $0x60] sm:$0xff]
    %v429 = vld [vmem:[#allocation8 + $0x68] sm:$0xff]
    %v430 = vld [vmem:[#allocation8 + $0x70] sm:$0xff]
    %v431 = vld [vmem:[#allocation8 + $0x78] sm:$0xff]
    %v432 = vld [vmem:[#allocation8 + $0x80] sm:$0xff]
    %v433 = vld [vmem:[#allocation8 + $0x88] sm:$0xff]
    %v434 = vld [vmem:[#allocation8 + $0x90] sm:$0xff]
    %v435 = vld [vmem:[#allocation8 + $0x98] sm:$0xff]
    %v436 = vld [vmem:[#allocation8 + $0xa0] sm:$0xff]
    %v437 = vld [vmem:[#allocation8 + $0xa8] sm:$0xff]
    %v438 = vld [vmem:[#allocation8 + $0xb0] sm:$0xff]
    %v439 = vld [vmem:[#allocation8 + $0xb8] sm:$0xff]
    %v440 = vld [vmem:[#allocation8 + $0xc0] sm:$0xff]
    %v441 = vld [vmem:[#allocation8 + $0xc8] sm:$0xff]
    %v442 = vld [vmem:[#allocation8 + $0xd0] sm:$0xff]
    %v443 = vld [vmem:[#allocation8 + $0xd8] sm:$0xff]
    %v444 = vld [vmem:[#allocation8 + $0xe0] sm:$0xff]
    %v445 = vld [vmem:[#allocation8 + $0xe8] sm:$0xff]
    %v446 = vld [vmem:[#allocation8 + $0xf0] sm:$0xff]
    %v447 = vld [vmem:[#allocation8 + $0xf8] sm:$0xff]
    %v448 = vld [vmem:[#allocation8 + $0x100] sm:$0xff]
    %v449 = vld [vmem:[#allocation8 + $0x108] sm:$0xff]
    %v450 = vld [vmem:[#allocation8 + $0x110] sm:$0xff]
    %v451 = vld [vmem:[#allocation8 + $0x118] sm:$0xff]
    %v452 = vld [vmem:[#allocation8 + $0x120] sm:$0xff]
    %v453 = vld [vmem:[#allocation8 + $0x128] sm:$0xff]
    %v454 = vld [vmem:[#allocation8 + $0x130] sm:$0xff]
    %v455 = vld [vmem:[#allocation8 + $0x138] sm:$0xff]
    %v456 = vld [vmem:[#allocation8 + $0x140] sm:$0xff]
    %v457 = vld [vmem:[#allocation8 + $0x148] sm:$0xff]
    %v458 = vld [vmem:[#allocation8 + $0x150] sm:$0xff]
    %v459 = vld [vmem:[#allocation8 + $0x158] sm:$0xff]
    %v460 = vld [vmem:[#allocation8 + $0x160] sm:$0xff]
    %v461 = vld [vmem:[#allocation8 + $0x168] sm:$0xff]
    %v462 = vld [vmem:[#allocation8 + $0x170] sm:$0xff]
    %v463 = vld [vmem:[#allocation8 + $0x178] sm:$0xff]
    %v464 = vld [vmem:[#allocation8 + $0x180] sm:$0xff]
    %v465 = vld [vmem:[#allocation8 + $0x188] sm:$0xff]
    %v466 = vld [vmem:[#allocation8 + $0x190] sm:$0xff]
    %v467 = vld [vmem:[#allocation8 + $0x198] sm:$0xff]
    %v468 = vld [vmem:[#allocation8 + $0x1a0] sm:$0xff]
    %v469 = vld [vmem:[#allocation8 + $0x1a8] sm:$0xff]
    %v470 = vld [vmem:[#allocation8 + $0x1b0] sm:$0xff]
    %v471 = vld [vmem:[#allocation8 + $0x1b8] sm:$0xff]
    %v472 = vld [vmem:[#allocation8 + $0x1c0] sm:$0xff]
    %v473 = vld [vmem:[#allocation8 + $0x1c8] sm:$0xff]
    %v474 = vld [vmem:[#allocation8 + $0x1d0] sm:$0xff]
    %v475 = vld [vmem:[#allocation8 + $0x1d8] sm:$0xff]
    %v476 = vld [vmem:[#allocation8 + $0x1e0] sm:$0xff]
    %v477 = vld [vmem:[#allocation8 + $0x1e8] sm:$0xff]
    %v478 = vld [vmem:[#allocation8 + $0x1f0] sm:$0xff]
    %v479 = vld [vmem:[#allocation8 + $0x1f8] sm:$0xff]
    %v480 = vld [vmem:[#allocation8 + $0x200] sm:$0xff]
    %v481 = vld [vmem:[#allocation8 + $0x208] sm:$0xff]
    %v482 = vld [vmem:[#allocation8 + $0x210] sm:$0xff]
    %v483 = vld [vmem:[#allocation8 + $0x218] sm:$0xff]
    %v484 = vld [vmem:[#allocation8 + $0x220] sm:$0xff]
    %v485 = vld [vmem:[#allocation8 + $0x228] sm:$0xff]
    %v486 = vld [vmem:[#allocation8 + $0x230] sm:$0xff]
    %v487 = vld [vmem:[#allocation8 + $0x238] sm:$0xff]
    %v488 = vld [vmem:[#allocation8 + $0x240] sm:$0xff]
    %v489 = vld [vmem:[#allocation8 + $0x248] sm:$0xff]
    %v490 = vld [vmem:[#allocation8 + $0x250] sm:$0xff]
    %v491 = vld [vmem:[#allocation8 + $0x258] sm:$0xff]
    %v492 = vld [vmem:[#allocation8 + $0x260] sm:$0xff]
    %v493 = vld [vmem:[#allocation8 + $0x268] sm:$0xff]
    %v494 = vld [vmem:[#allocation8 + $0x270] sm:$0xff]
    %v495 = vld [vmem:[#allocation8 + $0x278] sm:$0xff]
    %v496 = vld [vmem:[#allocation8 + $0x280] sm:$0xff]
    %v497 = vld [vmem:[#allocation8 + $0x288] sm:$0xff]
    %v498 = vld [vmem:[#allocation8 + $0x290] sm:$0xff]
    %v499 = vld [vmem:[#allocation8 + $0x298] sm:$0xff]
    %v500 = vld [vmem:[#allocation8 + $0x2a0] sm:$0xff]
    %v501 = vld [vmem:[#allocation8 + $0x2a8] sm:$0xff]
    %v502 = vld [vmem:[#allocation8 + $0x2b0] sm:$0xff]
    %v503 = vld [vmem:[#allocation8 + $0x2b8] sm:$0xff]
    %v504 = vld [vmem:[#allocation8 + $0x2c0] sm:$0xff]
    %v505 = vld [vmem:[#allocation8 + $0x2c8] sm:$0xff]
    %v506 = vld [vmem:[#allocation8 + $0x2d0] sm:$0xff]
    %v507 = vld [vmem:[#allocation8 + $0x2d8] sm:$0xff]
    %v508 = vld [vmem:[#allocation8 + $0x2e0] sm:$0xff]
    %v509 = vld [vmem:[#allocation8 + $0x2e8] sm:$0xff]
    %v510 = vld [vmem:[#allocation8 + $0x2f0] sm:$0xff]
    %v511 = vld [vmem:[#allocation8 + $0x2f8] sm:$0xff]
    %v512 = vld [vmem:[#allocation8 + $0x300] sm:$0xff]
    %v513 = vld [vmem:[#allocation8 + $0x308] sm:$0xff]
    %v514 = vld [vmem:[#allocation8 + $0x310] sm:$0xff]
    %v515 = vld [vmem:[#allocation8 + $0x318] sm:$0xff]
    %v516 = vld [vmem:[#allocation8 + $0x320] sm:$0xff]
    %v517 = vld [vmem:[#allocation8 + $0x328] sm:$0xff]
    %v518 = vld [vmem:[#allocation8 + $0x330] sm:$0xff]
    %v519 = vld [vmem:[#allocation8 + $0x338] sm:$0xff]
    %v520 = vld [vmem:[#allocation8 + $0x340] sm:$0xff]
    %v521 = vld [vmem:[#allocation8 + $0x348] sm:$0xff]
    %v522 = vld [vmem:[#allocation8 + $0x350] sm:$0xff]
    %v523 = vld [vmem:[#allocation8 + $0x358] sm:$0xff]
    %v524 = vld [vmem:[#allocation8 + $0x360] sm:$0xff]
    %v525 = vld [vmem:[#allocation8 + $0x368] sm:$0xff]
    %v526 = vld [vmem:[#allocation8 + $0x370] sm:$0xff]
    %v527 = vld [vmem:[#allocation8 + $0x378] sm:$0xff]
    %v528 = vld [vmem:[#allocation8 + $0x380] sm:$0xff]
    %v529 = vld [vmem:[#allocation8 + $0x388] sm:$0xff]
    %v530 = vld [vmem:[#allocation8 + $0x390] sm:$0xff]
    %v531 = vld [vmem:[#allocation8 + $0x398] sm:$0xff]
    %v532 = vld [vmem:[#allocation8 + $0x3a0] sm:$0xff]
    %v533 = vld [vmem:[#allocation8 + $0x3a8] sm:$0xff]
    %v534 = vld [vmem:[#allocation8 + $0x3b0] sm:$0xff]
    %v535 = vld [vmem:[#allocation8 + $0x3b8] sm:$0xff]
    %v536 = vld [vmem:[#allocation8 + $0x3c0] sm:$0xff]
    %v537 = vld [vmem:[#allocation8 + $0x3c8] sm:$0xff]
    %v538 = vld [vmem:[#allocation8 + $0x3d0] sm:$0xff]
    %v539 = vld [vmem:[#allocation8 + $0x3d8] sm:$0xff]
    %v540 = vld [vmem:[#allocation8 + $0x3e0] sm:$0xff]
    %v541 = vld [vmem:[#allocation8 + $0x3e8] sm:$0xff]
    %v542 = vld [vmem:[#allocation8 + $0x3f0] sm:$0xff]
    %v543 = vld [vmem:[#allocation8 + $0x3f8] sm:$0xff]
    %v544 = vld [vmem:[#allocation10] sm:$0xf]
    %v546 = vperm.slane %v544, 0
    %v547 = vperm.slane %v544, 1
    %v548 = vperm.slane %v544, 2
    %v549 = vperm.slane %v544, 3
    %v682 = vunpack.c.l.b16 %v416
    %v683 = vunpack.c.h.b16 %v416
    %v684 = vunpack.c.l.b16 %v417
    %v685 = vunpack.c.h.b16 %v417
    %v686 = vunpack.c.l.b16 %v418
    %v687 = vunpack.c.h.b16 %v418
    %v688 = vunpack.c.l.b16 %v419
    %v689 = vunpack.c.h.b16 %v419
    %v690 = vunpack.c.l.b16 %v420
    %v691 = vunpack.c.h.b16 %v420
    %v692 = vunpack.c.l.b16 %v421
    %v693 = vunpack.c.h.b16 %v421
    %v694 = vunpack.c.l.b16 %v422
    %v695 = vunpack.c.h.b16 %v422
    %v696 = vunpack.c.l.b16 %v423
    %v697 = vunpack.c.h.b16 %v423
    %v698 = vunpack.c.l.b16 %v424
    %v699 = vunpack.c.h.b16 %v424
    %v700 = vunpack.c.l.b16 %v425
    %v701 = vunpack.c.h.b16 %v425
    %v702 = vunpack.c.l.b16 %v426
    %v703 = vunpack.c.h.b16 %v426
    %v704 = vunpack.c.l.b16 %v427
    %v705 = vunpack.c.h.b16 %v427
    %v706 = vunpack.c.l.b16 %v428
    %v707 = vunpack.c.h.b16 %v428
    %v708 = vunpack.c.l.b16 %v429
    %v709 = vunpack.c.h.b16 %v429
    %v710 = vunpack.c.l.b16 %v430
    %v711 = vunpack.c.h.b16 %v430
    %v712 = vunpack.c.l.b16 %v431
    %v713 = vunpack.c.h.b16 %v431
    %v714 = vunpack.c.l.b16 %v432
    %v715 = vunpack.c.h.b16 %v432
    %v716 = vunpack.c.l.b16 %v433
    %v717 = vunpack.c.h.b16 %v433
    %v718 = vunpack.c.l.b16 %v434
    %v719 = vunpack.c.h.b16 %v434
    %v720 = vunpack.c.l.b16 %v435
    %v721 = vunpack.c.h.b16 %v435
    %v722 = vunpack.c.l.b16 %v436
    %v723 = vunpack.c.h.b16 %v436
    %v724 = vunpack.c.l.b16 %v437
    %v725 = vunpack.c.h.b16 %v437
    %v726 = vunpack.c.l.b16 %v438
    %v727 = vunpack.c.h.b16 %v438
    %v728 = vunpack.c.l.b16 %v439
    %v729 = vunpack.c.h.b16 %v439
    %v730 = vunpack.c.l.b16 %v440
    %v731 = vunpack.c.h.b16 %v440
    %v732 = vunpack.c.l.b16 %v441
    %v733 = vunpack.c.h.b16 %v441
    %v734 = vunpack.c.l.b16 %v442
    %v735 = vunpack.c.h.b16 %v442
    %v736 = vunpack.c.l.b16 %v443
    %v737 = vunpack.c.h.b16 %v443
    %v738 = vunpack.c.l.b16 %v444
    %v739 = vunpack.c.h.b16 %v444
    %v740 = vunpack.c.l.b16 %v445
    %v741 = vunpack.c.h.b16 %v445
    %v742 = vunpack.c.l.b16 %v446
    %v743 = vunpack.c.h.b16 %v446
    %v744 = vunpack.c.l.b16 %v447
    %v745 = vunpack.c.h.b16 %v447
    %v746 = vunpack.c.l.b16 %v448
    %v747 = vunpack.c.h.b16 %v448
    %v748 = vunpack.c.l.b16 %v449
    %v749 = vunpack.c.h.b16 %v449
    %v750 = vunpack.c.l.b16 %v450
    %v751 = vunpack.c.h.b16 %v450
    %v752 = vunpack.c.l.b16 %v451
    %v753 = vunpack.c.h.b16 %v451
    %v754 = vunpack.c.l.b16 %v452
    %v755 = vunpack.c.h.b16 %v452
    %v756 = vunpack.c.l.b16 %v453
    %v757 = vunpack.c.h.b16 %v453
    %v758 = vunpack.c.l.b16 %v454
    %v759 = vunpack.c.h.b16 %v454
    %v760 = vunpack.c.l.b16 %v455
    %v761 = vunpack.c.h.b16 %v455
    %v762 = vunpack.c.l.b16 %v456
    %v763 = vunpack.c.h.b16 %v456
    %v764 = vunpack.c.l.b16 %v457
    %v765 = vunpack.c.h.b16 %v457
    %v766 = vunpack.c.l.b16 %v458
    %v767 = vunpack.c.h.b16 %v458
    %v768 = vunpack.c.l.b16 %v459
    %v769 = vunpack.c.h.b16 %v459
    %v770 = vunpack.c.l.b16 %v460
    %v771 = vunpack.c.h.b16 %v460
    %v772 = vunpack.c.l.b16 %v461
    %v773 = vunpack.c.h.b16 %v461
    %v774 = vunpack.c.l.b16 %v462
    %v775 = vunpack.c.h.b16 %v462
    %v776 = vunpack.c.l.b16 %v463
    %v777 = vunpack.c.h.b16 %v463
    %v778 = vunpack.c.l.b16 %v464
    %v779 = vunpack.c.h.b16 %v464
    %v780 = vunpack.c.l.b16 %v465
    %v781 = vunpack.c.h.b16 %v465
    %v782 = vunpack.c.l.b16 %v466
    %v783 = vunpack.c.h.b16 %v466
    %v784 = vunpack.c.l.b16 %v467
    %v785 = vunpack.c.h.b16 %v467
    %v786 = vunpack.c.l.b16 %v468
    %v787 = vunpack.c.h.b16 %v468
    %v788 = vunpack.c.l.b16 %v469
    %v789 = vunpack.c.h.b16 %v469
    %v790 = vunpack.c.l.b16 %v470
    %v791 = vunpack.c.h.b16 %v470
    %v792 = vunpack.c.l.b16 %v471
    %v793 = vunpack.c.h.b16 %v471
    %v794 = vunpack.c.l.b16 %v472
    %v795 = vunpack.c.h.b16 %v472
    %v796 = vunpack.c.l.b16 %v473
    %v797 = vunpack.c.h.b16 %v473
    %v798 = vunpack.c.l.b16 %v474
    %v799 = vunpack.c.h.b16 %v474
    %v800 = vunpack.c.l.b16 %v475
    %v801 = vunpack.c.h.b16 %v475
    %v802 = vunpack.c.l.b16 %v476
    %v803 = vunpack.c.h.b16 %v476
    %v804 = vunpack.c.l.b16 %v477
    %v805 = vunpack.c.h.b16 %v477
    %v806 = vunpack.c.l.b16 %v478
    %v807 = vunpack.c.h.b16 %v478
    %v808 = vunpack.c.l.b16 %v479
    %v809 = vunpack.c.h.b16 %v479
    %v810 = vunpack.c.l.b16 %v480
    %v811 = vunpack.c.h.b16 %v480
    %v812 = vunpack.c.l.b16 %v481
    %v813 = vunpack.c.h.b16 %v481
    %v814 = vunpack.c.l.b16 %v482
    %v815 = vunpack.c.h.b16 %v482
    %v816 = vunpack.c.l.b16 %v483
    %v817 = vunpack.c.h.b16 %v483
    %v818 = vunpack.c.l.b16 %v484
    %v819 = vunpack.c.h.b16 %v484
    %v820 = vunpack.c.l.b16 %v485
    %v821 = vunpack.c.h.b16 %v485
    %v822 = vunpack.c.l.b16 %v486
    %v823 = vunpack.c.h.b16 %v486
    %v824 = vunpack.c.l.b16 %v487
    %v825 = vunpack.c.h.b16 %v487
    %v826 = vunpack.c.l.b16 %v488
    %v827 = vunpack.c.h.b16 %v488
    %v828 = vunpack.c.l.b16 %v489
    %v829 = vunpack.c.h.b16 %v489
    %v830 = vunpack.c.l.b16 %v490
    %v831 = vunpack.c.h.b16 %v490
    %v832 = vunpack.c.l.b16 %v491
    %v833 = vunpack.c.h.b16 %v491
    %v834 = vunpack.c.l.b16 %v492
    %v835 = vunpack.c.h.b16 %v492
    %v836 = vunpack.c.l.b16 %v493
    %v837 = vunpack.c.h.b16 %v493
    %v838 = vunpack.c.l.b16 %v494
    %v839 = vunpack.c.h.b16 %v494
    %v840 = vunpack.c.l.b16 %v495
    %v841 = vunpack.c.h.b16 %v495
    %v842 = vunpack.c.l.b16 %v496
    %v843 = vunpack.c.h.b16 %v496
    %v844 = vunpack.c.l.b16 %v497
    %v845 = vunpack.c.h.b16 %v497
    %v846 = vunpack.c.l.b16 %v498
    %v847 = vunpack.c.h.b16 %v498
    %v848 = vunpack.c.l.b16 %v499
    %v849 = vunpack.c.h.b16 %v499
    %v850 = vunpack.c.l.b16 %v500
    %v851 = vunpack.c.h.b16 %v500
    %v852 = vunpack.c.l.b16 %v501
    %v853 = vunpack.c.h.b16 %v501
    %v854 = vunpack.c.l.b16 %v502
    %v855 = vunpack.c.h.b16 %v502
    %v856 = vunpack.c.l.b16 %v503
    %v857 = vunpack.c.h.b16 %v503
    %v858 = vunpack.c.l.b16 %v504
    %v859 = vunpack.c.h.b16 %v504
    %v860 = vunpack.c.l.b16 %v505
    %v861 = vunpack.c.h.b16 %v505
    %v862 = vunpack.c.l.b16 %v506
    %v863 = vunpack.c.h.b16 %v506
    %v864 = vunpack.c.l.b16 %v507
    %v865 = vunpack.c.h.b16 %v507
    %v866 = vunpack.c.l.b16 %v508
    %v867 = vunpack.c.h.b16 %v508
    %v868 = vunpack.c.l.b16 %v509
    %v869 = vunpack.c.h.b16 %v509
    %v870 = vunpack.c.l.b16 %v510
    %v871 = vunpack.c.h.b16 %v510
    %v872 = vunpack.c.l.b16 %v511
    %v873 = vunpack.c.h.b16 %v511
    %v874 = vunpack.c.l.b16 %v512
    %v875 = vunpack.c.h.b16 %v512
    %v876 = vunpack.c.l.b16 %v513
    %v877 = vunpack.c.h.b16 %v513
    %v878 = vunpack.c.l.b16 %v514
    %v879 = vunpack.c.h.b16 %v514
    %v880 = vunpack.c.l.b16 %v515
    %v881 = vunpack.c.h.b16 %v515
    %v882 = vunpack.c.l.b16 %v516
    %v883 = vunpack.c.h.b16 %v516
    %v884 = vunpack.c.l.b16 %v517
    %v885 = vunpack.c.h.b16 %v517
    %v886 = vunpack.c.l.b16 %v518
    %v887 = vunpack.c.h.b16 %v518
    %v888 = vunpack.c.l.b16 %v519
    %v889 = vunpack.c.h.b16 %v519
    %v890 = vunpack.c.l.b16 %v520
    %v891 = vunpack.c.h.b16 %v520
    %v892 = vunpack.c.l.b16 %v521
    %v893 = vunpack.c.h.b16 %v521
    %v894 = vunpack.c.l.b16 %v522
    %v895 = vunpack.c.h.b16 %v522
    %v896 = vunpack.c.l.b16 %v523
    %v897 = vunpack.c.h.b16 %v523
    %v898 = vunpack.c.l.b16 %v524
    %v899 = vunpack.c.h.b16 %v524
    %v900 = vunpack.c.l.b16 %v525
    %v901 = vunpack.c.h.b16 %v525
    %v902 = vunpack.c.l.b16 %v526
    %v903 = vunpack.c.h.b16 %v526
    %v904 = vunpack.c.l.b16 %v527
    %v905 = vunpack.c.h.b16 %v527
    %v906 = vunpack.c.l.b16 %v528
    %v907 = vunpack.c.h.b16 %v528
    %v908 = vunpack.c.l.b16 %v529
    %v909 = vunpack.c.h.b16 %v529
    %v910 = vunpack.c.l.b16 %v530
    %v911 = vunpack.c.h.b16 %v530
    %v912 = vunpack.c.l.b16 %v531
    %v913 = vunpack.c.h.b16 %v531
    %v914 = vunpack.c.l.b16 %v532
    %v915 = vunpack.c.h.b16 %v532
    %v916 = vunpack.c.l.b16 %v533
    %v917 = vunpack.c.h.b16 %v533
    %v918 = vunpack.c.l.b16 %v534
    %v919 = vunpack.c.h.b16 %v534
    %v920 = vunpack.c.l.b16 %v535
    %v921 = vunpack.c.h.b16 %v535
    %v922 = vunpack.c.l.b16 %v536
    %v923 = vunpack.c.h.b16 %v536
    %v924 = vunpack.c.l.b16 %v537
    %v925 = vunpack.c.h.b16 %v537
    %v926 = vunpack.c.l.b16 %v538
    %v927 = vunpack.c.h.b16 %v538
    %v928 = vunpack.c.l.b16 %v539
    %v929 = vunpack.c.h.b16 %v539
    %v930 = vunpack.c.l.b16 %v540
    %v931 = vunpack.c.h.b16 %v540
    %v932 = vunpack.c.l.b16 %v541
    %v933 = vunpack.c.h.b16 %v541
    %v934 = vunpack.c.l.b16 %v542
    %v935 = vunpack.c.h.b16 %v542
    %v936 = vunpack.c.l.b16 %v543
    %v937 = vunpack.c.h.b16 %v543
    %v938 = vpack.c.b16 %v686, %v682
    %v939 = vpack.c.b16 %v687, %v683
    %v940 = vpack.c.b16 %v688, %v684
    %v941 = vpack.c.b16 %v689, %v685
    %v942 = vpack.c.b16 %v694, %v690
    %v943 = vpack.c.b16 %v695, %v691
    %v944 = vpack.c.b16 %v696, %v692
    %v945 = vpack.c.b16 %v697, %v693
    %v946 = vpack.c.b16 %v702, %v698
    %v947 = vpack.c.b16 %v703, %v699
    %v948 = vpack.c.b16 %v704, %v700
    %v949 = vpack.c.b16 %v705, %v701
    %v950 = vpack.c.b16 %v710, %v706
    %v951 = vpack.c.b16 %v711, %v707
    %v952 = vpack.c.b16 %v712, %v708
    %v953 = vpack.c.b16 %v713, %v709
    %v954 = vpack.c.b16 %v718, %v714
    %v955 = vpack.c.b16 %v719, %v715
    %v956 = vpack.c.b16 %v720, %v716
    %v957 = vpack.c.b16 %v721, %v717
    %v958 = vpack.c.b16 %v726, %v722
    %v959 = vpack.c.b16 %v727, %v723
    %v960 = vpack.c.b16 %v728, %v724
    %v961 = vpack.c.b16 %v729, %v725
    %v962 = vpack.c.b16 %v734, %v730
    %v963 = vpack.c.b16 %v735, %v731
    %v964 = vpack.c.b16 %v736, %v732
    %v965 = vpack.c.b16 %v737, %v733
    %v966 = vpack.c.b16 %v742, %v738
    %v967 = vpack.c.b16 %v743, %v739
    %v968 = vpack.c.b16 %v744, %v740
    %v969 = vpack.c.b16 %v745, %v741
    %v970 = vpack.c.b16 %v750, %v746
    %v971 = vpack.c.b16 %v751, %v747
    %v972 = vpack.c.b16 %v752, %v748
    %v973 = vpack.c.b16 %v753, %v749
    %v974 = vpack.c.b16 %v758, %v754
    %v975 = vpack.c.b16 %v759, %v755
    %v976 = vpack.c.b16 %v760, %v756
    %v977 = vpack.c.b16 %v761, %v757
    %v978 = vpack.c.b16 %v766, %v762
    %v979 = vpack.c.b16 %v767, %v763
    %v980 = vpack.c.b16 %v768, %v764
    %v981 = vpack.c.b16 %v769, %v765
    %v982 = vpack.c.b16 %v774, %v770
    %v983 = vpack.c.b16 %v775, %v771
    %v984 = vpack.c.b16 %v776, %v772
    %v985 = vpack.c.b16 %v777, %v773
    %v986 = vpack.c.b16 %v782, %v778
    %v987 = vpack.c.b16 %v783, %v779
    %v988 = vpack.c.b16 %v784, %v780
    %v989 = vpack.c.b16 %v785, %v781
    %v990 = vpack.c.b16 %v790, %v786
    %v991 = vpack.c.b16 %v791, %v787
    %v992 = vpack.c.b16 %v792, %v788
    %v993 = vpack.c.b16 %v793, %v789
    %v994 = vpack.c.b16 %v798, %v794
    %v995 = vpack.c.b16 %v799, %v795
    %v996 = vpack.c.b16 %v800, %v796
    %v997 = vpack.c.b16 %v801, %v797
    %v998 = vpack.c.b16 %v806, %v802
    %v999 = vpack.c.b16 %v807, %v803
    %v1000 = vpack.c.b16 %v808, %v804
    %v1001 = vpack.c.b16 %v809, %v805
    %v1002 = vpack.c.b16 %v814, %v810
    %v1003 = vpack.c.b16 %v815, %v811
    %v1004 = vpack.c.b16 %v816, %v812
    %v1005 = vpack.c.b16 %v817, %v813
    %v1006 = vpack.c.b16 %v822, %v818
    %v1007 = vpack.c.b16 %v823, %v819
    %v1008 = vpack.c.b16 %v824, %v820
    %v1009 = vpack.c.b16 %v825, %v821
    %v1010 = vpack.c.b16 %v830, %v826
    %v1011 = vpack.c.b16 %v831, %v827
    %v1012 = vpack.c.b16 %v832, %v828
    %v1013 = vpack.c.b16 %v833, %v829
    %v1014 = vpack.c.b16 %v838, %v834
    %v1015 = vpack.c.b16 %v839, %v835
    %v1016 = vpack.c.b16 %v840, %v836
    %v1017 = vpack.c.b16 %v841, %v837
    %v1018 = vpack.c.b16 %v846, %v842
    %v1019 = vpack.c.b16 %v847, %v843
    %v1020 = vpack.c.b16 %v848, %v844
    %v1021 = vpack.c.b16 %v849, %v845
    %v1022 = vpack.c.b16 %v854, %v850
    %v1023 = vpack.c.b16 %v855, %v851
    %v1024 = vpack.c.b16 %v856, %v852
    %v1025 = vpack.c.b16 %v857, %v853
    %v1026 = vpack.c.b16 %v862, %v858
    %v1027 = vpack.c.b16 %v863, %v859
    %v1028 = vpack.c.b16 %v864, %v860
    %v1029 = vpack.c.b16 %v865, %v861
    %v1030 = vpack.c.b16 %v870, %v866
    %v1031 = vpack.c.b16 %v871, %v867
    %v1032 = vpack.c.b16 %v872, %v868
    %v1033 = vpack.c.b16 %v873, %v869
    %v1034 = vpack.c.b16 %v878, %v874
    %v1035 = vpack.c.b16 %v879, %v875
    %v1036 = vpack.c.b16 %v880, %v876
    %v1037 = vpack.c.b16 %v881, %v877
    %v1038 = vpack.c.b16 %v886, %v882
    %v1039 = vpack.c.b16 %v887, %v883
    %v1040 = vpack.c.b16 %v888, %v884
    %v1041 = vpack.c.b16 %v889, %v885
    %v1042 = vpack.c.b16 %v894, %v890
    %v1043 = vpack.c.b16 %v895, %v891
    %v1044 = vpack.c.b16 %v896, %v892
    %v1045 = vpack.c.b16 %v897, %v893
    %v1046 = vpack.c.b16 %v902, %v898
    %v1047 = vpack.c.b16 %v903, %v899
    %v1048 = vpack.c.b16 %v904, %v900
    %v1049 = vpack.c.b16 %v905, %v901
    %v1050 = vpack.c.b16 %v910, %v906
    %v1051 = vpack.c.b16 %v911, %v907
    %v1052 = vpack.c.b16 %v912, %v908
    %v1053 = vpack.c.b16 %v913, %v909
    %v1054 = vpack.c.b16 %v918, %v914
    %v1055 = vpack.c.b16 %v919, %v915
    %v1056 = vpack.c.b16 %v920, %v916
    %v1057 = vpack.c.b16 %v921, %v917
    %v1058 = vpack.c.b16 %v926, %v922
    %v1059 = vpack.c.b16 %v927, %v923
    %v1060 = vpack.c.b16 %v928, %v924
    %v1061 = vpack.c.b16 %v929, %v925
    %v1062 = vpack.c.b16 %v934, %v930
    %v1063 = vpack.c.b16 %v935, %v931
    %v1064 = vpack.c.b16 %v936, %v932
    %v1065 = vpack.c.b16 %v937, %v933
    %1194 = vmatpush.bf16.msra.mxu0 %v966
    %1195 = vmatpush.bf16.msra.mxu0 %v962
    %1196 = vmatpush.bf16.msra.mxu0 %v958
    %1197 = vmatpush.bf16.msra.mxu0 %v954
    %1198 = vmatpush.bf16.msra.mxu0 %v950
    %1199 = vmatpush.bf16.msra.mxu0 %v946
    %1200 = vmatpush.bf16.msra.mxu0 %v942
    %1201 = vmatpush.bf16.msra.mxu0 %v938
    %1202 = vmatmul.bf16.gmra.mxu0 %v412
    %v1203 = vpop.f32.mrf.mxu0
    %v1204 = vadd.f32 %v546, %v1203
    %v1205 = vpop.f32.mrf.mxu0
    %v1206 = vadd.f32 %v546, %v1205
    %1207 = vdwg.mxu0
    %1208 = vmatpush.bf16.msra.mxu0 %v998
    %1209 = vmatpush.bf16.msra.mxu0 %v994
    %1210 = vmatpush.bf16.msra.mxu0 %v990
    %1211 = vmatpush.bf16.msra.mxu0 %v986
    %1212 = vmatpush.bf16.msra.mxu0 %v982
    %1213 = vmatpush.bf16.msra.mxu0 %v978
    %1214 = vmatpush.bf16.msra.mxu0 %v974
    %1215 = vmatpush.bf16.msra.mxu0 %v970
    %1216 = vmatmul.bf16.gmra.mxu0 %v413
    %v1217 = vpop.f32.mrf.mxu0
    %v1218 = vadd.f32 %v1204, %v1217
    %v1219 = vpop.f32.mrf.mxu0
    %v1220 = vadd.f32 %v1206, %v1219
    %1221 = vdwg.mxu0
    %1222 = vmatpush.bf16.msra.mxu0 %v1030
    %1223 = vmatpush.bf16.msra.mxu0 %v1026
    %1224 = vmatpush.bf16.msra.mxu0 %v1022
    %1225 = vmatpush.bf16.msra.mxu0 %v1018
    %1226 = vmatpush.bf16.msra.mxu0 %v1014
    %1227 = vmatpush.bf16.msra.mxu0 %v1010
    %1228 = vmatpush.bf16.msra.mxu0 %v1006
    %1229 = vmatpush.bf16.msra.mxu0 %v1002
    %1230 = vmatmul.bf16.gmra.mxu0 %v414
    %v1231 = vpop.f32.mrf.mxu0
    %v1232 = vadd.f32 %v1218, %v1231
    %v1233 = vpop.f32.mrf.mxu0
    %v1234 = vadd.f32 %v1220, %v1233
    %1235 = vdwg.mxu0
    %1236 = vmatpush.bf16.msra.mxu0 %v1062
    %1237 = vmatpush.bf16.msra.mxu0 %v1058
    %1238 = vmatpush.bf16.msra.mxu0 %v1054
    %1239 = vmatpush.bf16.msra.mxu0 %v1050
    %1240 = vmatpush.bf16.msra.mxu0 %v1046
    %1241 = vmatpush.bf16.msra.mxu0 %v1042
    %1242 = vmatpush.bf16.msra.mxu0 %v1038
    %1243 = vmatpush.bf16.msra.mxu0 %v1034
    %1244 = vmatmul.bf16.gmra.mxu0 %v415
    %v1245 = vpop.f32.mrf.mxu0
    %v1246 = vadd.f32 %v1232, %v1245
    %v1247 = vpop.f32.mrf.mxu0
    %v1248 = vadd.f32 %v1234, %v1247
    %1249 = vdwg.mxu0
    %1250 = vmatpush.bf16.msra.mxu0 %v967
    %1251 = vmatpush.bf16.msra.mxu0 %v963
    %1252 = vmatpush.bf16.msra.mxu0 %v959
    %1253 = vmatpush.bf16.msra.mxu0 %v955
    %1254 = vmatpush.bf16.msra.mxu0 %v951
    %1255 = vmatpush.bf16.msra.mxu0 %v947
    %1256 = vmatpush.bf16.msra.mxu0 %v943
    %1257 = vmatpush.bf16.msra.mxu0 %v939
    %1258 = vmatmul.bf16.gmra.mxu0 %v412
    %v1259 = vpop.f32.mrf.mxu0
    %v1260 = vadd.f32 %v547, %v1259
    %v1261 = vpop.f32.mrf.mxu0
    %v1262 = vadd.f32 %v547, %v1261
    %1263 = vdwg.mxu0
    %1264 = vmatpush.bf16.msra.mxu0 %v999
    %1265 = vmatpush.bf16.msra.mxu0 %v995
    %1266 = vmatpush.bf16.msra.mxu0 %v991
    %1267 = vmatpush.bf16.msra.mxu0 %v987
    %1268 = vmatpush.bf16.msra.mxu0 %v983
    %1269 = vmatpush.bf16.msra.mxu0 %v979
    %1270 = vmatpush.bf16.msra.mxu0 %v975
    %1271 = vmatpush.bf16.msra.mxu0 %v971
    %1272 = vmatmul.bf16.gmra.mxu0 %v413
    %v1273 = vpop.f32.mrf.mxu0
    %v1274 = vadd.f32 %v1260, %v1273
    %v1275 = vpop.f32.mrf.mxu0
    %v1276 = vadd.f32 %v1262, %v1275
    %1277 = vdwg.mxu0
    %1278 = vmatpush.bf16.msra.mxu0 %v1031
    %1279 = vmatpush.bf16.msra.mxu0 %v1027
    %1280 = vmatpush.bf16.msra.mxu0 %v1023
    %1281 = vmatpush.bf16.msra.mxu0 %v1019
    %1282 = vmatpush.bf16.msra.mxu0 %v1015
    %1283 = vmatpush.bf16.msra.mxu0 %v1011
    %1284 = vmatpush.bf16.msra.mxu0 %v1007
    %1285 = vmatpush.bf16.msra.mxu0 %v1003
    %1286 = vmatmul.bf16.gmra.mxu0 %v414
    %v1287 = vpop.f32.mrf.mxu0
    %v1288 = vadd.f32 %v1274, %v1287
    %v1289 = vpop.f32.mrf.mxu0
    %v1290 = vadd.f32 %v1276, %v1289
    %1291 = vdwg.mxu0
    %1292 = vmatpush.bf16.msra.mxu0 %v1063
    %1293 = vmatpush.bf16.msra.mxu0 %v1059
    %1294 = vmatpush.bf16.msra.mxu0 %v1055
    %1295 = vmatpush.bf16.msra.mxu0 %v1051
    %1296 = vmatpush.bf16.msra.mxu0 %v1047
    %1297 = vmatpush.bf16.msra.mxu0 %v1043
    %1298 = vmatpush.bf16.msra.mxu0 %v1039
    %1299 = vmatpush.bf16.msra.mxu0 %v1035
    %1300 = vmatmul.bf16.gmra.mxu0 %v415
    %v1301 = vpop.f32.mrf.mxu0
    %v1302 = vadd.f32 %v1288, %v1301
    %v1303 = vpop.f32.mrf.mxu0
    %v1304 = vadd.f32 %v1290, %v1303
    %1305 = vdwg.mxu0
    %1306 = vmatpush.bf16.msra.mxu0 %v968
    %1307 = vmatpush.bf16.msra.mxu0 %v964
    %1308 = vmatpush.bf16.msra.mxu0 %v960
    %1309 = vmatpush.bf16.msra.mxu0 %v956
    %1310 = vmatpush.bf16.msra.mxu0 %v952
    %1311 = vmatpush.bf16.msra.mxu0 %v948
    %1312 = vmatpush.bf16.msra.mxu0 %v944
    %1313 = vmatpush.bf16.msra.mxu0 %v940
    %1314 = vmatmul.bf16.gmra.mxu0 %v412
    %v1315 = vpop.f32.mrf.mxu0
    %v1316 = vadd.f32 %v548, %v1315
    %v1317 = vpop.f32.mrf.mxu0
    %v1318 = vadd.f32 %v548, %v1317
    %1319 = vdwg.mxu0
    %1320 = vmatpush.bf16.msra.mxu0 %v1000
    %1321 = vmatpush.bf16.msra.mxu0 %v996
    %1322 = vmatpush.bf16.msra.mxu0 %v992
    %1323 = vmatpush.bf16.msra.mxu0 %v988
    %1324 = vmatpush.bf16.msra.mxu0 %v984
    %1325 = vmatpush.bf16.msra.mxu0 %v980
    %1326 = vmatpush.bf16.msra.mxu0 %v976
    %1327 = vmatpush.bf16.msra.mxu0 %v972
    %1328 = vmatmul.bf16.gmra.mxu0 %v413
    %v1329 = vpop.f32.mrf.mxu0
    %v1330 = vadd.f32 %v1316, %v1329
    %v1331 = vpop.f32.mrf.mxu0
    %v1332 = vadd.f32 %v1318, %v1331
    %1333 = vdwg.mxu0
    %1334 = vmatpush.bf16.msra.mxu0 %v1032
    %1335 = vmatpush.bf16.msra.mxu0 %v1028
    %1336 = vmatpush.bf16.msra.mxu0 %v1024
    %1337 = vmatpush.bf16.msra.mxu0 %v1020
    %1338 = vmatpush.bf16.msra.mxu0 %v1016
    %1339 = vmatpush.bf16.msra.mxu0 %v1012
    %1340 = vmatpush.bf16.msra.mxu0 %v1008
    %1341 = vmatpush.bf16.msra.mxu0 %v1004
    %1342 = vmatmul.bf16.gmra.mxu0 %v414
    %v1343 = vpop.f32.mrf.mxu0
    %v1344 = vadd.f32 %v1330, %v1343
    %v1345 = vpop.f32.mrf.mxu0
    %v1346 = vadd.f32 %v1332, %v1345
    %1347 = vdwg.mxu0
    %1348 = vmatpush.bf16.msra.mxu0 %v1064
    %1349 = vmatpush.bf16.msra.mxu0 %v1060
    %1350 = vmatpush.bf16.msra.mxu0 %v1056
    %1351 = vmatpush.bf16.msra.mxu0 %v1052
    %1352 = vmatpush.bf16.msra.mxu0 %v1048
    %1353 = vmatpush.bf16.msra.mxu0 %v1044
    %1354 = vmatpush.bf16.msra.mxu0 %v1040
    %1355 = vmatpush.bf16.msra.mxu0 %v1036
    %1356 = vmatmul.bf16.gmra.mxu0 %v415
    %v1357 = vpop.f32.mrf.mxu0
    %v1358 = vadd.f32 %v1344, %v1357
    %v1359 = vpop.f32.mrf.mxu0
    %v1360 = vadd.f32 %v1346, %v1359
    %1361 = vdwg.mxu0
    %1362 = vmatpush.bf16.msra.mxu0 %v969
    %1363 = vmatpush.bf16.msra.mxu0 %v965
    %1364 = vmatpush.bf16.msra.mxu0 %v961
    %1365 = vmatpush.bf16.msra.mxu0 %v957
    %1366 = vmatpush.bf16.msra.mxu0 %v953
    %1367 = vmatpush.bf16.msra.mxu0 %v949
    %1368 = vmatpush.bf16.msra.mxu0 %v945
    %1369 = vmatpush.bf16.msra.mxu0 %v941
    %1370 = vmatmul.bf16.gmra.mxu0 %v412
    %v1371 = vpop.f32.mrf.mxu0
    %v1372 = vadd.f32 %v549, %v1371
    %v1373 = vpop.f32.mrf.mxu0
    %v1374 = vadd.f32 %v549, %v1373
    %1375 = vdwg.mxu0
    %1376 = vmatpush.bf16.msra.mxu0 %v1001
    %1377 = vmatpush.bf16.msra.mxu0 %v997
    %1378 = vmatpush.bf16.msra.mxu0 %v993
    %1379 = vmatpush.bf16.msra.mxu0 %v989
    %1380 = vmatpush.bf16.msra.mxu0 %v985
    %1381 = vmatpush.bf16.msra.mxu0 %v981
    %1382 = vmatpush.bf16.msra.mxu0 %v977
    %1383 = vmatpush.bf16.msra.mxu0 %v973
    %1384 = vmatmul.bf16.gmra.mxu0 %v413
    %v1385 = vpop.f32.mrf.mxu0
    %v1386 = vadd.f32 %v1372, %v1385
    %v1387 = vpop.f32.mrf.mxu0
    %v1388 = vadd.f32 %v1374, %v1387
    %1389 = vdwg.mxu0
    %1390 = vmatpush.bf16.msra.mxu0 %v1033
    %1391 = vmatpush.bf16.msra.mxu0 %v1029
    %1392 = vmatpush.bf16.msra.mxu0 %v1025
    %1393 = vmatpush.bf16.msra.mxu0 %v1021
    %1394 = vmatpush.bf16.msra.mxu0 %v1017
    %1395 = vmatpush.bf16.msra.mxu0 %v1013
    %1396 = vmatpush.bf16.msra.mxu0 %v1009
    %1397 = vmatpush.bf16.msra.mxu0 %v1005
    %1398 = vmatmul.bf16.gmra.mxu0 %v414
    %v1399 = vpop.f32.mrf.mxu0
    %v1400 = vadd.f32 %v1386, %v1399
    %v1401 = vpop.f32.mrf.mxu0
    %v1402 = vadd.f32 %v1388, %v1401
    %1403 = vdwg.mxu0
    %1404 = vmatpush.bf16.msra.mxu0 %v1065
    %1405 = vmatpush.bf16.msra.mxu0 %v1061
    %1406 = vmatpush.bf16.msra.mxu0 %v1057
    %1407 = vmatpush.bf16.msra.mxu0 %v1053
    %1408 = vmatpush.bf16.msra.mxu0 %v1049
    %1409 = vmatpush.bf16.msra.mxu0 %v1045
    %1410 = vmatpush.bf16.msra.mxu0 %v1041
    %1411 = vmatpush.bf16.msra.mxu0 %v1037
    %1412 = vmatmul.bf16.gmra.mxu0 %v415
    %v1413 = vpop.f32.mrf.mxu0
    %v1414 = vadd.f32 %v1400, %v1413
    %v1415 = vpop.f32.mrf.mxu0
    %v1416 = vadd.f32 %v1402, %v1415
    %1417 = vdwg.mxu0
    %v1418 = vmax.f32 %v1246, 0.0
    %v1419 = vmax.f32 %v1302, 0.0
    %v1420 = vmax.f32 %v1358, 0.0
    %v1421 = vmax.f32 %v1414, 0.0
    %v1422 = vmax.f32 %v1248, 0.0
    %v1423 = vmax.f32 %v1304, 0.0
    %v1424 = vmax.f32 %v1360, 0.0
    %v1425 = vmax.f32 %v1416, 0.0
    %v1426 = vpack.c.bf16 %v1422, %v1418
    %v1427 = vpack.c.bf16 %v1423, %v1419
    %v1428 = vpack.c.bf16 %v1424, %v1420
    %v1429 = vpack.c.bf16 %v1425, %v1421
    %v1430 = vld [vmem:[#allocation11] sm:$0xff]
    %v1431 = vld [vmem:[#allocation11 + $0x8] sm:$0xff]
    %v1432 = vld [vmem:[#allocation11 + $0x10] sm:$0xff]
    %v1433 = vld [vmem:[#allocation11 + $0x18] sm:$0xff]
    %v1434 = vld [vmem:[#allocation11 + $0x20] sm:$0xff]
    %v1435 = vld [vmem:[#allocation11 + $0x28] sm:$0xff]
    %v1436 = vld [vmem:[#allocation11 + $0x30] sm:$0xff]
    %v1437 = vld [vmem:[#allocation11 + $0x38] sm:$0xff]
    %v1438 = vld [vmem:[#allocation11 + $0x40] sm:$0xff]
    %v1439 = vld [vmem:[#allocation11 + $0x48] sm:$0xff]
    %v1440 = vld [vmem:[#allocation11 + $0x50] sm:$0xff]
    %v1441 = vld [vmem:[#allocation11 + $0x58] sm:$0xff]
    %v1442 = vld [vmem:[#allocation11 + $0x60] sm:$0xff]
    %v1443 = vld [vmem:[#allocation11 + $0x68] sm:$0xff]
    %v1444 = vld [vmem:[#allocation11 + $0x70] sm:$0xff]
    %v1445 = vld [vmem:[#allocation11 + $0x78] sm:$0xff]
    %v1446 = vld [vmem:[#allocation11 + $0x80] sm:$0xff]
    %v1447 = vld [vmem:[#allocation11 + $0x88] sm:$0xff]
    %v1448 = vld [vmem:[#allocation11 + $0x90] sm:$0xff]
    %v1449 = vld [vmem:[#allocation11 + $0x98] sm:$0xff]
    %v1450 = vld [vmem:[#allocation11 + $0xa0] sm:$0xff]
    %v1451 = vld [vmem:[#allocation11 + $0xa8] sm:$0xff]
    %v1452 = vld [vmem:[#allocation11 + $0xb0] sm:$0xff]
    %v1453 = vld [vmem:[#allocation11 + $0xb8] sm:$0xff]
    %v1454 = vld [vmem:[#allocation11 + $0xc0] sm:$0xff]
    %v1455 = vld [vmem:[#allocation11 + $0xc8] sm:$0xff]
    %v1456 = vld [vmem:[#allocation11 + $0xd0] sm:$0xff]
    %v1457 = vld [vmem:[#allocation11 + $0xd8] sm:$0xff]
    %v1458 = vld [vmem:[#allocation11 + $0xe0] sm:$0xff]
    %v1459 = vld [vmem:[#allocation11 + $0xe8] sm:$0xff]
    %v1460 = vld [vmem:[#allocation11 + $0xf0] sm:$0xff]
    %v1461 = vld [vmem:[#allocation11 + $0xf8] sm:$0xff]
    %v1462 = vld [vmem:[#allocation11 + $0x100] sm:$0xff]
    %v1463 = vld [vmem:[#allocation11 + $0x108] sm:$0xff]
    %v1464 = vld [vmem:[#allocation11 + $0x110] sm:$0xff]
    %v1465 = vld [vmem:[#allocation11 + $0x118] sm:$0xff]
    %v1466 = vld [vmem:[#allocation11 + $0x120] sm:$0xff]
    %v1467 = vld [vmem:[#allocation11 + $0x128] sm:$0xff]
    %v1468 = vld [vmem:[#allocation11 + $0x130] sm:$0xff]
    %v1469 = vld [vmem:[#allocation11 + $0x138] sm:$0xff]
    %v1470 = vld [vmem:[#allocation11 + $0x140] sm:$0xff]
    %v1471 = vld [vmem:[#allocation11 + $0x148] sm:$0xff]
    %v1472 = vld [vmem:[#allocation11 + $0x150] sm:$0xff]
    %v1473 = vld [vmem:[#allocation11 + $0x158] sm:$0xff]
    %v1474 = vld [vmem:[#allocation11 + $0x160] sm:$0xff]
    %v1475 = vld [vmem:[#allocation11 + $0x168] sm:$0xff]
    %v1476 = vld [vmem:[#allocation11 + $0x170] sm:$0xff]
    %v1477 = vld [vmem:[#allocation11 + $0x178] sm:$0xff]
    %v1478 = vld [vmem:[#allocation11 + $0x180] sm:$0xff]
    %v1479 = vld [vmem:[#allocation11 + $0x188] sm:$0xff]
    %v1480 = vld [vmem:[#allocation11 + $0x190] sm:$0xff]
    %v1481 = vld [vmem:[#allocation11 + $0x198] sm:$0xff]
    %v1482 = vld [vmem:[#allocation11 + $0x1a0] sm:$0xff]
    %v1483 = vld [vmem:[#allocation11 + $0x1a8] sm:$0xff]
    %v1484 = vld [vmem:[#allocation11 + $0x1b0] sm:$0xff]
    %v1485 = vld [vmem:[#allocation11 + $0x1b8] sm:$0xff]
    %v1486 = vld [vmem:[#allocation11 + $0x1c0] sm:$0xff]
    %v1487 = vld [vmem:[#allocation11 + $0x1c8] sm:$0xff]
    %v1488 = vld [vmem:[#allocation11 + $0x1d0] sm:$0xff]
    %v1489 = vld [vmem:[#allocation11 + $0x1d8] sm:$0xff]
    %v1490 = vld [vmem:[#allocation11 + $0x1e0] sm:$0xff]
    %v1491 = vld [vmem:[#allocation11 + $0x1e8] sm:$0xff]
    %v1492 = vld [vmem:[#allocation11 + $0x1f0] sm:$0xff]
    %v1493 = vld [vmem:[#allocation11 + $0x1f8] sm:$0xff]
    %v1494 = vld [vmem:[#allocation11 + $0x200] sm:$0xff]
    %v1495 = vld [vmem:[#allocation11 + $0x208] sm:$0xff]
    %v1496 = vld [vmem:[#allocation11 + $0x210] sm:$0xff]
    %v1497 = vld [vmem:[#allocation11 + $0x218] sm:$0xff]
    %v1498 = vld [vmem:[#allocation11 + $0x220] sm:$0xff]
    %v1499 = vld [vmem:[#allocation11 + $0x228] sm:$0xff]
    %v1500 = vld [vmem:[#allocation11 + $0x230] sm:$0xff]
    %v1501 = vld [vmem:[#allocation11 + $0x238] sm:$0xff]
    %v1502 = vld [vmem:[#allocation11 + $0x240] sm:$0xff]
    %v1503 = vld [vmem:[#allocation11 + $0x248] sm:$0xff]
    %v1504 = vld [vmem:[#allocation11 + $0x250] sm:$0xff]
    %v1505 = vld [vmem:[#allocation11 + $0x258] sm:$0xff]
    %v1506 = vld [vmem:[#allocation11 + $0x260] sm:$0xff]
    %v1507 = vld [vmem:[#allocation11 + $0x268] sm:$0xff]
    %v1508 = vld [vmem:[#allocation11 + $0x270] sm:$0xff]
    %v1509 = vld [vmem:[#allocation11 + $0x278] sm:$0xff]
    %v1510 = vld [vmem:[#allocation11 + $0x280] sm:$0xff]
    %v1511 = vld [vmem:[#allocation11 + $0x288] sm:$0xff]
    %v1512 = vld [vmem:[#allocation11 + $0x290] sm:$0xff]
    %v1513 = vld [vmem:[#allocation11 + $0x298] sm:$0xff]
    %v1514 = vld [vmem:[#allocation11 + $0x2a0] sm:$0xff]
    %v1515 = vld [vmem:[#allocation11 + $0x2a8] sm:$0xff]
    %v1516 = vld [vmem:[#allocation11 + $0x2b0] sm:$0xff]
    %v1517 = vld [vmem:[#allocation11 + $0x2b8] sm:$0xff]
    %v1518 = vld [vmem:[#allocation11 + $0x2c0] sm:$0xff]
    %v1519 = vld [vmem:[#allocation11 + $0x2c8] sm:$0xff]
    %v1520 = vld [vmem:[#allocation11 + $0x2d0] sm:$0xff]
    %v1521 = vld [vmem:[#allocation11 + $0x2d8] sm:$0xff]
    %v1522 = vld [vmem:[#allocation11 + $0x2e0] sm:$0xff]
    %v1523 = vld [vmem:[#allocation11 + $0x2e8] sm:$0xff]
    %v1524 = vld [vmem:[#allocation11 + $0x2f0] sm:$0xff]
    %v1525 = vld [vmem:[#allocation11 + $0x2f8] sm:$0xff]
    %v1526 = vld [vmem:[#allocation11 + $0x300] sm:$0xff]
    %v1527 = vld [vmem:[#allocation11 + $0x308] sm:$0xff]
    %v1528 = vld [vmem:[#allocation11 + $0x310] sm:$0xff]
    %v1529 = vld [vmem:[#allocation11 + $0x318] sm:$0xff]
    %v1530 = vld [vmem:[#allocation11 + $0x320] sm:$0xff]
    %v1531 = vld [vmem:[#allocation11 + $0x328] sm:$0xff]
    %v1532 = vld [vmem:[#allocation11 + $0x330] sm:$0xff]
    %v1533 = vld [vmem:[#allocation11 + $0x338] sm:$0xff]
    %v1534 = vld [vmem:[#allocation11 + $0x340] sm:$0xff]
    %v1535 = vld [vmem:[#allocation11 + $0x348] sm:$0xff]
    %v1536 = vld [vmem:[#allocation11 + $0x350] sm:$0xff]
    %v1537 = vld [vmem:[#allocation11 + $0x358] sm:$0xff]
    %v1538 = vld [vmem:[#allocation11 + $0x360] sm:$0xff]
    %v1539 = vld [vmem:[#allocation11 + $0x368] sm:$0xff]
    %v1540 = vld [vmem:[#allocation11 + $0x370] sm:$0xff]
    %v1541 = vld [vmem:[#allocation11 + $0x378] sm:$0xff]
    %v1542 = vld [vmem:[#allocation11 + $0x380] sm:$0xff]
    %v1543 = vld [vmem:[#allocation11 + $0x388] sm:$0xff]
    %v1544 = vld [vmem:[#allocation11 + $0x390] sm:$0xff]
    %v1545 = vld [vmem:[#allocation11 + $0x398] sm:$0xff]
    %v1546 = vld [vmem:[#allocation11 + $0x3a0] sm:$0xff]
    %v1547 = vld [vmem:[#allocation11 + $0x3a8] sm:$0xff]
    %v1548 = vld [vmem:[#allocation11 + $0x3b0] sm:$0xff]
    %v1549 = vld [vmem:[#allocation11 + $0x3b8] sm:$0xff]
    %v1550 = vld [vmem:[#allocation11 + $0x3c0] sm:$0xff]
    %v1551 = vld [vmem:[#allocation11 + $0x3c8] sm:$0xff]
    %v1552 = vld [vmem:[#allocation11 + $0x3d0] sm:$0xff]
    %v1553 = vld [vmem:[#allocation11 + $0x3d8] sm:$0xff]
    %v1554 = vld [vmem:[#allocation11 + $0x3e0] sm:$0xff]
    %v1555 = vld [vmem:[#allocation11 + $0x3e8] sm:$0xff]
    %v1556 = vld [vmem:[#allocation11 + $0x3f0] sm:$0xff]
    %v1557 = vld [vmem:[#allocation11 + $0x3f8] sm:$0xff]
    %v1558 = vld [vmem:[%s6] sm:$0xf]
    %v1560 = vperm.slane %v1558, 0
    %v1561 = vperm.slane %v1558, 1
    %v1562 = vperm.slane %v1558, 2
    %v1563 = vperm.slane %v1558, 3
    %v1696 = vunpack.c.l.b16 %v1430
    %v1697 = vunpack.c.h.b16 %v1430
    %v1698 = vunpack.c.l.b16 %v1431
    %v1699 = vunpack.c.h.b16 %v1431
    %v1700 = vunpack.c.l.b16 %v1432
    %v1701 = vunpack.c.h.b16 %v1432
    %v1702 = vunpack.c.l.b16 %v1433
    %v1703 = vunpack.c.h.b16 %v1433
    %v1704 = vunpack.c.l.b16 %v1434
    %v1705 = vunpack.c.h.b16 %v1434
    %v1706 = vunpack.c.l.b16 %v1435
    %v1707 = vunpack.c.h.b16 %v1435
    %v1708 = vunpack.c.l.b16 %v1436
    %v1709 = vunpack.c.h.b16 %v1436
    %v1710 = vunpack.c.l.b16 %v1437
    %v1711 = vunpack.c.h.b16 %v1437
    %v1712 = vunpack.c.l.b16 %v1438
    %v1713 = vunpack.c.h.b16 %v1438
    %v1714 = vunpack.c.l.b16 %v1439
    %v1715 = vunpack.c.h.b16 %v1439
    %v1716 = vunpack.c.l.b16 %v1440
    %v1717 = vunpack.c.h.b16 %v1440
    %v1718 = vunpack.c.l.b16 %v1441
    %v1719 = vunpack.c.h.b16 %v1441
    %v1720 = vunpack.c.l.b16 %v1442
    %v1721 = vunpack.c.h.b16 %v1442
    %v1722 = vunpack.c.l.b16 %v1443
    %v1723 = vunpack.c.h.b16 %v1443
    %v1724 = vunpack.c.l.b16 %v1444
    %v1725 = vunpack.c.h.b16 %v1444
    %v1726 = vunpack.c.l.b16 %v1445
    %v1727 = vunpack.c.h.b16 %v1445
    %v1728 = vunpack.c.l.b16 %v1446
    %v1729 = vunpack.c.h.b16 %v1446
    %v1730 = vunpack.c.l.b16 %v1447
    %v1731 = vunpack.c.h.b16 %v1447
    %v1732 = vunpack.c.l.b16 %v1448
    %v1733 = vunpack.c.h.b16 %v1448
    %v1734 = vunpack.c.l.b16 %v1449
    %v1735 = vunpack.c.h.b16 %v1449
    %v1736 = vunpack.c.l.b16 %v1450
    %v1737 = vunpack.c.h.b16 %v1450
    %v1738 = vunpack.c.l.b16 %v1451
    %v1739 = vunpack.c.h.b16 %v1451
    %v1740 = vunpack.c.l.b16 %v1452
    %v1741 = vunpack.c.h.b16 %v1452
    %v1742 = vunpack.c.l.b16 %v1453
    %v1743 = vunpack.c.h.b16 %v1453
    %v1744 = vunpack.c.l.b16 %v1454
    %v1745 = vunpack.c.h.b16 %v1454
    %v1746 = vunpack.c.l.b16 %v1455
    %v1747 = vunpack.c.h.b16 %v1455
    %v1748 = vunpack.c.l.b16 %v1456
    %v1749 = vunpack.c.h.b16 %v1456
    %v1750 = vunpack.c.l.b16 %v1457
    %v1751 = vunpack.c.h.b16 %v1457
    %v1752 = vunpack.c.l.b16 %v1458
    %v1753 = vunpack.c.h.b16 %v1458
    %v1754 = vunpack.c.l.b16 %v1459
    %v1755 = vunpack.c.h.b16 %v1459
    %v1756 = vunpack.c.l.b16 %v1460
    %v1757 = vunpack.c.h.b16 %v1460
    %v1758 = vunpack.c.l.b16 %v1461
    %v1759 = vunpack.c.h.b16 %v1461
    %v1760 = vunpack.c.l.b16 %v1462
    %v1761 = vunpack.c.h.b16 %v1462
    %v1762 = vunpack.c.l.b16 %v1463
    %v1763 = vunpack.c.h.b16 %v1463
    %v1764 = vunpack.c.l.b16 %v1464
    %v1765 = vunpack.c.h.b16 %v1464
    %v1766 = vunpack.c.l.b16 %v1465
    %v1767 = vunpack.c.h.b16 %v1465
    %v1768 = vunpack.c.l.b16 %v1466
    %v1769 = vunpack.c.h.b16 %v1466
    %v1770 = vunpack.c.l.b16 %v1467
    %v1771 = vunpack.c.h.b16 %v1467
    %v1772 = vunpack.c.l.b16 %v1468
    %v1773 = vunpack.c.h.b16 %v1468
    %v1774 = vunpack.c.l.b16 %v1469
    %v1775 = vunpack.c.h.b16 %v1469
    %v1776 = vunpack.c.l.b16 %v1470
    %v1777 = vunpack.c.h.b16 %v1470
    %v1778 = vunpack.c.l.b16 %v1471
    %v1779 = vunpack.c.h.b16 %v1471
    %v1780 = vunpack.c.l.b16 %v1472
    %v1781 = vunpack.c.h.b16 %v1472
    %v1782 = vunpack.c.l.b16 %v1473
    %v1783 = vunpack.c.h.b16 %v1473
    %v1784 = vunpack.c.l.b16 %v1474
    %v1785 = vunpack.c.h.b16 %v1474
    %v1786 = vunpack.c.l.b16 %v1475
    %v1787 = vunpack.c.h.b16 %v1475
    %v1788 = vunpack.c.l.b16 %v1476
    %v1789 = vunpack.c.h.b16 %v1476
    %v1790 = vunpack.c.l.b16 %v1477
    %v1791 = vunpack.c.h.b16 %v1477
    %v1792 = vunpack.c.l.b16 %v1478
    %v1793 = vunpack.c.h.b16 %v1478
    %v1794 = vunpack.c.l.b16 %v1479
    %v1795 = vunpack.c.h.b16 %v1479
    %v1796 = vunpack.c.l.b16 %v1480
    %v1797 = vunpack.c.h.b16 %v1480
    %v1798 = vunpack.c.l.b16 %v1481
    %v1799 = vunpack.c.h.b16 %v1481
    %v1800 = vunpack.c.l.b16 %v1482
    %v1801 = vunpack.c.h.b16 %v1482
    %v1802 = vunpack.c.l.b16 %v1483
    %v1803 = vunpack.c.h.b16 %v1483
    %v1804 = vunpack.c.l.b16 %v1484
    %v1805 = vunpack.c.h.b16 %v1484
    %v1806 = vunpack.c.l.b16 %v1485
    %v1807 = vunpack.c.h.b16 %v1485
    %v1808 = vunpack.c.l.b16 %v1486
    %v1809 = vunpack.c.h.b16 %v1486
    %v1810 = vunpack.c.l.b16 %v1487
    %v1811 = vunpack.c.h.b16 %v1487
    %v1812 = vunpack.c.l.b16 %v1488
    %v1813 = vunpack.c.h.b16 %v1488
    %v1814 = vunpack.c.l.b16 %v1489
    %v1815 = vunpack.c.h.b16 %v1489
    %v1816 = vunpack.c.l.b16 %v1490
    %v1817 = vunpack.c.h.b16 %v1490
    %v1818 = vunpack.c.l.b16 %v1491
    %v1819 = vunpack.c.h.b16 %v1491
    %v1820 = vunpack.c.l.b16 %v1492
    %v1821 = vunpack.c.h.b16 %v1492
    %v1822 = vunpack.c.l.b16 %v1493
    %v1823 = vunpack.c.h.b16 %v1493
    %v1824 = vunpack.c.l.b16 %v1494
    %v1825 = vunpack.c.h.b16 %v1494
    %v1826 = vunpack.c.l.b16 %v1495
    %v1827 = vunpack.c.h.b16 %v1495
    %v1828 = vunpack.c.l.b16 %v1496
    %v1829 = vunpack.c.h.b16 %v1496
    %v1830 = vunpack.c.l.b16 %v1497
    %v1831 = vunpack.c.h.b16 %v1497
    %v1832 = vunpack.c.l.b16 %v1498
    %v1833 = vunpack.c.h.b16 %v1498
    %v1834 = vunpack.c.l.b16 %v1499
    %v1835 = vunpack.c.h.b16 %v1499
    %v1836 = vunpack.c.l.b16 %v1500
    %v1837 = vunpack.c.h.b16 %v1500
    %v1838 = vunpack.c.l.b16 %v1501
    %v1839 = vunpack.c.h.b16 %v1501
    %v1840 = vunpack.c.l.b16 %v1502
    %v1841 = vunpack.c.h.b16 %v1502
    %v1842 = vunpack.c.l.b16 %v1503
    %v1843 = vunpack.c.h.b16 %v1503
    %v1844 = vunpack.c.l.b16 %v1504
    %v1845 = vunpack.c.h.b16 %v1504
    %v1846 = vunpack.c.l.b16 %v1505
    %v1847 = vunpack.c.h.b16 %v1505
    %v1848 = vunpack.c.l.b16 %v1506
    %v1849 = vunpack.c.h.b16 %v1506
    %v1850 = vunpack.c.l.b16 %v1507
    %v1851 = vunpack.c.h.b16 %v1507
    %v1852 = vunpack.c.l.b16 %v1508
    %v1853 = vunpack.c.h.b16 %v1508
    %v1854 = vunpack.c.l.b16 %v1509
    %v1855 = vunpack.c.h.b16 %v1509
    %v1856 = vunpack.c.l.b16 %v1510
    %v1857 = vunpack.c.h.b16 %v1510
    %v1858 = vunpack.c.l.b16 %v1511
    %v1859 = vunpack.c.h.b16 %v1511
    %v1860 = vunpack.c.l.b16 %v1512
    %v1861 = vunpack.c.h.b16 %v1512
    %v1862 = vunpack.c.l.b16 %v1513
    %v1863 = vunpack.c.h.b16 %v1513
    %v1864 = vunpack.c.l.b16 %v1514
    %v1865 = vunpack.c.h.b16 %v1514
    %v1866 = vunpack.c.l.b16 %v1515
    %v1867 = vunpack.c.h.b16 %v1515
    %v1868 = vunpack.c.l.b16 %v1516
    %v1869 = vunpack.c.h.b16 %v1516
    %v1870 = vunpack.c.l.b16 %v1517
    %v1871 = vunpack.c.h.b16 %v1517
    %v1872 = vunpack.c.l.b16 %v1518
    %v1873 = vunpack.c.h.b16 %v1518
    %v1874 = vunpack.c.l.b16 %v1519
    %v1875 = vunpack.c.h.b16 %v1519
    %v1876 = vunpack.c.l.b16 %v1520
    %v1877 = vunpack.c.h.b16 %v1520
    %v1878 = vunpack.c.l.b16 %v1521
    %v1879 = vunpack.c.h.b16 %v1521
    %v1880 = vunpack.c.l.b16 %v1522
    %v1881 = vunpack.c.h.b16 %v1522
    %v1882 = vunpack.c.l.b16 %v1523
    %v1883 = vunpack.c.h.b16 %v1523
    %v1884 = vunpack.c.l.b16 %v1524
    %v1885 = vunpack.c.h.b16 %v1524
    %v1886 = vunpack.c.l.b16 %v1525
    %v1887 = vunpack.c.h.b16 %v1525
    %v1888 = vunpack.c.l.b16 %v1526
    %v1889 = vunpack.c.h.b16 %v1526
    %v1890 = vunpack.c.l.b16 %v1527
    %v1891 = vunpack.c.h.b16 %v1527
    %v1892 = vunpack.c.l.b16 %v1528
    %v1893 = vunpack.c.h.b16 %v1528
    %v1894 = vunpack.c.l.b16 %v1529
    %v1895 = vunpack.c.h.b16 %v1529
    %v1896 = vunpack.c.l.b16 %v1530
    %v1897 = vunpack.c.h.b16 %v1530
    %v1898 = vunpack.c.l.b16 %v1531
    %v1899 = vunpack.c.h.b16 %v1531
    %v1900 = vunpack.c.l.b16 %v1532
    %v1901 = vunpack.c.h.b16 %v1532
    %v1902 = vunpack.c.l.b16 %v1533
    %v1903 = vunpack.c.h.b16 %v1533
    %v1904 = vunpack.c.l.b16 %v1534
    %v1905 = vunpack.c.h.b16 %v1534
    %v1906 = vunpack.c.l.b16 %v1535
    %v1907 = vunpack.c.h.b16 %v1535
    %v1908 = vunpack.c.l.b16 %v1536
    %v1909 = vunpack.c.h.b16 %v1536
    %v1910 = vunpack.c.l.b16 %v1537
    %v1911 = vunpack.c.h.b16 %v1537
    %v1912 = vunpack.c.l.b16 %v1538
    %v1913 = vunpack.c.h.b16 %v1538
    %v1914 = vunpack.c.l.b16 %v1539
    %v1915 = vunpack.c.h.b16 %v1539
    %v1916 = vunpack.c.l.b16 %v1540
    %v1917 = vunpack.c.h.b16 %v1540
    %v1918 = vunpack.c.l.b16 %v1541
    %v1919 = vunpack.c.h.b16 %v1541
    %v1920 = vunpack.c.l.b16 %v1542
    %v1921 = vunpack.c.h.b16 %v1542
    %v1922 = vunpack.c.l.b16 %v1543
    %v1923 = vunpack.c.h.b16 %v1543
    %v1924 = vunpack.c.l.b16 %v1544
    %v1925 = vunpack.c.h.b16 %v1544
    %v1926 = vunpack.c.l.b16 %v1545
    %v1927 = vunpack.c.h.b16 %v1545
    %v1928 = vunpack.c.l.b16 %v1546
    %v1929 = vunpack.c.h.b16 %v1546
    %v1930 = vunpack.c.l.b16 %v1547
    %v1931 = vunpack.c.h.b16 %v1547
    %v1932 = vunpack.c.l.b16 %v1548
    %v1933 = vunpack.c.h.b16 %v1548
    %v1934 = vunpack.c.l.b16 %v1549
    %v1935 = vunpack.c.h.b16 %v1549
    %v1936 = vunpack.c.l.b16 %v1550
    %v1937 = vunpack.c.h.b16 %v1550
    %v1938 = vunpack.c.l.b16 %v1551
    %v1939 = vunpack.c.h.b16 %v1551
    %v1940 = vunpack.c.l.b16 %v1552
    %v1941 = vunpack.c.h.b16 %v1552
    %v1942 = vunpack.c.l.b16 %v1553
    %v1943 = vunpack.c.h.b16 %v1553
    %v1944 = vunpack.c.l.b16 %v1554
    %v1945 = vunpack.c.h.b16 %v1554
    %v1946 = vunpack.c.l.b16 %v1555
    %v1947 = vunpack.c.h.b16 %v1555
    %v1948 = vunpack.c.l.b16 %v1556
    %v1949 = vunpack.c.h.b16 %v1556
    %v1950 = vunpack.c.l.b16 %v1557
    %v1951 = vunpack.c.h.b16 %v1557
    %v1952 = vpack.c.b16 %v1700, %v1696
    %v1953 = vpack.c.b16 %v1701, %v1697
    %v1954 = vpack.c.b16 %v1702, %v1698
    %v1955 = vpack.c.b16 %v1703, %v1699
    %v1956 = vpack.c.b16 %v1708, %v1704
    %v1957 = vpack.c.b16 %v1709, %v1705
    %v1958 = vpack.c.b16 %v1710, %v1706
    %v1959 = vpack.c.b16 %v1711, %v1707
    %v1960 = vpack.c.b16 %v1716, %v1712
    %v1961 = vpack.c.b16 %v1717, %v1713
    %v1962 = vpack.c.b16 %v1718, %v1714
    %v1963 = vpack.c.b16 %v1719, %v1715
    %v1964 = vpack.c.b16 %v1724, %v1720
    %v1965 = vpack.c.b16 %v1725, %v1721
    %v1966 = vpack.c.b16 %v1726, %v1722
    %v1967 = vpack.c.b16 %v1727, %v1723
    %v1968 = vpack.c.b16 %v1732, %v1728
    %v1969 = vpack.c.b16 %v1733, %v1729
    %v1970 = vpack.c.b16 %v1734, %v1730
    %v1971 = vpack.c.b16 %v1735, %v1731
    %v1972 = vpack.c.b16 %v1740, %v1736
    %v1973 = vpack.c.b16 %v1741, %v1737
    %v1974 = vpack.c.b16 %v1742, %v1738
    %v1975 = vpack.c.b16 %v1743, %v1739
    %v1976 = vpack.c.b16 %v1748, %v1744
    %v1977 = vpack.c.b16 %v1749, %v1745
    %v1978 = vpack.c.b16 %v1750, %v1746
    %v1979 = vpack.c.b16 %v1751, %v1747
    %v1980 = vpack.c.b16 %v1756, %v1752
    %v1981 = vpack.c.b16 %v1757, %v1753
    %v1982 = vpack.c.b16 %v1758, %v1754
    %v1983 = vpack.c.b16 %v1759, %v1755
    %v1984 = vpack.c.b16 %v1764, %v1760
    %v1985 = vpack.c.b16 %v1765, %v1761
    %v1986 = vpack.c.b16 %v1766, %v1762
    %v1987 = vpack.c.b16 %v1767, %v1763
    %v1988 = vpack.c.b16 %v1772, %v1768
    %v1989 = vpack.c.b16 %v1773, %v1769
    %v1990 = vpack.c.b16 %v1774, %v1770
    %v1991 = vpack.c.b16 %v1775, %v1771
    %v1992 = vpack.c.b16 %v1780, %v1776
    %v1993 = vpack.c.b16 %v1781, %v1777
    %v1994 = vpack.c.b16 %v1782, %v1778
    %v1995 = vpack.c.b16 %v1783, %v1779
    %v1996 = vpack.c.b16 %v1788, %v1784
    %v1997 = vpack.c.b16 %v1789, %v1785
    %v1998 = vpack.c.b16 %v1790, %v1786
    %v1999 = vpack.c.b16 %v1791, %v1787
    %v2000 = vpack.c.b16 %v1796, %v1792
    %v2001 = vpack.c.b16 %v1797, %v1793
    %v2002 = vpack.c.b16 %v1798, %v1794
    %v2003 = vpack.c.b16 %v1799, %v1795
    %v2004 = vpack.c.b16 %v1804, %v1800
    %v2005 = vpack.c.b16 %v1805, %v1801
    %v2006 = vpack.c.b16 %v1806, %v1802
    %v2007 = vpack.c.b16 %v1807, %v1803
    %v2008 = vpack.c.b16 %v1812, %v1808
    %v2009 = vpack.c.b16 %v1813, %v1809
    %v2010 = vpack.c.b16 %v1814, %v1810
    %v2011 = vpack.c.b16 %v1815, %v1811
    %v2012 = vpack.c.b16 %v1820, %v1816
    %v2013 = vpack.c.b16 %v1821, %v1817
    %v2014 = vpack.c.b16 %v1822, %v1818
    %v2015 = vpack.c.b16 %v1823, %v1819
    %v2016 = vpack.c.b16 %v1828, %v1824
    %v2017 = vpack.c.b16 %v1829, %v1825
    %v2018 = vpack.c.b16 %v1830, %v1826
    %v2019 = vpack.c.b16 %v1831, %v1827
    %v2020 = vpack.c.b16 %v1836, %v1832
    %v2021 = vpack.c.b16 %v1837, %v1833
    %v2022 = vpack.c.b16 %v1838, %v1834
    %v2023 = vpack.c.b16 %v1839, %v1835
    %v2024 = vpack.c.b16 %v1844, %v1840
    %v2025 = vpack.c.b16 %v1845, %v1841
    %v2026 = vpack.c.b16 %v1846, %v1842
    %v2027 = vpack.c.b16 %v1847, %v1843
    %v2028 = vpack.c.b16 %v1852, %v1848
    %v2029 = vpack.c.b16 %v1853, %v1849
    %v2030 = vpack.c.b16 %v1854, %v1850
    %v2031 = vpack.c.b16 %v1855, %v1851
    %v2032 = vpack.c.b16 %v1860, %v1856
    %v2033 = vpack.c.b16 %v1861, %v1857
    %v2034 = vpack.c.b16 %v1862, %v1858
    %v2035 = vpack.c.b16 %v1863, %v1859
    %v2036 = vpack.c.b16 %v1868, %v1864
    %v2037 = vpack.c.b16 %v1869, %v1865
    %v2038 = vpack.c.b16 %v1870, %v1866
    %v2039 = vpack.c.b16 %v1871, %v1867
    %v2040 = vpack.c.b16 %v1876, %v1872
    %v2041 = vpack.c.b16 %v1877, %v1873
    %v2042 = vpack.c.b16 %v1878, %v1874
    %v2043 = vpack.c.b16 %v1879, %v1875
    %v2044 = vpack.c.b16 %v1884, %v1880
    %v2045 = vpack.c.b16 %v1885, %v1881
    %v2046 = vpack.c.b16 %v1886, %v1882
    %v2047 = vpack.c.b16 %v1887, %v1883
    %v2048 = vpack.c.b16 %v1892, %v1888
    %v2049 = vpack.c.b16 %v1893, %v1889
    %v2050 = vpack.c.b16 %v1894, %v1890
    %v2051 = vpack.c.b16 %v1895, %v1891
    %v2052 = vpack.c.b16 %v1900, %v1896
    %v2053 = vpack.c.b16 %v1901, %v1897
    %v2054 = vpack.c.b16 %v1902, %v1898
    %v2055 = vpack.c.b16 %v1903, %v1899
    %v2056 = vpack.c.b16 %v1908, %v1904
    %v2057 = vpack.c.b16 %v1909, %v1905
    %v2058 = vpack.c.b16 %v1910, %v1906
    %v2059 = vpack.c.b16 %v1911, %v1907
    %v2060 = vpack.c.b16 %v1916, %v1912
    %v2061 = vpack.c.b16 %v1917, %v1913
    %v2062 = vpack.c.b16 %v1918, %v1914
    %v2063 = vpack.c.b16 %v1919, %v1915
    %v2064 = vpack.c.b16 %v1924, %v1920
    %v2065 = vpack.c.b16 %v1925, %v1921
    %v2066 = vpack.c.b16 %v1926, %v1922
    %v2067 = vpack.c.b16 %v1927, %v1923
    %v2068 = vpack.c.b16 %v1932, %v1928
    %v2069 = vpack.c.b16 %v1933, %v1929
    %v2070 = vpack.c.b16 %v1934, %v1930
    %v2071 = vpack.c.b16 %v1935, %v1931
    %v2072 = vpack.c.b16 %v1940, %v1936
    %v2073 = vpack.c.b16 %v1941, %v1937
    %v2074 = vpack.c.b16 %v1942, %v1938
    %v2075 = vpack.c.b16 %v1943, %v1939
    %v2076 = vpack.c.b16 %v1948, %v1944
    %v2077 = vpack.c.b16 %v1949, %v1945
    %v2078 = vpack.c.b16 %v1950, %v1946
    %v2079 = vpack.c.b16 %v1951, %v1947
    %2208 = vmatpush.bf16.msra.mxu0 %v1980
    %2209 = vmatpush.bf16.msra.mxu0 %v1976
    %2210 = vmatpush.bf16.msra.mxu0 %v1972
    %2211 = vmatpush.bf16.msra.mxu0 %v1968
    %2212 = vmatpush.bf16.msra.mxu0 %v1964
    %2213 = vmatpush.bf16.msra.mxu0 %v1960
    %2214 = vmatpush.bf16.msra.mxu0 %v1956
    %2215 = vmatpush.bf16.msra.mxu0 %v1952
    %2216 = vmatmul.bf16.gmra.mxu0 %v1426
    %v2217 = vpop.f32.mrf.mxu0
    %v2218 = vadd.f32 %v1560, %v2217
    %v2219 = vpop.f32.mrf.mxu0
    %v2220 = vadd.f32 %v1560, %v2219
    %2221 = vdwg.mxu0
    %2222 = vmatpush.bf16.msra.mxu0 %v2012
    %2223 = vmatpush.bf16.msra.mxu0 %v2008
    %2224 = vmatpush.bf16.msra.mxu0 %v2004
    %2225 = vmatpush.bf16.msra.mxu0 %v2000
    %2226 = vmatpush.bf16.msra.mxu0 %v1996
    %2227 = vmatpush.bf16.msra.mxu0 %v1992
    %2228 = vmatpush.bf16.msra.mxu0 %v1988
    %2229 = vmatpush.bf16.msra.mxu0 %v1984
    %2230 = vmatmul.bf16.gmra.mxu0 %v1427
    %v2231 = vpop.f32.mrf.mxu0
    %v2232 = vadd.f32 %v2218, %v2231
    %v2233 = vpop.f32.mrf.mxu0
    %v2234 = vadd.f32 %v2220, %v2233
    %2235 = vdwg.mxu0
    %2236 = vmatpush.bf16.msra.mxu0 %v2044
    %2237 = vmatpush.bf16.msra.mxu0 %v2040
    %2238 = vmatpush.bf16.msra.mxu0 %v2036
    %2239 = vmatpush.bf16.msra.mxu0 %v2032
    %2240 = vmatpush.bf16.msra.mxu0 %v2028
    %2241 = vmatpush.bf16.msra.mxu0 %v2024
    %2242 = vmatpush.bf16.msra.mxu0 %v2020
    %2243 = vmatpush.bf16.msra.mxu0 %v2016
    %2244 = vmatmul.bf16.gmra.mxu0 %v1428
    %v2245 = vpop.f32.mrf.mxu0
    %v2246 = vadd.f32 %v2232, %v2245
    %v2247 = vpop.f32.mrf.mxu0
    %v2248 = vadd.f32 %v2234, %v2247
    %2249 = vdwg.mxu0
    %2250 = vmatpush.bf16.msra.mxu0 %v2076
    %2251 = vmatpush.bf16.msra.mxu0 %v2072
    %2252 = vmatpush.bf16.msra.mxu0 %v2068
    %2253 = vmatpush.bf16.msra.mxu0 %v2064
    %2254 = vmatpush.bf16.msra.mxu0 %v2060
    %2255 = vmatpush.bf16.msra.mxu0 %v2056
    %2256 = vmatpush.bf16.msra.mxu0 %v2052
    %2257 = vmatpush.bf16.msra.mxu0 %v2048
    %2258 = vmatmul.bf16.gmra.mxu0 %v1429
    %v2259 = vpop.f32.mrf.mxu0
    %v2260 = vadd.f32 %v2246, %v2259
    %v2261 = vpop.f32.mrf.mxu0
    %v2262 = vadd.f32 %v2248, %v2261
    %2263 = vdwg.mxu0
    %2264 = vmatpush.bf16.msra.mxu0 %v1981
    %2265 = vmatpush.bf16.msra.mxu0 %v1977
    %2266 = vmatpush.bf16.msra.mxu0 %v1973
    %2267 = vmatpush.bf16.msra.mxu0 %v1969
    %2268 = vmatpush.bf16.msra.mxu0 %v1965
    %2269 = vmatpush.bf16.msra.mxu0 %v1961
    %2270 = vmatpush.bf16.msra.mxu0 %v1957
    %2271 = vmatpush.bf16.msra.mxu0 %v1953
    %2272 = vmatmul.bf16.gmra.mxu0 %v1426
    %v2273 = vpop.f32.mrf.mxu0
    %v2274 = vadd.f32 %v1561, %v2273
    %v2275 = vpop.f32.mrf.mxu0
    %v2276 = vadd.f32 %v1561, %v2275
    %2277 = vdwg.mxu0
    %2278 = vmatpush.bf16.msra.mxu0 %v2013
    %2279 = vmatpush.bf16.msra.mxu0 %v2009
    %2280 = vmatpush.bf16.msra.mxu0 %v2005
    %2281 = vmatpush.bf16.msra.mxu0 %v2001
    %2282 = vmatpush.bf16.msra.mxu0 %v1997
    %2283 = vmatpush.bf16.msra.mxu0 %v1993
    %2284 = vmatpush.bf16.msra.mxu0 %v1989
    %2285 = vmatpush.bf16.msra.mxu0 %v1985
    %2286 = vmatmul.bf16.gmra.mxu0 %v1427
    %v2287 = vpop.f32.mrf.mxu0
    %v2288 = vadd.f32 %v2274, %v2287
    %v2289 = vpop.f32.mrf.mxu0
    %v2290 = vadd.f32 %v2276, %v2289
    %2291 = vdwg.mxu0
    %2292 = vmatpush.bf16.msra.mxu0 %v2045
    %2293 = vmatpush.bf16.msra.mxu0 %v2041
    %2294 = vmatpush.bf16.msra.mxu0 %v2037
    %2295 = vmatpush.bf16.msra.mxu0 %v2033
    %2296 = vmatpush.bf16.msra.mxu0 %v2029
    %2297 = vmatpush.bf16.msra.mxu0 %v2025
    %2298 = vmatpush.bf16.msra.mxu0 %v2021
    %2299 = vmatpush.bf16.msra.mxu0 %v2017
    %2300 = vmatmul.bf16.gmra.mxu0 %v1428
    %v2301 = vpop.f32.mrf.mxu0
    %v2302 = vadd.f32 %v2288, %v2301
    %v2303 = vpop.f32.mrf.mxu0
    %v2304 = vadd.f32 %v2290, %v2303
    %2305 = vdwg.mxu0
    %2306 = vmatpush.bf16.msra.mxu0 %v2077
    %2307 = vmatpush.bf16.msra.mxu0 %v2073
    %2308 = vmatpush.bf16.msra.mxu0 %v2069
    %2309 = vmatpush.bf16.msra.mxu0 %v2065
    %2310 = vmatpush.bf16.msra.mxu0 %v2061
    %2311 = vmatpush.bf16.msra.mxu0 %v2057
    %2312 = vmatpush.bf16.msra.mxu0 %v2053
    %2313 = vmatpush.bf16.msra.mxu0 %v2049
    %2314 = vmatmul.bf16.gmra.mxu0 %v1429
    %v2315 = vpop.f32.mrf.mxu0
    %v2316 = vadd.f32 %v2302, %v2315
    %v2317 = vpop.f32.mrf.mxu0
    %v2318 = vadd.f32 %v2304, %v2317
    %2319 = vdwg.mxu0
    %2320 = vmatpush.bf16.msra.mxu0 %v1982
    %2321 = vmatpush.bf16.msra.mxu0 %v1978
    %2322 = vmatpush.bf16.msra.mxu0 %v1974
    %2323 = vmatpush.bf16.msra.mxu0 %v1970
    %2324 = vmatpush.bf16.msra.mxu0 %v1966
    %2325 = vmatpush.bf16.msra.mxu0 %v1962
    %2326 = vmatpush.bf16.msra.mxu0 %v1958
    %2327 = vmatpush.bf16.msra.mxu0 %v1954
    %2328 = vmatmul.bf16.gmra.mxu0 %v1426
    %v2329 = vpop.f32.mrf.mxu0
    %v2330 = vadd.f32 %v1562, %v2329
    %v2331 = vpop.f32.mrf.mxu0
    %v2332 = vadd.f32 %v1562, %v2331
    %2333 = vdwg.mxu0
    %2334 = vmatpush.bf16.msra.mxu0 %v2014
    %2335 = vmatpush.bf16.msra.mxu0 %v2010
    %2336 = vmatpush.bf16.msra.mxu0 %v2006
    %2337 = vmatpush.bf16.msra.mxu0 %v2002
    %2338 = vmatpush.bf16.msra.mxu0 %v1998
    %2339 = vmatpush.bf16.msra.mxu0 %v1994
    %2340 = vmatpush.bf16.msra.mxu0 %v1990
    %2341 = vmatpush.bf16.msra.mxu0 %v1986
    %2342 = vmatmul.bf16.gmra.mxu0 %v1427
    %v2343 = vpop.f32.mrf.mxu0
    %v2344 = vadd.f32 %v2330, %v2343
    %v2345 = vpop.f32.mrf.mxu0
    %v2346 = vadd.f32 %v2332, %v2345
    %2347 = vdwg.mxu0
    %2348 = vmatpush.bf16.msra.mxu0 %v2046
    %2349 = vmatpush.bf16.msra.mxu0 %v2042
    %2350 = vmatpush.bf16.msra.mxu0 %v2038
    %2351 = vmatpush.bf16.msra.mxu0 %v2034
    %2352 = vmatpush.bf16.msra.mxu0 %v2030
    %2353 = vmatpush.bf16.msra.mxu0 %v2026
    %2354 = vmatpush.bf16.msra.mxu0 %v2022
    %2355 = vmatpush.bf16.msra.mxu0 %v2018
    %2356 = vmatmul.bf16.gmra.mxu0 %v1428
    %v2357 = vpop.f32.mrf.mxu0
    %v2358 = vadd.f32 %v2344, %v2357
    %v2359 = vpop.f32.mrf.mxu0
    %v2360 = vadd.f32 %v2346, %v2359
    %2361 = vdwg.mxu0
    %2362 = vmatpush.bf16.msra.mxu0 %v2078
    %2363 = vmatpush.bf16.msra.mxu0 %v2074
    %2364 = vmatpush.bf16.msra.mxu0 %v2070
    %2365 = vmatpush.bf16.msra.mxu0 %v2066
    %2366 = vmatpush.bf16.msra.mxu0 %v2062
    %2367 = vmatpush.bf16.msra.mxu0 %v2058
    %2368 = vmatpush.bf16.msra.mxu0 %v2054
    %2369 = vmatpush.bf16.msra.mxu0 %v2050
    %2370 = vmatmul.bf16.gmra.mxu0 %v1429
    %v2371 = vpop.f32.mrf.mxu0
    %v2372 = vadd.f32 %v2358, %v2371
    %v2373 = vpop.f32.mrf.mxu0
    %v2374 = vadd.f32 %v2360, %v2373
    %2375 = vdwg.mxu0
    %2376 = vmatpush.bf16.msra.mxu0 %v1983
    %2377 = vmatpush.bf16.msra.mxu0 %v1979
    %2378 = vmatpush.bf16.msra.mxu0 %v1975
    %2379 = vmatpush.bf16.msra.mxu0 %v1971
    %2380 = vmatpush.bf16.msra.mxu0 %v1967
    %2381 = vmatpush.bf16.msra.mxu0 %v1963
    %2382 = vmatpush.bf16.msra.mxu0 %v1959
    %2383 = vmatpush.bf16.msra.mxu0 %v1955
    %2384 = vmatmul.bf16.gmra.mxu0 %v1426
    %v2385 = vpop.f32.mrf.mxu0
    %v2386 = vadd.f32 %v1563, %v2385
    %v2387 = vpop.f32.mrf.mxu0
    %v2388 = vadd.f32 %v1563, %v2387
    %2389 = vdwg.mxu0
    %2390 = vmatpush.bf16.msra.mxu0 %v2015
    %2391 = vmatpush.bf16.msra.mxu0 %v2011
    %2392 = vmatpush.bf16.msra.mxu0 %v2007
    %2393 = vmatpush.bf16.msra.mxu0 %v2003
    %2394 = vmatpush.bf16.msra.mxu0 %v1999
    %2395 = vmatpush.bf16.msra.mxu0 %v1995
    %2396 = vmatpush.bf16.msra.mxu0 %v1991
    %2397 = vmatpush.bf16.msra.mxu0 %v1987
    %2398 = vmatmul.bf16.gmra.mxu0 %v1427
    %v2399 = vpop.f32.mrf.mxu0
    %v2400 = vadd.f32 %v2386, %v2399
    %v2401 = vpop.f32.mrf.mxu0
    %v2402 = vadd.f32 %v2388, %v2401
    %2403 = vdwg.mxu0
    %2404 = vmatpush.bf16.msra.mxu0 %v2047
    %2405 = vmatpush.bf16.msra.mxu0 %v2043
    %2406 = vmatpush.bf16.msra.mxu0 %v2039
    %2407 = vmatpush.bf16.msra.mxu0 %v2035
    %2408 = vmatpush.bf16.msra.mxu0 %v2031
    %2409 = vmatpush.bf16.msra.mxu0 %v2027
    %2410 = vmatpush.bf16.msra.mxu0 %v2023
    %2411 = vmatpush.bf16.msra.mxu0 %v2019
    %2412 = vmatmul.bf16.gmra.mxu0 %v1428
    %v2413 = vpop.f32.mrf.mxu0
    %v2414 = vadd.f32 %v2400, %v2413
    %v2415 = vpop.f32.mrf.mxu0
    %v2416 = vadd.f32 %v2402, %v2415
    %2417 = vdwg.mxu0
    %2418 = vmatpush.bf16.msra.mxu0 %v2079
    %2419 = vmatpush.bf16.msra.mxu0 %v2075
    %2420 = vmatpush.bf16.msra.mxu0 %v2071
    %2421 = vmatpush.bf16.msra.mxu0 %v2067
    %2422 = vmatpush.bf16.msra.mxu0 %v2063
    %2423 = vmatpush.bf16.msra.mxu0 %v2059
    %2424 = vmatpush.bf16.msra.mxu0 %v2055
    %2425 = vmatpush.bf16.msra.mxu0 %v2051
    %2426 = vmatmul.bf16.gmra.mxu0 %v1429
    %v2427 = vpop.f32.mrf.mxu0
    %v2428 = vadd.f32 %v2414, %v2427
    %v2429 = vpop.f32.mrf.mxu0
    %v2430 = vadd.f32 %v2416, %v2429
    %2431 = vdwg.mxu0
    %v2432 = vmax.f32 %v2260, 0.0
    %v2433 = vmax.f32 %v2316, 0.0
    %v2434 = vmax.f32 %v2372, 0.0
    %v2435 = vmax.f32 %v2428, 0.0
    %v2436 = vmax.f32 %v2262, 0.0
    %v2437 = vmax.f32 %v2318, 0.0
    %v2438 = vmax.f32 %v2374, 0.0
    %v2439 = vmax.f32 %v2430, 0.0
    %v2440 = vpack.c.bf16 %v2436, %v2432
    %v2441 = vpack.c.bf16 %v2437, %v2433
    %v2442 = vpack.c.bf16 %v2438, %v2434
    %v2443 = vpack.c.bf16 %v2439, %v2435
    %v2444 = vld [vmem:[#allocation13] sm:$0xf]
    %v2445 = vld [vmem:[#allocation13 + $0x4] sm:$0xf]
    %v2446 = vld [vmem:[#allocation13 + $0x8] sm:$0xf]
    %v2447 = vld [vmem:[#allocation13 + $0xc] sm:$0xf]
    %v2448 = vld [vmem:[#allocation13 + $0x10] sm:$0xf]
    %v2449 = vld [vmem:[#allocation13 + $0x14] sm:$0xf]
    %v2450 = vld [vmem:[#allocation13 + $0x18] sm:$0xf]
    %v2451 = vld [vmem:[#allocation13 + $0x1c] sm:$0xf]
    %v2452 = vld [vmem:[#allocation13 + $0x20] sm:$0xf]
    %v2453 = vld [vmem:[#allocation13 + $0x24] sm:$0xf]
    %v2454 = vld [vmem:[#allocation13 + $0x28] sm:$0xf]
    %v2455 = vld [vmem:[#allocation13 + $0x2c] sm:$0xf]
    %v2456 = vld [vmem:[#allocation13 + $0x30] sm:$0xf]
    %v2457 = vld [vmem:[#allocation13 + $0x34] sm:$0xf]
    %v2458 = vld [vmem:[#allocation13 + $0x38] sm:$0xf]
    %v2459 = vld [vmem:[#allocation13 + $0x3c] sm:$0xf]
    %v2460 = vld [vmem:[#allocation13 + $0x40] sm:$0xf]
    %v2461 = vld [vmem:[#allocation13 + $0x44] sm:$0xf]
    %v2462 = vld [vmem:[#allocation13 + $0x48] sm:$0xf]
    %v2463 = vld [vmem:[#allocation13 + $0x4c] sm:$0xf]
    %v2464 = vld [vmem:[#allocation13 + $0x50] sm:$0xf]
    %v2465 = vld [vmem:[#allocation13 + $0x54] sm:$0xf]
    %v2466 = vld [vmem:[#allocation13 + $0x58] sm:$0xf]
    %v2467 = vld [vmem:[#allocation13 + $0x5c] sm:$0xf]
    %v2468 = vld [vmem:[#allocation13 + $0x60] sm:$0xf]
    %v2469 = vld [vmem:[#allocation13 + $0x64] sm:$0xf]
    %v2470 = vld [vmem:[#allocation13 + $0x68] sm:$0xf]
    %v2471 = vld [vmem:[#allocation13 + $0x6c] sm:$0xf]
    %v2472 = vld [vmem:[#allocation13 + $0x70] sm:$0xf]
    %v2473 = vld [vmem:[#allocation13 + $0x74] sm:$0xf]
    %v2474 = vld [vmem:[#allocation13 + $0x78] sm:$0xf]
    %v2475 = vld [vmem:[#allocation13 + $0x7c] sm:$0xf]
    %v2476 = vld [vmem:[#allocation13 + $0x80] sm:$0xf]
    %v2477 = vld [vmem:[#allocation13 + $0x84] sm:$0xf]
    %v2478 = vld [vmem:[#allocation13 + $0x88] sm:$0xf]
    %v2479 = vld [vmem:[#allocation13 + $0x8c] sm:$0xf]
    %v2480 = vld [vmem:[#allocation13 + $0x90] sm:$0xf]
    %v2481 = vld [vmem:[#allocation13 + $0x94] sm:$0xf]
    %v2482 = vld [vmem:[#allocation13 + $0x98] sm:$0xf]
    %v2483 = vld [vmem:[#allocation13 + $0x9c] sm:$0xf]
    %v2484 = vld [vmem:[#allocation13 + $0xa0] sm:$0xf]
    %v2485 = vld [vmem:[#allocation13 + $0xa4] sm:$0xf]
    %v2486 = vld [vmem:[#allocation13 + $0xa8] sm:$0xf]
    %v2487 = vld [vmem:[#allocation13 + $0xac] sm:$0xf]
    %v2488 = vld [vmem:[#allocation13 + $0xb0] sm:$0xf]
    %v2489 = vld [vmem:[#allocation13 + $0xb4] sm:$0xf]
    %v2490 = vld [vmem:[#allocation13 + $0xb8] sm:$0xf]
    %v2491 = vld [vmem:[#allocation13 + $0xbc] sm:$0xf]
    %v2492 = vld [vmem:[#allocation13 + $0xc0] sm:$0xf]
    %v2493 = vld [vmem:[#allocation13 + $0xc4] sm:$0xf]
    %v2494 = vld [vmem:[#allocation13 + $0xc8] sm:$0xf]
    %v2495 = vld [vmem:[#allocation13 + $0xcc] sm:$0xf]
    %v2496 = vld [vmem:[#allocation13 + $0xd0] sm:$0xf]
    %v2497 = vld [vmem:[#allocation13 + $0xd4] sm:$0xf]
    %v2498 = vld [vmem:[#allocation13 + $0xd8] sm:$0xf]
    %v2499 = vld [vmem:[#allocation13 + $0xdc] sm:$0xf]
    %v2500 = vld [vmem:[#allocation13 + $0xe0] sm:$0xf]
    %v2501 = vld [vmem:[#allocation13 + $0xe4] sm:$0xf]
    %v2502 = vld [vmem:[#allocation13 + $0xe8] sm:$0xf]
    %v2503 = vld [vmem:[#allocation13 + $0xec] sm:$0xf]
    %v2504 = vld [vmem:[#allocation13 + $0xf0] sm:$0xf]
    %v2505 = vld [vmem:[#allocation13 + $0xf4] sm:$0xf]
    %v2506 = vld [vmem:[#allocation13 + $0xf8] sm:$0xf]
    %v2507 = vld [vmem:[#allocation13 + $0xfc] sm:$0xf]
    %v2508 = vld [vmem:[%s8] sm:$0x1]
    %v2510 = vperm.slane %v2508, 0
    %v2576 = vunpack.c.l.b16 %v2444
    %v2577 = vunpack.c.l.b16 %v2445
    %v2578 = vunpack.c.l.b16 %v2446
    %v2579 = vunpack.c.l.b16 %v2447
    %v2580 = vunpack.c.l.b16 %v2448
    %v2581 = vunpack.c.l.b16 %v2449
    %v2582 = vunpack.c.l.b16 %v2450
    %v2583 = vunpack.c.l.b16 %v2451
    %v2584 = vunpack.c.l.b16 %v2452
    %v2585 = vunpack.c.l.b16 %v2453
    %v2586 = vunpack.c.l.b16 %v2454
    %v2587 = vunpack.c.l.b16 %v2455
    %v2588 = vunpack.c.l.b16 %v2456
    %v2589 = vunpack.c.l.b16 %v2457
    %v2590 = vunpack.c.l.b16 %v2458
    %v2591 = vunpack.c.l.b16 %v2459
    %v2592 = vunpack.c.l.b16 %v2460
    %v2593 = vunpack.c.l.b16 %v2461
    %v2594 = vunpack.c.l.b16 %v2462
    %v2595 = vunpack.c.l.b16 %v2463
    %v2596 = vunpack.c.l.b16 %v2464
    %v2597 = vunpack.c.l.b16 %v2465
    %v2598 = vunpack.c.l.b16 %v2466
    %v2599 = vunpack.c.l.b16 %v2467
    %v2600 = vunpack.c.l.b16 %v2468
    %v2601 = vunpack.c.l.b16 %v2469
    %v2602 = vunpack.c.l.b16 %v2470
    %v2603 = vunpack.c.l.b16 %v2471
    %v2604 = vunpack.c.l.b16 %v2472
    %v2605 = vunpack.c.l.b16 %v2473
    %v2606 = vunpack.c.l.b16 %v2474
    %v2607 = vunpack.c.l.b16 %v2475
    %v2608 = vunpack.c.l.b16 %v2476
    %v2609 = vunpack.c.l.b16 %v2477
    %v2610 = vunpack.c.l.b16 %v2478
    %v2611 = vunpack.c.l.b16 %v2479
    %v2612 = vunpack.c.l.b16 %v2480
    %v2613 = vunpack.c.l.b16 %v2481
    %v2614 = vunpack.c.l.b16 %v2482
    %v2615 = vunpack.c.l.b16 %v2483
    %v2616 = vunpack.c.l.b16 %v2484
    %v2617 = vunpack.c.l.b16 %v2485
    %v2618 = vunpack.c.l.b16 %v2486
    %v2619 = vunpack.c.l.b16 %v2487
    %v2620 = vunpack.c.l.b16 %v2488
    %v2621 = vunpack.c.l.b16 %v2489
    %v2622 = vunpack.c.l.b16 %v2490
    %v2623 = vunpack.c.l.b16 %v2491
    %v2624 = vunpack.c.l.b16 %v2492
    %v2625 = vunpack.c.l.b16 %v2493
    %v2626 = vunpack.c.l.b16 %v2494
    %v2627 = vunpack.c.l.b16 %v2495
    %v2628 = vunpack.c.l.b16 %v2496
    %v2629 = vunpack.c.l.b16 %v2497
    %v2630 = vunpack.c.l.b16 %v2498
    %v2631 = vunpack.c.l.b16 %v2499
    %v2632 = vunpack.c.l.b16 %v2500
    %v2633 = vunpack.c.l.b16 %v2501
    %v2634 = vunpack.c.l.b16 %v2502
    %v2635 = vunpack.c.l.b16 %v2503
    %v2636 = vunpack.c.l.b16 %v2504
    %v2637 = vunpack.c.l.b16 %v2505
    %v2638 = vunpack.c.l.b16 %v2506
    %v2639 = vunpack.c.l.b16 %v2507
    %v2640 = vpack.c.b16 %v2577, %v2576
    %v2641 = vpack.c.b16 %v2579, %v2578
    %v2642 = vpack.c.b16 %v2581, %v2580
    %v2643 = vpack.c.b16 %v2583, %v2582
    %v2644 = vpack.c.b16 %v2585, %v2584
    %v2645 = vpack.c.b16 %v2587, %v2586
    %v2646 = vpack.c.b16 %v2589, %v2588
    %v2647 = vpack.c.b16 %v2591, %v2590
    %v2648 = vpack.c.b16 %v2593, %v2592
    %v2649 = vpack.c.b16 %v2595, %v2594
    %v2650 = vpack.c.b16 %v2597, %v2596
    %v2651 = vpack.c.b16 %v2599, %v2598
    %v2652 = vpack.c.b16 %v2601, %v2600
    %v2653 = vpack.c.b16 %v2603, %v2602
    %v2654 = vpack.c.b16 %v2605, %v2604
    %v2655 = vpack.c.b16 %v2607, %v2606
    %v2656 = vpack.c.b16 %v2609, %v2608
    %v2657 = vpack.c.b16 %v2611, %v2610
    %v2658 = vpack.c.b16 %v2613, %v2612
    %v2659 = vpack.c.b16 %v2615, %v2614
    %v2660 = vpack.c.b16 %v2617, %v2616
    %v2661 = vpack.c.b16 %v2619, %v2618
    %v2662 = vpack.c.b16 %v2621, %v2620
    %v2663 = vpack.c.b16 %v2623, %v2622
    %v2664 = vpack.c.b16 %v2625, %v2624
    %v2665 = vpack.c.b16 %v2627, %v2626
    %v2666 = vpack.c.b16 %v2629, %v2628
    %v2667 = vpack.c.b16 %v2631, %v2630
    %v2668 = vpack.c.b16 %v2633, %v2632
    %v2669 = vpack.c.b16 %v2635, %v2634
    %v2670 = vpack.c.b16 %v2637, %v2636
    %v2671 = vpack.c.b16 %v2639, %v2638
    %2704 = vmatpush.bf16.msra.mxu0 %v2647
    %2705 = vmatpush.bf16.msra.mxu0 %v2646
    %2706 = vmatpush.bf16.msra.mxu0 %v2645
    %2707 = vmatpush.bf16.msra.mxu0 %v2644
    %2708 = vmatpush.bf16.msra.mxu0 %v2643
    %2709 = vmatpush.bf16.msra.mxu0 %v2642
    %2710 = vmatpush.bf16.msra.mxu0 %v2641
    %2711 = vmatpush.bf16.msra.mxu0 %v2640
    %2712 = vmatmul.bf16.gmra.mxu0 %v2440
    %v2713 = vpop.f32.mrf.mxu0
    %v2714 = vadd.f32 %v2510, %v2713
    %v2715 = vpop.f32.mrf.mxu0
    %v2716 = vadd.f32 %v2510, %v2715
    %2717 = vdwg.mxu0
    %2718 = vmatpush.bf16.msra.mxu0 %v2655
    %2719 = vmatpush.bf16.msra.mxu0 %v2654
    %2720 = vmatpush.bf16.msra.mxu0 %v2653
    %2721 = vmatpush.bf16.msra.mxu0 %v2652
    %2722 = vmatpush.bf16.msra.mxu0 %v2651
    %2723 = vmatpush.bf16.msra.mxu0 %v2650
    %2724 = vmatpush.bf16.msra.mxu0 %v2649
    %2725 = vmatpush.bf16.msra.mxu0 %v2648
    %2726 = vmatmul.bf16.gmra.mxu0 %v2441
    %v2727 = vpop.f32.mrf.mxu0
    %v2728 = vadd.f32 %v2714, %v2727
    %v2729 = vpop.f32.mrf.mxu0
    %v2730 = vadd.f32 %v2716, %v2729
    %2731 = vdwg.mxu0
    %2732 = vmatpush.bf16.msra.mxu0 %v2663
    %2733 = vmatpush.bf16.msra.mxu0 %v2662
    %2734 = vmatpush.bf16.msra.mxu0 %v2661
    %2735 = vmatpush.bf16.msra.mxu0 %v2660
    %2736 = vmatpush.bf16.msra.mxu0 %v2659
    %2737 = vmatpush.bf16.msra.mxu0 %v2658
    %2738 = vmatpush.bf16.msra.mxu0 %v2657
    %2739 = vmatpush.bf16.msra.mxu0 %v2656
    %2740 = vmatmul.bf16.gmra.mxu0 %v2442
    %v2741 = vpop.f32.mrf.mxu0
    %v2742 = vadd.f32 %v2728, %v2741
    %v2743 = vpop.f32.mrf.mxu0
    %v2744 = vadd.f32 %v2730, %v2743
    %2745 = vdwg.mxu0
    %2746 = vmatpush.bf16.msra.mxu0 %v2671
    %2747 = vmatpush.bf16.msra.mxu0 %v2670
    %2748 = vmatpush.bf16.msra.mxu0 %v2669
    %2749 = vmatpush.bf16.msra.mxu0 %v2668
    %2750 = vmatpush.bf16.msra.mxu0 %v2667
    %2751 = vmatpush.bf16.msra.mxu0 %v2666
    %2752 = vmatpush.bf16.msra.mxu0 %v2665
    %2753 = vmatpush.bf16.msra.mxu0 %v2664
    %2754 = vmatmul.bf16.gmra.mxu0 %v2443
    %v2755 = vpop.f32.mrf.mxu0
    %v2756 = vadd.f32 %v2742, %v2755
    %v2757 = vpop.f32.mrf.mxu0
    %v2758 = vadd.f32 %v2744, %v2757
    %2759 = vdwg.mxu0
    %2760 = vst [vmem:[#allocation14] sm:$0xff] %v2756
    %2761 = vst [vmem:[#allocation14 + $0x8] sm:$0xff] %v2758
    // Predicated region
    $region66: #{tpu_custom_call.1} parent=1 // pred_check
      _
    $region67: #{tpu_custom_call.1} parent=1 // pred_check_branch
      %2763 = sbr.rel (0) target = $region69
    $region68: #{tpu_custom_call.1} parent=1 // pred_region
      %2765 = vsyncadd [#allocation4], 0
      %s2766 = sshll.u32 [#allocation14], 4
      %s2767 = int_to_ptr.vmem [resolvable:$true] %s2766
      %s2768 = sshll.u32 %s9, 4
      %s2769 = int_to_ptr.hbm [resolvable:$true] %s2768
      %2774 = dma.vmem_to_hbm [thread:$0]  %s2767, 256, %s2769, [#allocation4], 128, 128, 8
    $region69: #{tpu_custom_call.1} parent=1 // pred_fallthru
      _
    // Predicated region
    $region70: #{tpu_custom_call.1} parent=1 // pred_check
      _
    $region71: #{tpu_custom_call.1} parent=1 // pred_check_branch
      %2776 = sbr.rel (0) target = $region73
    $region72: #{tpu_custom_call.1} parent=1 // pred_region
      %2778 = dma.done [#allocation4], 256
    $region73: #{tpu_custom_call.1} parent=1 // pred_fallthru
      _
    %2779 = vsyncpa [#allocation3], 1
    %2780 = vsyncpa [#allocation6], 1
    %2781 = vsyncpa [#allocation9], 1
    %2782 = vsyncpa [#allocation12], 1
    %2783 = vsyncpa [#allocation4], 1

</llo_original>
